<compile_context>
chip_gen: v6e
topology: v6e:2x2x1
jax: 0.10.0
libtpu: 0.0.40
codegen_flags: <defaults>
</compile_context>

<pallas_src>
import functools
import math

import jax
import jax.numpy as jnp
from jax.experimental import pallas as pl
from jax.experimental.pallas import tpu as pltpu


# pl.reciprocal(approx=True) uses the EUP vrcp slot (nearly free) but has
# ~1e-3 relative error vs an exact reciprocal; flip to False for strict
# allclose validation against the PyTorch reference.
_APPROX_RECIPROCAL = True

_VMEM_LIMIT = 64 * 1024 * 1024


# --------------------------- in-kernel helpers -----------------------------

def _layer_norm(x, g, b, eps=1e-5):
    mu = jnp.mean(x, axis=-1, keepdims=True)
    var = jnp.mean(jnp.square(x - mu), axis=-1, keepdims=True)
    return (x - mu) * jax.lax.rsqrt(var + eps) * g + b


def _head_attention(qh, kh, vh, mask):
    """One (batch, head) attention: qh (Lq,D), kh/vh (Lk,D), mask (Lq,Lk)."""
    s = jnp.dot(qh, kh.T, preferred_element_type=jnp.float32)      # (Lq, Lk)
    s = jnp.where(mask == 0.0, jnp.float32(-1e20), s)              # masked_fill
    s = s - jnp.max(s, axis=-1, keepdims=True)
    p = jnp.exp(s)
    denom = jnp.sum(p, axis=-1, keepdims=True)
    out = jnp.dot(p, vh, preferred_element_type=jnp.float32)       # (Lq, D)
    if _APPROX_RECIPROCAL:
        return out * pl.reciprocal(denom, approx=True)
    return out / denom


def _mha_into(out_scr, q, k, v, mask_ref, *, heads, nb, lq, lk):
    """Multi-head attention; each head's output is stored straight into the
    (nb*lq, E) VMEM scratch (no concatenate, bounded live ranges)."""
    E = q.shape[-1]
    D = E // heads
    scale = 1.0 / math.sqrt(D)                 # fold 1/sqrt(D) into q
    for b in range(nb):
        rq, rk = b * lq, b * lk
        m = mask_ref[b]                        # (lq, lk)
        for h in range(heads):
            c0 = h * D
            qh = q[rq:rq + lq, c0:c0 + D] * scale
            kh = k[rk:rk + lk, c0:c0 + D]
            vh = v[rk:rk + lk, c0:c0 + D]
            out_scr[rq:rq + lq, c0:c0 + D] = _head_attention(qh, kh, vh, m)


# ----------------------------- fused kernels --------------------------------

def _decoder_block_kernel(x_ref, enc_ref, trg_m_ref, src_m_ref,
                          w_qkv_ref, w_qc_ref, w_kvc_ref,
                          g0_ref, b0_ref, g1_ref, b1_ref, g2_ref, b2_ref,
                          ff_w1_ref, ff_b1_ref, ff_w2_ref, ff_b2_ref,
                          o_ref, attn_scr, *, heads, nb, lq, lk):
    E = x_ref.shape[-1]

    x = x_ref[...]                                                  # (nb*lq, E) f32

    # ---- masked self-attention (q = k = v = x), fused bf16 QKV projection ----
    qkv = jnp.dot(x.astype(jnp.bfloat16), w_qkv_ref[...],
                  preferred_element_type=jnp.float32)               # (nb*lq, 3E)
    q, k, v = qkv[:, :E], qkv[:, E:2 * E], qkv[:, 2 * E:]
    _mha_into(attn_scr, q, k, v, trg_m_ref, heads=heads, nb=nb, lq=lq, lk=lq)
    # TODO(synk): reference declares selfattention.fc_out but never applies it.
    query = _layer_norm(attn_scr[...] + x, g0_ref[...], b0_ref[...])

    # ---- cross-attention (k/v from encoder output), fused bf16 KV projection ----
    enc = enc_ref[...]                                              # (nb*lk, E)
    qc = jnp.dot(query.astype(jnp.bfloat16), w_qc_ref[...],
                 preferred_element_type=jnp.float32)
    kvc = jnp.dot(enc.astype(jnp.bfloat16), w_kvc_ref[...],
                  preferred_element_type=jnp.float32)               # (nb*lk, 2E)
    kc, vc = kvc[:, :E], kvc[:, E:]
    _mha_into(attn_scr, qc, kc, vc, src_m_ref, heads=heads, nb=nb, lq=lq, lk=lk)
    h1 = _layer_norm(attn_scr[...] + query, g1_ref[...], b1_ref[...])

    # ---- feed-forward (+ReLU) + residual + LN, intermediates stay in VMEM ----
    hid = jnp.dot(h1.astype(jnp.bfloat16), ff_w1_ref[...],
                  preferred_element_type=jnp.float32) + ff_b1_ref[...]
    hid = jnp.maximum(hid, 0.0)
    ff = jnp.dot(hid.astype(jnp.bfloat16), ff_w2_ref[...],
                 preferred_element_type=jnp.float32) + ff_b2_ref[...]
    o_ref[...] = _layer_norm(ff + h1, g2_ref[...], b2_ref[...])


def _proj_kernel(x_ref, w_ref, b_ref, o_ref):
    o_ref[...] = (jnp.dot(x_ref[...].astype(jnp.bfloat16), w_ref[...],
                          preferred_element_type=jnp.float32) + b_ref[...])


# ------------------------------- wrappers -----------------------------------

def _pick_batch_block(n, lq, lk):
    """Batch items per grid step: fill the MXU M dim (~128-256 rows) while
    keeping >=2 grid steps for v7x megacore when the batch allows it."""
    if lq % 8 or lk % 8:
        return n                   # flattened block must stay the full extent
    divs = [d for d in range(1, n + 1) if n % d == 0]
    nb = max((d for d in divs if d * lq <= 256), default=1)
    if n // nb < 2:
        alt = max((d for d in divs if d < nb and d * lq >= 128), default=None)
        if alt is not None:
            nb = alt
    return nb


def decoder_block(x2d, enc2d, src_m, trg_m, p, *, heads, n, lq, lk):
    """One fused pallas_call per decoder layer; grid over batch blocks."""
    rows, E = x2d.shape
    hid = p["ff_w1"].shape[1]
    nb = _pick_batch_block(n, lq, lk)
    steps = n // nb

    def rep(shape):   # replicated (grid-invariant) operand, whole array in VMEM
        nd = len(shape)
        return pl.BlockSpec(shape, lambda g: (0,) * nd)

    rows_q, rows_k = n * lq, n * lk
    flops = (2 * rows_q * E * (3 * E)            # fused QKV
             + 2 * rows_q * E * E                # cross Q
             + 2 * rows_k * E * (2 * E)          # cross KV
             + 4 * n * lq * (lq + lk) * E        # attention scores + PV
             + 4 * rows_q * E * hid)             # FFN
    transc = n * heads * lq * (lq + lk)
    bytes_acc = (2 * (3 * E * E + E * E + 2 * E * E + 2 * E * hid)      # bf16 weights
                 + 4 * (2 * rows_q * E + rows_k * E + n * lq * (lq + lk))
                 + 4 * (6 * E + hid + E))
    cost = pl.CostEstimate(flops=int(flops), transcendentals=int(transc),
                           bytes_accessed=int(bytes_acc))

    return pl.pallas_call(
        functools.partial(_decoder_block_kernel,
                          heads=heads, nb=nb, lq=lq, lk=lk),
        out_shape=jax.ShapeDtypeStruct((rows, E), jnp.float32),
        grid=(steps,),
        in_specs=[
            pl.BlockSpec((nb * lq, E), lambda g: (g, 0)),        # x (flattened)
            pl.BlockSpec((nb * lk, E), lambda g: (g, 0)),        # enc (flattened)
            pl.BlockSpec((nb, lq, lq), lambda g: (g, 0, 0)),     # trg_mask
            pl.BlockSpec((nb, lq, lk), lambda g: (g, 0, 0)),     # src_mask
            rep((E, 3 * E)),                                     # w_qkv_self (bf16)
            rep((E, E)),                                         # w_q_cross  (bf16)
            rep((E, 2 * E)),                                     # w_kv_cross (bf16)
            rep((1, E)), rep((1, E)),                            # norm_g/b
            rep((1, E)), rep((1, E)),                            # norm1_g/b
            rep((1, E)), rep((1, E)),                            # norm2_g/b
            rep((E, hid)), rep((1, hid)),                        # ff_w1 (bf16) / b1
            rep((hid, E)), rep((1, E)),                          # ff_w2 (bf16) / b2
        ],
        out_specs=pl.BlockSpec((nb * lq, E), lambda g: (g, 0)),
        scratch_shapes=[pltpu.VMEM((nb * lq, E), jnp.float32)],  # per-head attn out
        compiler_params=pltpu.CompilerParams(
            dimension_semantics=("parallel",),
            vmem_limit_bytes=_VMEM_LIMIT),
        cost_estimate=cost,
    )(x2d, enc2d, trg_m, src_m,
      p["w_qkv_self"], p["w_q_cross"], p["w_kv_cross"],
      p["norm_g"], p["norm_b"],
      p["norm1_g"], p["norm1_b"], p["norm2_g"], p["norm2_b"],
      p["ff_w1"], p["ff_b1"], p["ff_w2"], p["ff_b2"])


def output_projection(x2d, w_p, b_p):
    """Final vocab projection, tiled over (rows, vocab); weights pre-padded
    to a lane-dense multiple of 128 at init time."""
    M, E = x2d.shape
    Vp = w_p.shape[1]
    tn = next(t for t in (512, 256, 128) if Vp % t == 0)
    tm = next((t for t in (512, 256, 128, 64, 32, 16, 8) if M % t == 0), M)
    cost = pl.CostEstimate(flops=2 * M * E * Vp, transcendentals=0,
                           bytes_accessed=4 * M * E + 2 * E * Vp + 4 * Vp + 4 * M * Vp)
    return pl.pallas_call(
        _proj_kernel,
        out_shape=jax.ShapeDtypeStruct((M, Vp), jnp.float32),
        grid=(M // tm, Vp // tn),
        in_specs=[pl.BlockSpec((tm, E), lambda i, j: (i, 0)),
                  pl.BlockSpec((E, tn), lambda i, j: (0, j)),
                  pl.BlockSpec((1, tn), lambda i, j: (0, j))],
        out_specs=pl.BlockSpec((tm, tn), lambda i, j: (i, j)),
        compiler_params=pltpu.CompilerParams(
            dimension_semantics=("parallel", "parallel"),
            vmem_limit_bytes=_VMEM_LIMIT),
        cost_estimate=cost,
    )(x2d, w_p, b_p)


def decoder_forward(params, tokens, enc_out, src_mask, trg_mask, *, heads, vocab):
    N, L = tokens.shape
    Lk = enc_out.shape[1]
    E = params["word_emb"].shape[1]
    # embedding lookup is glue (gather) in plain JAX
    word = jnp.take(params["word_emb"], tokens, axis=0)            # (N, L, E)
    pos = params["pos_emb"][:L][None, :, :]                        # (1, L, E)
    x = (word + pos).reshape(N * L, E)                             # dropout = id
    enc2d = enc_out.astype(jnp.float32).reshape(N * Lk, E)
    trg_m = trg_mask.astype(jnp.float32).reshape(N, L, L)
    src_m = src_mask.astype(jnp.float32).reshape(N, L, Lk)
    for lp in params["layers"]:
        x = decoder_block(x, enc2d, src_m, trg_m, lp,
                          heads=heads, n=N, lq=L, lk=Lk)
    logits = output_projection(x, params["fc_w"], params["fc_b"])[:, :vocab]
    return logits.reshape(N, L, vocab)


# ----------------------------- parameter init ------------------------------

def init_decoder_params(key, vocab, E, num_layers, fe, max_len):
    s = 0.02
    keys = jax.random.split(key, 3 + num_layers)
    vp = ((vocab + 127) // 128) * 128          # lane-dense padded vocab
    fc_w = jax.random.normal(keys[2], (E, vocab), jnp.float32) * s
    params = {
        "word_emb": jax.random.normal(keys[0], (vocab, E), jnp.float32) * s,
        "pos_emb": jax.random.normal(keys[1], (max_len, E), jnp.float32) * s,
        "fc_w": jnp.pad(fc_w, ((0, 0), (0, vp - vocab))).astype(jnp.bfloat16),
        "fc_b": jnp.zeros((1, vp), jnp.float32),
        "layers": [],
    }
    for i in range(num_layers):
        lk = jax.random.split(keys[3 + i], 8)
        layer = {
            # self-attention: fused (Wq | Wk | Wv), bf16 for the MXU
            "w_qkv_self": jnp.concatenate(
                [jax.random.normal(lk[j], (E, E), jnp.float32) * s
                 for j in range(3)], axis=1).astype(jnp.bfloat16),
            # cross-attention: Wq on the decoder query, fused (Wk | Wv) on enc
            "w_q_cross": (jax.random.normal(lk[3], (E, E), jnp.float32) * s
                          ).astype(jnp.bfloat16),
            "w_kv_cross": jnp.concatenate(
                [jax.random.normal(lk[4 + j], (E, E), jnp.float32) * s
                 for j in range(2)], axis=1).astype(jnp.bfloat16),
            "norm_g": jnp.ones((1, E), jnp.float32),
            "norm_b": jnp.zeros((1, E), jnp.float32),
            "norm1_g": jnp.ones((1, E), jnp.float32),
            "norm1_b": jnp.zeros((1, E), jnp.float32),
            "norm2_g": jnp.ones((1, E), jnp.float32),
            "norm2_b": jnp.zeros((1, E), jnp.float32),
            "ff_w1": (jax.random.normal(lk[6], (E, fe * E), jnp.float32) * s
                      ).astype(jnp.bfloat16),
            "ff_b1": jnp.zeros((1, fe * E), jnp.float32),
            "ff_w2": (jax.random.normal(lk[7], (fe * E, E), jnp.float32) * s
                      ).astype(jnp.bfloat16),
            "ff_b2": jnp.zeros((1, E), jnp.float32),
        }
        params["layers"].append(layer)
    return params


# ----------------------------------- main ------------------------------------

if __name__ == "__main__":
    VOCAB = 50
    EMBED = 32
    HEADS = 4
    NUM_LAYERS = 2
    FWD_EXP = 4
    MAX_LEN = 16
    N = 2
    TRG_LEN = 8
    SRC_LEN = 8

    root = jax.random.PRNGKey(0)
    k_par, k_tok, k_enc = jax.random.split(root, 3)

    params = init_decoder_params(k_par, VOCAB, EMBED, NUM_LAYERS, FWD_EXP, MAX_LEN)

    tokens = jax.random.randint(k_tok, (N, TRG_LEN), 0, VOCAB, dtype=jnp.int32)
    enc_out = jax.random.normal(k_enc, (N, SRC_LEN, EMBED), jnp.float32)

    # causal target mask, all-ones source mask (broadcast over heads)
    trg_mask = jnp.tril(jnp.ones((TRG_LEN, TRG_LEN), jnp.float32))
    trg_mask = jnp.broadcast_to(trg_mask, (N, 1, TRG_LEN, TRG_LEN))
    src_mask = jnp.ones((N, 1, TRG_LEN, SRC_LEN), jnp.float32)

    fwd = jax.jit(functools.partial(decoder_forward, heads=HEADS, vocab=VOCAB))
    out = fwd(params, tokens, enc_out, src_mask, trg_mask)
    jax.block_until_ready(out)

    assert out.shape == (N, TRG_LEN, VOCAB), out.shape
    assert bool(jnp.all(jnp.isfinite(out)))
    print("KERNEL_OK")
</pallas_src>

<mosaic_0001>
module attributes {stable_mosaic.version = 11 : i64} {
  func.func @_proj_kernel(%arg0: i32, %arg1: i32, %arg2: memref<16x32xf32, #tpu.memory_space<vmem>>, %arg3: memref<32x128xbf16, #tpu.memory_space<vmem>>, %arg4: memref<1x128xf32, #tpu.memory_space<vmem>>, %arg5: memref<16x128xf32, #tpu.memory_space<vmem>>) attributes {dimension_semantics = [#tpu.dimension_semantics<parallel>, #tpu.dimension_semantics<parallel>], iteration_bounds = array<i64: 1, 1>, scalar_prefetch = 0 : i64, scratch_operands = 0 : i64, tpu.core_type = #tpu.core_type<tc>, window_params = [{transform_indices = @transform_0, window_bounds = array<i64: 16, 32>}, {transform_indices = @transform_1, window_bounds = array<i64: 32, 128>}, {transform_indices = @transform_2, window_bounds = array<i64: 1, 128>}, {transform_indices = @transform_3, window_bounds = array<i64: 16, 128>}]} {
    %c0 = arith.constant 0 : index
    %c0_0 = arith.constant 0 : index
    %0 = vector.load %arg2[%c0, %c0_0] : memref<16x32xf32, #tpu.memory_space<vmem>>, vector<16x32xf32>
    %1 = arith.truncf %0 : vector<16x32xf32> to vector<16x32xbf16>
    %c0_1 = arith.constant 0 : index
    %c0_2 = arith.constant 0 : index
    %2 = vector.load %arg3[%c0_1, %c0_2] : memref<32x128xbf16, #tpu.memory_space<vmem>>, vector<32x128xbf16>
    %cst = arith.constant dense<0.000000e+00> : vector<16x128xf32>
    %3 = tpu.matmul %1, %2, %cst {dimension_numbers = #tpu.dot_dimension_numbers<[1], [0], [0], [1], [0, 0, 1, 1], [], []>} : vector<16x32xbf16>, vector<32x128xbf16>, vector<16x128xf32> -> vector<16x128xf32>
    %c0_3 = arith.constant 0 : index
    %c0_4 = arith.constant 0 : index
    %4 = vector.load %arg4[%c0_3, %c0_4] : memref<1x128xf32, #tpu.memory_space<vmem>>, vector<1x128xf32>
    %5 = vector.broadcast %4 : vector<1x128xf32> to vector<16x128xf32>
    %6 = arith.addf %3, %5 : vector<16x128xf32>
    %c0_5 = arith.constant 0 : index
    %c0_6 = arith.constant 0 : index
    %7 = vector.load %arg5[%c0_5, %c0_6] : memref<16x128xf32, #tpu.memory_space<vmem>>, vector<16x128xf32>
    tpu.vector_store %arg5[%c0_5, %c0_6], %6 {strides = array<i32>} : memref<16x128xf32, #tpu.memory_space<vmem>>, vector<16x128xf32>,
    return
  }
  func.func @transform_0(%arg0: i32, %arg1: i32) -> (i32, i32) {
    %c0_i32 = arith.constant 0 : i32
    %c0_i32_0 = arith.constant 0 : i32
    return %arg0, %c0_i32 : i32, i32
  }
  func.func @transform_1(%arg0: i32, %arg1: i32) -> (i32, i32) {
    %c0_i32 = arith.constant 0 : i32
    %c0_i32_0 = arith.constant 0 : i32
    return %c0_i32, %arg1 : i32, i32
  }
  func.func @transform_2(%arg0: i32, %arg1: i32) -> (i32, i32) {
    %c0_i32 = arith.constant 0 : i32
    %c0_i32_0 = arith.constant 0 : i32
    return %c0_i32, %arg1 : i32, i32
  }
  func.func @transform_3(%arg0: i32, %arg1: i32) -> (i32, i32) {
    %c0_i32 = arith.constant 0 : i32
    return %arg0, %arg1 : i32, i32
  }
}

module attributes {stable_mosaic.version = 11 : i64} {
  func.func @_decoder_block_kernel(%arg0: i32, %arg1: memref<16x32xf32, #tpu.memory_space<vmem>>, %arg2: memref<16x32xf32, #tpu.memory_space<vmem>>, %arg3: memref<2x8x8xf32, #tpu.memory_space<vmem>>, %arg4: memref<2x8x8xf32, #tpu.memory_space<vmem>>, %arg5: memref<32x96xbf16, #tpu.memory_space<vmem>>, %arg6: memref<32x32xbf16, #tpu.memory_space<vmem>>, %arg7: memref<32x64xbf16, #tpu.memory_space<vmem>>, %arg8: memref<1x32xf32, #tpu.memory_space<vmem>>, %arg9: memref<1x32xf32, #tpu.memory_space<vmem>>, %arg10: memref<1x32xf32, #tpu.memory_space<vmem>>, %arg11: memref<1x32xf32, #tpu.memory_space<vmem>>, %arg12: memref<1x32xf32, #tpu.memory_space<vmem>>, %arg13: memref<1x32xf32, #tpu.memory_space<vmem>>, %arg14: memref<32x128xbf16, #tpu.memory_space<vmem>>, %arg15: memref<1x128xf32, #tpu.memory_space<vmem>>, %arg16: memref<128x32xbf16, #tpu.memory_space<vmem>>, %arg17: memref<1x32xf32, #tpu.memory_space<vmem>>, %arg18: memref<16x32xf32, #tpu.memory_space<vmem>>, %arg19: memref<16x32xf32, #tpu.memory_space<vmem>>) attributes {dimension_semantics = [#tpu.dimension_semantics<parallel>], iteration_bounds = array<i64: 1>, scalar_prefetch = 0 : i64, scratch_operands = 1 : i64, tpu.core_type = #tpu.core_type<tc>, window_params = [{transform_indices = @transform_0, window_bounds = array<i64: 16, 32>}, {transform_indices = @transform_1, window_bounds = array<i64: 16, 32>}, {transform_indices = @transform_2, window_bounds = array<i64: 2, 8, 8>}, {transform_indices = @transform_3, window_bounds = array<i64: 2, 8, 8>}, {pipeline_mode = #tpu.pipeline_mode<synchronous>, transform_indices = @transform_4, window_bounds = array<i64: 32, 96>}, {pipeline_mode = #tpu.pipeline_mode<synchronous>, transform_indices = @transform_5, window_bounds = array<i64: 32, 32>}, {pipeline_mode = #tpu.pipeline_mode<synchronous>, transform_indices = @transform_6, window_bounds = array<i64: 32, 64>}, {pipeline_mode = #tpu.pipeline_mode<synchronous>, transform_indices = @transform_7, window_bounds = array<i64: 1, 32>}, {pipeline_mode = #tpu.pipeline_mode<synchronous>, transform_indices = @transform_8, window_bounds = array<i64: 1, 32>}, {pipeline_mode = #tpu.pipeline_mode<synchronous>, transform_indices = @transform_9, window_bounds = array<i64: 1, 32>}, {pipeline_mode = #tpu.pipeline_mode<synchronous>, transform_indices = @transform_10, window_bounds = array<i64: 1, 32>}, {pipeline_mode = #tpu.pipeline_mode<synchronous>, transform_indices = @transform_11, window_bounds = array<i64: 1, 32>}, {pipeline_mode = #tpu.pipeline_mode<synchronous>, transform_indices = @transform_12, window_bounds = array<i64: 1, 32>}, {pipeline_mode = #tpu.pipeline_mode<synchronous>, transform_indices = @transform_13, window_bounds = array<i64: 32, 128>}, {pipeline_mode = #tpu.pipeline_mode<synchronous>, transform_indices = @transform_14, window_bounds = array<i64: 1, 128>}, {pipeline_mode = #tpu.pipeline_mode<synchronous>, transform_indices = @transform_15, window_bounds = array<i64: 128, 32>}, {pipeline_mode = #tpu.pipeline_mode<synchronous>, transform_indices = @transform_16, window_bounds = array<i64: 1, 32>}, {transform_indices = @transform_17, window_bounds = array<i64: 16, 32>}]} {
    %c0 = arith.constant 0 : index
    %c0_0 = arith.constant 0 : index
    %0 = vector.load %arg1[%c0, %c0_0] : memref<16x32xf32, #tpu.memory_space<vmem>>, vector<16x32xf32>
    %1 = arith.truncf %0 : vector<16x32xf32> to vector<16x32xbf16>
    %c0_1 = arith.constant 0 : index
    %c0_2 = arith.constant 0 : index
    %2 = vector.load %arg5[%c0_1, %c0_2] : memref<32x96xbf16, #tpu.memory_space<vmem>>, vector<32x96xbf16>
    %cst = arith.constant dense<0.000000e+00> : vector<16x96xf32>
    %3 = tpu.matmul %1, %2, %cst {dimension_numbers = #tpu.dot_dimension_numbers<[1], [0], [0], [1], [0, 0, 1, 1], [], []>} : vector<16x32xbf16>, vector<32x96xbf16>, vector<16x96xf32> -> vector<16x96xf32>
    %4 = vector.extract_strided_slice %3 {offsets = [0, 0], sizes = [16, 32], strides = [1, 1]} : vector<16x96xf32> to vector<16x32xf32>
    %5 = vector.extract_strided_slice %3 {offsets = [0, 32], sizes = [16, 32], strides = [1, 1]} : vector<16x96xf32> to vector<16x32xf32>
    %6 = vector.extract_strided_slice %3 {offsets = [0, 64], sizes = [16, 32], strides = [1, 1]} : vector<16x96xf32> to vector<16x32xf32>
    %c0_3 = arith.constant 0 : index
    %c0_4 = arith.constant 0 : index
    %c0_5 = arith.constant 0 : index
    %7 = vector.load %arg3[%c0_3, %c0_4, %c0_5] : memref<2x8x8xf32, #tpu.memory_space<vmem>>, vector<1x8x8xf32>
    %8 = vector.shape_cast %7 : vector<1x8x8xf32> to vector<8x8xf32>
    %9 = vector.extract_strided_slice %4 {offsets = [0, 0], sizes = [8, 8], strides = [1, 1]} : vector<16x32xf32> to vector<8x8xf32>
    %cst_6 = arith.constant 0.353553385 : f32
    %10 = vector.broadcast %cst_6 : f32 to vector<8x8xf32>
    %11 = arith.mulf %9, %10 : vector<8x8xf32>
    %12 = vector.extract_strided_slice %5 {offsets = [0, 0], sizes = [8, 8], strides = [1, 1]} : vector<16x32xf32> to vector<8x8xf32>
    %13 = vector.extract_strided_slice %6 {offsets = [0, 0], sizes = [8, 8], strides = [1, 1]} : vector<16x32xf32> to vector<8x8xf32>
    %14 = tpu.transpose %12, [1, 0] : vector<8x8xf32> -> vector<8x8xf32>
    %cst_7 = arith.constant dense<0.000000e+00> : vector<8x8xf32>
    %15 = tpu.matmul %11, %14, %cst_7 {dimension_numbers = #tpu.dot_dimension_numbers<[1], [0], [0], [1], [0, 0, 1, 1], [], []>} : vector<8x8xf32>, vector<8x8xf32>, vector<8x8xf32> -> vector<8x8xf32>
    %cst_8 = arith.constant 0.000000e+00 : f32
    %16 = vector.broadcast %cst_8 : f32 to vector<8x8xf32>
    %17 = arith.cmpf oeq, %8, %16 : vector<8x8xf32>
    %cst_9 = arith.constant -1.000000e+20 : f32
    %18 = vector.broadcast %cst_9 : f32 to vector<8x8xf32>
    %19 = arith.select %17, %18, %15 : vector<8x8xi1>, vector<8x8xf32>
    %cst_10 = arith.constant dense<0xFF800000> : vector<8xf32>
    %20 = vector.multi_reduction <maximumf>, %19, %cst_10 [1] : vector<8x8xf32> to vector<8xf32>
    %21 = vector.shape_cast %20 : vector<8xf32> to vector<8x1xf32>
    %22 = vector.broadcast %21 : vector<8x1xf32> to vector<8x8xf32>
    %23 = arith.subf %19, %22 : vector<8x8xf32>
    %24 = math.exp %23 : vector<8x8xf32>
    %cst_11 = arith.constant dense<0.000000e+00> : vector<8xf32>
    %25 = vector.multi_reduction <add>, %24, %cst_11 [1] : vector<8x8xf32> to vector<8xf32>
    %26 = vector.shape_cast %25 : vector<8xf32> to vector<8x1xf32>
    %cst_12 = arith.constant dense<0.000000e+00> : vector<8x8xf32>
    %27 = tpu.matmul %24, %13, %cst_12 {dimension_numbers = #tpu.dot_dimension_numbers<[1], [0], [0], [1], [0, 0, 1, 1], [], []>} : vector<8x8xf32>, vector<8x8xf32>, vector<8x8xf32> -> vector<8x8xf32>
    %28 = tpu.reciprocal %26 {approx = true} : vector<8x1xf32> -> vector<8x1xf32>
    %29 = vector.broadcast %28 : vector<8x1xf32> to vector<8x8xf32>
    %30 = arith.mulf %27, %29 : vector<8x8xf32>
    %c0_13 = arith.constant 0 : index
    %c0_14 = arith.constant 0 : index
    %31 = vector.load %arg19[%c0_13, %c0_14] : memref<16x32xf32, #tpu.memory_space<vmem>>, vector<8x8xf32>
    tpu.vector_store %arg19[%c0_13, %c0_14], %30 {strides = array<i32>} : memref<16x32xf32, #tpu.memory_space<vmem>>, vector<8x8xf32>,
    %32 = vector.extract_strided_slice %4 {offsets = [0, 8], sizes = [8, 8], strides = [1, 1]} : vector<16x32xf32> to vector<8x8xf32>
    %cst_15 = arith.constant 0.353553385 : f32
    %33 = vector.broadcast %cst_15 : f32 to vector<8x8xf32>
    %34 = arith.mulf %32, %33 : vector<8x8xf32>
    %35 = vector.extract_strided_slice %5 {offsets = [0, 8], sizes = [8, 8], strides = [1, 1]} : vector<16x32xf32> to vector<8x8xf32>
    %36 = vector.extract_strided_slice %6 {offsets = [0, 8], sizes = [8, 8], strides = [1, 1]} : vector<16x32xf32> to vector<8x8xf32>
    %37 = tpu.transpose %35, [1, 0] : vector<8x8xf32> -> vector<8x8xf32>
    %cst_16 = arith.constant dense<0.000000e+00> : vector<8x8xf32>
    %38 = tpu.matmul %34, %37, %cst_16 {dimension_numbers = #tpu.dot_dimension_numbers<[1], [0], [0], [1], [0, 0, 1, 1], [], []>} : vector<8x8xf32>, vector<8x8xf32>, vector<8x8xf32> -> vector<8x8xf32>
    %cst_17 = arith.constant 0.000000e+00 : f32
    %39 = vector.broadcast %cst_17 : f32 to vector<8x8xf32>
    %40 = arith.cmpf oeq, %8, %39 : vector<8x8xf32>
    %cst_18 = arith.constant -1.000000e+20 : f32
    %41 = vector.broadcast %cst_18 : f32 to vector<8x8xf32>
    %42 = arith.select %40, %41, %38 : vector<8x8xi1>, vector<8x8xf32>
    %cst_19 = arith.constant dense<0xFF800000> : vector<8xf32>
    %43 = vector.multi_reduction <maximumf>, %42, %cst_19 [1] : vector<8x8xf32> to vector<8xf32>
    %44 = vector.shape_cast %43 : vector<8xf32> to vector<8x1xf32>
    %45 = vector.broadcast %44 : vector<8x1xf32> to vector<8x8xf32>
    %46 = arith.subf %42, %45 : vector<8x8xf32>
    %47 = math.exp %46 : vector<8x8xf32>
    %cst_20 = arith.constant dense<0.000000e+00> : vector<8xf32>
    %48 = vector.multi_reduction <add>, %47, %cst_20 [1] : vector<8x8xf32> to vector<8xf32>
    %49 = vector.shape_cast %48 : vector<8xf32> to vector<8x1xf32>
    %cst_21 = arith.constant dense<0.000000e+00> : vector<8x8xf32>
    %50 = tpu.matmul %47, %36, %cst_21 {dimension_numbers = #tpu.dot_dimension_numbers<[1], [0], [0], [1], [0, 0, 1, 1], [], []>} : vector<8x8xf32>, vector<8x8xf32>, vector<8x8xf32> -> vector<8x8xf32>
    %51 = tpu.reciprocal %49 {approx = true} : vector<8x1xf32> -> vector<8x1xf32>
    %52 = vector.broadcast %51 : vector<8x1xf32> to vector<8x8xf32>
    %53 = arith.mulf %50, %52 : vector<8x8xf32>
    %c0_22 = arith.constant 0 : index
    %c8 = arith.constant 8 : index
    %54 = vector.load %arg19[%c0_22, %c8] : memref<16x32xf32, #tpu.memory_space<vmem>>, vector<8x8xf32>
    tpu.vector_store %arg19[%c0_22, %c8], %53 {strides = array<i32>} : memref<16x32xf32, #tpu.memory_space<vmem>>, vector<8x8xf32>,
    %55 = vector.extract_strided_slice %4 {offsets = [0, 16], sizes = [8, 8], strides = [1, 1]} : vector<16x32xf32> to vector<8x8xf32>
    %cst_23 = arith.constant 0.353553385 : f32
    %56 = vector.broadcast %cst_23 : f32 to vector<8x8xf32>
    %57 = arith.mulf %55, %56 : vector<8x8xf32>
    %58 = vector.extract_strided_slice %5 {offsets = [0, 16], sizes = [8, 8], strides = [1, 1]} : vector<16x32xf32> to vector<8x8xf32>
    %59 = vector.extract_strided_slice %6 {offsets = [0, 16], sizes = [8, 8], strides = [1, 1]} : vector<16x32xf32> to vector<8x8xf32>
    %60 = tpu.transpose %58, [1, 0] : vector<8x8xf32> -> vector<8x8xf32>
    %cst_24 = arith.constant dense<0.000000e+00> : vector<8x8xf32>
    %61 = tpu.matmul %57, %60, %cst_24 {dimension_numbers = #tpu.dot_dimension_numbers<[1], [0], [0], [1], [0, 0, 1, 1], [], []>} : vector<8x8xf32>, vector<8x8xf32>, vector<8x8xf32> -> vector<8x8xf32>
    %cst_25 = arith.constant 0.000000e+00 : f32
    %62 = vector.broadcast %cst_25 : f32 to vector<8x8xf32>
    %63 = arith.cmpf oeq, %8, %62 : vector<8x8xf32>
    %cst_26 = arith.constant -1.000000e+20 : f32
    %64 = vector.broadcast %cst_26 : f32 to vector<8x8xf32>
    %65 = arith.select %63, %64, %61 : vector<8x8xi1>, vector<8x8xf32>
    %cst_27 = arith.constant dense<0xFF800000> : vector<8xf32>
    %66 = vector.multi_reduction <maximumf>, %65, %cst_27 [1] : vector<8x8xf32> to vector<8xf32>
    %67 = vector.shape_cast %66 : vector<8xf32> to vector<8x1xf32>
    %68 = vector.broadcast %67 : vector<8x1xf32> to vector<8x8xf32>
    %69 = arith.subf %65, %68 : vector<8x8xf32>
    %70 = math.exp %69 : vector<8x8xf32>
    %cst_28 = arith.constant dense<0.000000e+00> : vector<8xf32>
    %71 = vector.multi_reduction <add>, %70, %cst_28 [1] : vector<8x8xf32> to vector<8xf32>
    %72 = vector.shape_cast %71 : vector<8xf32> to vector<8x1xf32>
    %cst_29 = arith.constant dense<0.000000e+00> : vector<8x8xf32>
    %73 = tpu.matmul %70, %59, %cst_29 {dimension_numbers = #tpu.dot_dimension_numbers<[1], [0], [0], [1], [0, 0, 1, 1], [], []>} : vector<8x8xf32>, vector<8x8xf32>, vector<8x8xf32> -> vector<8x8xf32>
    %74 = tpu.reciprocal %72 {approx = true} : vector<8x1xf32> -> vector<8x1xf32>
    %75 = vector.broadcast %74 : vector<8x1xf32> to vector<8x8xf32>
    %76 = arith.mulf %73, %75 : vector<8x8xf32>
    %c0_30 = arith.constant 0 : index
    %c16 = arith.constant 16 : index
    %77 = vector.load %arg19[%c0_30, %c16] : memref<16x32xf32, #tpu.memory_space<vmem>>, vector<8x8xf32>
    tpu.vector_store %arg19[%c0_30, %c16], %76 {strides = array<i32>} : memref<16x32xf32, #tpu.memory_space<vmem>>, vector<8x8xf32>,
    %78 = vector.extract_strided_slice %4 {offsets = [0, 24], sizes = [8, 8], strides = [1, 1]} : vector<16x32xf32> to vector<8x8xf32>
    %cst_31 = arith.constant 0.353553385 : f32
    %79 = vector.broadcast %cst_31 : f32 to vector<8x8xf32>
    %80 = arith.mulf %78, %79 : vector<8x8xf32>
    %81 = vector.extract_strided_slice %5 {offsets = [0, 24], sizes = [8, 8], strides = [1, 1]} : vector<16x32xf32> to vector<8x8xf32>
    %82 = vector.extract_strided_slice %6 {offsets = [0, 24], sizes = [8, 8], strides = [1, 1]} : vector<16x32xf32> to vector<8x8xf32>
    %83 = tpu.transpose %81, [1, 0] : vector<8x8xf32> -> vector<8x8xf32>
    %cst_32 = arith.constant dense<0.000000e+00> : vector<8x8xf32>
    %84 = tpu.matmul %80, %83, %cst_32 {dimension_numbers = #tpu.dot_dimension_numbers<[1], [0], [0], [1], [0, 0, 1, 1], [], []>} : vector<8x8xf32>, vector<8x8xf32>, vector<8x8xf32> -> vector<8x8xf32>
    %cst_33 = arith.constant 0.000000e+00 : f32
    %85 = vector.broadcast %cst_33 : f32 to vector<8x8xf32>
    %86 = arith.cmpf oeq, %8, %85 : vector<8x8xf32>
    %cst_34 = arith.constant -1.000000e+20 : f32
    %87 = vector.broadcast %cst_34 : f32 to vector<8x8xf32>
    %88 = arith.select %86, %87, %84 : vector<8x8xi1>, vector<8x8xf32>
    %cst_35 = arith.constant dense<0xFF800000> : vector<8xf32>
    %89 = vector.multi_reduction <maximumf>, %88, %cst_35 [1] : vector<8x8xf32> to vector<8xf32>
    %90 = vector.shape_cast %89 : vector<8xf32> to vector<8x1xf32>
    %91 = vector.broadcast %90 : vector<8x1xf32> to vector<8x8xf32>
    %92 = arith.subf %88, %91 : vector<8x8xf32>
    %93 = math.exp %92 : vector<8x8xf32>
    %cst_36 = arith.constant dense<0.000000e+00> : vector<8xf32>
    %94 = vector.multi_reduction <add>, %93, %cst_36 [1] : vector<8x8xf32> to vector<8xf32>
    %95 = vector.shape_cast %94 : vector<8xf32> to vector<8x1xf32>
    %cst_37 = arith.constant dense<0.000000e+00> : vector<8x8xf32>
    %96 = tpu.matmul %93, %82, %cst_37 {dimension_numbers = #tpu.dot_dimension_numbers<[1], [0], [0], [1], [0, 0, 1, 1], [], []>} : vector<8x8xf32>, vector<8x8xf32>, vector<8x8xf32> -> vector<8x8xf32>
    %97 = tpu.reciprocal %95 {approx = true} : vector<8x1xf32> -> vector<8x1xf32>
    %98 = vector.broadcast %97 : vector<8x1xf32> to vector<8x8xf32>
    %99 = arith.mulf %96, %98 : vector<8x8xf32>
    %c0_38 = arith.constant 0 : index
    %c24 = arith.constant 24 : index
    %100 = vector.load %arg19[%c0_38, %c24] : memref<16x32xf32, #tpu.memory_space<vmem>>, vector<8x8xf32>
    tpu.vector_store %arg19[%c0_38, %c24], %99 {strides = array<i32>} : memref<16x32xf32, #tpu.memory_space<vmem>>, vector<8x8xf32>,
    %c1 = arith.constant 1 : index
    %c0_39 = arith.constant 0 : index
    %c0_40 = arith.constant 0 : index
    %101 = vector.load %arg3[%c1, %c0_39, %c0_40] : memref<2x8x8xf32, #tpu.memory_space<vmem>>, vector<1x8x8xf32>
    %102 = vector.shape_cast %101 : vector<1x8x8xf32> to vector<8x8xf32>
    %103 = vector.extract_strided_slice %4 {offsets = [8, 0], sizes = [8, 8], strides = [1, 1]} : vector<16x32xf32> to vector<8x8xf32>
    %cst_41 = arith.constant 0.353553385 : f32
    %104 = vector.broadcast %cst_41 : f32 to vector<8x8xf32>
    %105 = arith.mulf %103, %104 : vector<8x8xf32>
    %106 = vector.extract_strided_slice %5 {offsets = [8, 0], sizes = [8, 8], strides = [1, 1]} : vector<16x32xf32> to vector<8x8xf32>
    %107 = vector.extract_strided_slice %6 {offsets = [8, 0], sizes = [8, 8], strides = [1, 1]} : vector<16x32xf32> to vector<8x8xf32>
    %108 = tpu.transpose %106, [1, 0] : vector<8x8xf32> -> vector<8x8xf32>
    %cst_42 = arith.constant dense<0.000000e+00> : vector<8x8xf32>
    %109 = tpu.matmul %105, %108, %cst_42 {dimension_numbers = #tpu.dot_dimension_numbers<[1], [0], [0], [1], [0, 0, 1, 1], [], []>} : vector<8x8xf32>, vector<8x8xf32>, vector<8x8xf32> -> vector<8x8xf32>
    %cst_43 = arith.constant 0.000000e+00 : f32
    %110 = vector.broadcast %cst_43 : f32 to vector<8x8xf32>
    %111 = arith.cmpf oeq, %102, %110 : vector<8x8xf32>
    %cst_44 = arith.constant -1.000000e+20 : f32
    %112 = vector.broadcast %cst_44 : f32 to vector<8x8xf32>
    %113 = arith.select %111, %112, %109 : vector<8x8xi1>, vector<8x8xf32>
    %cst_45 = arith.constant dense<0xFF800000> : vector<8xf32>
    %114 = vector.multi_reduction <maximumf>, %113, %cst_45 [1] : vector<8x8xf32> to vector<8xf32>
    %115 = vector.shape_cast %114 : vector<8xf32> to vector<8x1xf32>
    %116 = vector.broadcast %115 : vector<8x1xf32> to vector<8x8xf32>
    %117 = arith.subf %113, %116 : vector<8x8xf32>
    %118 = math.exp %117 : vector<8x8xf32>
    %cst_46 = arith.constant dense<0.000000e+00> : vector<8xf32>
    %119 = vector.multi_reduction <add>, %118, %cst_46 [1] : vector<8x8xf32> to vector<8xf32>
    %120 = vector.shape_cast %119 : vector<8xf32> to vector<8x1xf32>
    %cst_47 = arith.constant dense<0.000000e+00> : vector<8x8xf32>
    %121 = tpu.matmul %118, %107, %cst_47 {dimension_numbers = #tpu.dot_dimension_numbers<[1], [0], [0], [1], [0, 0, 1, 1], [], []>} : vector<8x8xf32>, vector<8x8xf32>, vector<8x8xf32> -> vector<8x8xf32>
    %122 = tpu.reciprocal %120 {approx = true} : vector<8x1xf32> -> vector<8x1xf32>
    %123 = vector.broadcast %122 : vector<8x1xf32> to vector<8x8xf32>
    %124 = arith.mulf %121, %123 : vector<8x8xf32>
    %c8_48 = arith.constant 8 : index
    %c0_49 = arith.constant 0 : index
    %125 = vector.load %arg19[%c8_48, %c0_49] : memref<16x32xf32, #tpu.memory_space<vmem>>, vector<8x8xf32>
    tpu.vector_store %arg19[%c8_48, %c0_49], %124 {strides = array<i32>} : memref<16x32xf32, #tpu.memory_space<vmem>>, vector<8x8xf32>,
    %126 = vector.extract_strided_slice %4 {offsets = [8, 8], sizes = [8, 8], strides = [1, 1]} : vector<16x32xf32> to vector<8x8xf32>
    %cst_50 = arith.constant 0.353553385 : f32
    %127 = vector.broadcast %cst_50 : f32 to vector<8x8xf32>
    %128 = arith.mulf %126, %127 : vector<8x8xf32>
    %129 = vector.extract_strided_slice %5 {offsets = [8, 8], sizes = [8, 8], strides = [1, 1]} : vector<16x32xf32> to vector<8x8xf32>
    %130 = vector.extract_strided_slice %6 {offsets = [8, 8], sizes = [8, 8], strides = [1, 1]} : vector<16x32xf32> to vector<8x8xf32>
    %131 = tpu.transpose %129, [1, 0] : vector<8x8xf32> -> vector<8x8xf32>
    %cst_51 = arith.constant dense<0.000000e+00> : vector<8x8xf32>
    %132 = tpu.matmul %128, %131, %cst_51 {dimension_numbers = #tpu.dot_dimension_numbers<[1], [0], [0], [1], [0, 0, 1, 1], [], []>} : vector<8x8xf32>, vector<8x8xf32>, vector<8x8xf32> -> vector<8x8xf32>
    %cst_52 = arith.constant 0.000000e+00 : f32
    %133 = vector.broadcast %cst_52 : f32 to vector<8x8xf32>
    %134 = arith.cmpf oeq, %102, %133 : vector<8x8xf32>
    %cst_53 = arith.constant -1.000000e+20 : f32
    %135 = vector.broadcast %cst_53 : f32 to vector<8x8xf32>
    %136 = arith.select %134, %135, %132 : vector<8x8xi1>, vector<8x8xf32>
    %cst_54 = arith.constant dense<0xFF800000> : vector<8xf32>
    %137 = vector.multi_reduction <maximumf>, %136, %cst_54 [1] : vector<8x8xf32> to vector<8xf32>
    %138 = vector.shape_cast %137 : vector<8xf32> to vector<8x1xf32>
    %139 = vector.broadcast %138 : vector<8x1xf32> to vector<8x8xf32>
    %140 = arith.subf %136, %139 : vector<8x8xf32>
    %141 = math.exp %140 : vector<8x8xf32>
    %cst_55 = arith.constant dense<0.000000e+00> : vector<8xf32>
    %142 = vector.multi_reduction <add>, %141, %cst_55 [1] : vector<8x8xf32> to vector<8xf32>
    %143 = vector.shape_cast %142 : vector<8xf32> to vector<8x1xf32>
    %cst_56 = arith.constant dense<0.000000e+00> : vector<8x8xf32>
    %144 = tpu.matmul %141, %130, %cst_56 {dimension_numbers = #tpu.dot_dimension_numbers<[1], [0], [0], [1], [0, 0, 1, 1], [], []>} : vector<8x8xf32>, vector<8x8xf32>, vector<8x8xf32> -> vector<8x8xf32>
    %145 = tpu.reciprocal %143 {approx = true} : vector<8x1xf32> -> vector<8x1xf32>
    %146 = vector.broadcast %145 : vector<8x1xf32> to vector<8x8xf32>
    %147 = arith.mulf %144, %146 : vector<8x8xf32>
    %c8_57 = arith.constant 8 : index
    %c8_58 = arith.constant 8 : index
    %148 = vector.load %arg19[%c8_57, %c8_58] : memref<16x32xf32, #tpu.memory_space<vmem>>, vector<8x8xf32>
    tpu.vector_store %arg19[%c8_57, %c8_58], %147 {strides = array<i32>} : memref<16x32xf32, #tpu.memory_space<vmem>>, vector<8x8xf32>,
    %149 = vector.extract_strided_slice %4 {offsets = [8, 16], sizes = [8, 8], strides = [1, 1]} : vector<16x32xf32> to vector<8x8xf32>
    %cst_59 = arith.constant 0.353553385 : f32
    %150 = vector.broadcast %cst_59 : f32 to vector<8x8xf32>
    %151 = arith.mulf %149, %150 : vector<8x8xf32>
    %152 = vector.extract_strided_slice %5 {offsets = [8, 16], sizes = [8, 8], strides = [1, 1]} : vector<16x32xf32> to vector<8x8xf32>
    %153 = vector.extract_strided_slice %6 {offsets = [8, 16], sizes = [8, 8], strides = [1, 1]} : vector<16x32xf32> to vector<8x8xf32>
    %154 = tpu.transpose %152, [1, 0] : vector<8x8xf32> -> vector<8x8xf32>
    %cst_60 = arith.constant dense<0.000000e+00> : vector<8x8xf32>
    %155 = tpu.matmul %151, %154, %cst_60 {dimension_numbers = #tpu.dot_dimension_numbers<[1], [0], [0], [1], [0, 0, 1, 1], [], []>} : vector<8x8xf32>, vector<8x8xf32>, vector<8x8xf32> -> vector<8x8xf32>
    %cst_61 = arith.constant 0.000000e+00 : f32
    %156 = vector.broadcast %cst_61 : f32 to vector<8x8xf32>
    %157 = arith.cmpf oeq, %102, %156 : vector<8x8xf32>
    %cst_62 = arith.constant -1.000000e+20 : f32
    %158 = vector.broadcast %cst_62 : f32 to vector<8x8xf32>
    %159 = arith.select %157, %158, %155 : vector<8x8xi1>, vector<8x8xf32>
    %cst_63 = arith.constant dense<0xFF800000> : vector<8xf32>
    %160 = vector.multi_reduction <maximumf>, %159, %cst_63 [1] : vector<8x8xf32> to vector<8xf32>
    %161 = vector.shape_cast %160 : vector<8xf32> to vector<8x1xf32>
    %162 = vector.broadcast %161 : vector<8x1xf32> to vector<8x8xf32>
    %163 = arith.subf %159, %162 : vector<8x8xf32>
    %164 = math.exp %163 : vector<8x8xf32>
    %cst_64 = arith.constant dense<0.000000e+00> : vector<8xf32>
    %165 = vector.multi_reduction <add>, %164, %cst_64 [1] : vector<8x8xf32> to vector<8xf32>
    %166 = vector.shape_cast %165 : vector<8xf32> to vector<8x1xf32>
    %cst_65 = arith.constant dense<0.000000e+00> : vector<8x8xf32>
    %167 = tpu.matmul %164, %153, %cst_65 {dimension_numbers = #tpu.dot_dimension_numbers<[1], [0], [0], [1], [0, 0, 1, 1], [], []>} : vector<8x8xf32>, vector<8x8xf32>, vector<8x8xf32> -> vector<8x8xf32>
    %168 = tpu.reciprocal %166 {approx = true} : vector<8x1xf32> -> vector<8x1xf32>
    %169 = vector.broadcast %168 : vector<8x1xf32> to vector<8x8xf32>
    %170 = arith.mulf %167, %169 : vector<8x8xf32>
    %c8_66 = arith.constant 8 : index
    %c16_67 = arith.constant 16 : index
    %171 = vector.load %arg19[%c8_66, %c16_67] : memref<16x32xf32, #tpu.memory_space<vmem>>, vector<8x8xf32>
    tpu.vector_store %arg19[%c8_66, %c16_67], %170 {strides = array<i32>} : memref<16x32xf32, #tpu.memory_space<vmem>>, vector<8x8xf32>,
    %172 = vector.extract_strided_slice %4 {offsets = [8, 24], sizes = [8, 8], strides = [1, 1]} : vector<16x32xf32> to vector<8x8xf32>
    %cst_68 = arith.constant 0.353553385 : f32
    %173 = vector.broadcast %cst_68 : f32 to vector<8x8xf32>
    %174 = arith.mulf %172, %173 : vector<8x8xf32>
    %175 = vector.extract_strided_slice %5 {offsets = [8, 24], sizes = [8, 8], strides = [1, 1]} : vector<16x32xf32> to vector<8x8xf32>
    %176 = vector.extract_strided_slice %6 {offsets = [8, 24], sizes = [8, 8], strides = [1, 1]} : vector<16x32xf32> to vector<8x8xf32>
    %177 = tpu.transpose %175, [1, 0] : vector<8x8xf32> -> vector<8x8xf32>
    %cst_69 = arith.constant dense<0.000000e+00> : vector<8x8xf32>
    %178 = tpu.matmul %174, %177, %cst_69 {dimension_numbers = #tpu.dot_dimension_numbers<[1], [0], [0], [1], [0, 0, 1, 1], [], []>} : vector<8x8xf32>, vector<8x8xf32>, vector<8x8xf32> -> vector<8x8xf32>
    %cst_70 = arith.constant 0.000000e+00 : f32
    %179 = vector.broadcast %cst_70 : f32 to vector<8x8xf32>
    %180 = arith.cmpf oeq, %102, %179 : vector<8x8xf32>
    %cst_71 = arith.constant -1.000000e+20 : f32
    %181 = vector.broadcast %cst_71 : f32 to vector<8x8xf32>
    %182 = arith.select %180, %181, %178 : vector<8x8xi1>, vector<8x8xf32>
    %cst_72 = arith.constant dense<0xFF800000> : vector<8xf32>
    %183 = vector.multi_reduction <maximumf>, %182, %cst_72 [1] : vector<8x8xf32> to vector<8xf32>
    %184 = vector.shape_cast %183 : vector<8xf32> to vector<8x1xf32>
    %185 = vector.broadcast %184 : vector<8x1xf32> to vector<8x8xf32>
    %186 = arith.subf %182, %185 : vector<8x8xf32>
    %187 = math.exp %186 : vector<8x8xf32>
    %cst_73 = arith.constant dense<0.000000e+00> : vector<8xf32>
    %188 = vector.multi_reduction <add>, %187, %cst_73 [1] : vector<8x8xf32> to vector<8xf32>
    %189 = vector.shape_cast %188 : vector<8xf32> to vector<8x1xf32>
    %cst_74 = arith.constant dense<0.000000e+00> : vector<8x8xf32>
    %190 = tpu.matmul %187, %176, %cst_74 {dimension_numbers = #tpu.dot_dimension_numbers<[1], [0], [0], [1], [0, 0, 1, 1], [], []>} : vector<8x8xf32>, vector<8x8xf32>, vector<8x8xf32> -> vector<8x8xf32>
    %191 = tpu.reciprocal %189 {approx = true} : vector<8x1xf32> -> vector<8x1xf32>
    %192 = vector.broadcast %191 : vector<8x1xf32> to vector<8x8xf32>
    %193 = arith.mulf %190, %192 : vector<8x8xf32>
    %c8_75 = arith.constant 8 : index
    %c24_76 = arith.constant 24 : index
    %194 = vector.load %arg19[%c8_75, %c24_76] : memref<16x32xf32, #tpu.memory_space<vmem>>, vector<8x8xf32>
    tpu.vector_store %arg19[%c8_75, %c24_76], %193 {strides = array<i32>} : memref<16x32xf32, #tpu.memory_space<vmem>>, vector<8x8xf32>,
    %c0_77 = arith.constant 0 : index
    %c0_78 = arith.constant 0 : index
    %195 = vector.load %arg19[%c0_77, %c0_78] : memref<16x32xf32, #tpu.memory_space<vmem>>, vector<16x32xf32>
    %196 = arith.addf %195, %0 : vector<16x32xf32>
    %c0_79 = arith.constant 0 : index
    %c0_80 = arith.constant 0 : index
    %197 = vector.load %arg8[%c0_79, %c0_80] : memref<1x32xf32, #tpu.memory_space<vmem>>, vector<1x32xf32>
    %c0_81 = arith.constant 0 : index
    %c0_82 = arith.constant 0 : index
    %198 = vector.load %arg9[%c0_81, %c0_82] : memref<1x32xf32, #tpu.memory_space<vmem>>, vector<1x32xf32>
    %cst_83 = arith.constant dense<0.000000e+00> : vector<16xf32>
    %199 = vector.multi_reduction <add>, %196, %cst_83 [1] : vector<16x32xf32> to vector<16xf32>
    %200 = vector.shape_cast %199 : vector<16xf32> to vector<16x1xf32>
    %cst_84 = arith.constant 3.200000e+01 : f32
    %201 = vector.broadcast %cst_84 : f32 to vector<16x1xf32>
    %202 = arith.divf %200, %201 : vector<16x1xf32>
    %203 = vector.broadcast %202 : vector<16x1xf32> to vector<16x32xf32>
    %204 = arith.subf %196, %203 : vector<16x32xf32>
    %205 = arith.mulf %204, %204 : vector<16x32xf32>
    %cst_85 = arith.constant dense<0.000000e+00> : vector<16xf32>
    %206 = vector.multi_reduction <add>, %205, %cst_85 [1] : vector<16x32xf32> to vector<16xf32>
    %207 = vector.shape_cast %206 : vector<16xf32> to vector<16x1xf32>
    %cst_86 = arith.constant 3.200000e+01 : f32
    %208 = vector.broadcast %cst_86 : f32 to vector<16x1xf32>
    %209 = arith.divf %207, %208 : vector<16x1xf32>
    %210 = vector.broadcast %202 : vector<16x1xf32> to vector<16x32xf32>
    %211 = arith.subf %196, %210 : vector<16x32xf32>
    %cst_87 = arith.constant 9.99999974E-6 : f32
    %212 = vector.broadcast %cst_87 : f32 to vector<16x1xf32>
    %213 = arith.addf %209, %212 : vector<16x1xf32>
    %214 = math.rsqrt %213 : vector<16x1xf32>
    %215 = vector.broadcast %214 : vector<16x1xf32> to vector<16x32xf32>
    %216 = arith.mulf %211, %215 : vector<16x32xf32>
    %217 = vector.broadcast %197 : vector<1x32xf32> to vector<16x32xf32>
    %218 = arith.mulf %216, %217 : vector<16x32xf32>
    %219 = vector.broadcast %198 : vector<1x32xf32> to vector<16x32xf32>
    %220 = arith.addf %218, %219 : vector<16x32xf32>
    %c0_88 = arith.constant 0 : index
    %c0_89 = arith.constant 0 : index
    %221 = vector.load %arg2[%c0_88, %c0_89] : memref<16x32xf32, #tpu.memory_space<vmem>>, vector<16x32xf32>
    %222 = arith.truncf %220 : vector<16x32xf32> to vector<16x32xbf16>
    %c0_90 = arith.constant 0 : index
    %c0_91 = arith.constant 0 : index
    %223 = vector.load %arg6[%c0_90, %c0_91] : memref<32x32xbf16, #tpu.memory_space<vmem>>, vector<32x32xbf16>
    %cst_92 = arith.constant dense<0.000000e+00> : vector<16x32xf32>
    %224 = tpu.matmul %222, %223, %cst_92 {dimension_numbers = #tpu.dot_dimension_numbers<[1], [0], [0], [1], [0, 0, 1, 1], [], []>} : vector<16x32xbf16>, vector<32x32xbf16>, vector<16x32xf32> -> vector<16x32xf32>
    %225 = arith.truncf %221 : vector<16x32xf32> to vector<16x32xbf16>
    %c0_93 = arith.constant 0 : index
    %c0_94 = arith.constant 0 : index
    %226 = vector.load %arg7[%c0_93, %c0_94] : memref<32x64xbf16, #tpu.memory_space<vmem>>, vector<32x64xbf16>
    %cst_95 = arith.constant dense<0.000000e+00> : vector<16x64xf32>
    %227 = tpu.matmul %225, %226, %cst_95 {dimension_numbers = #tpu.dot_dimension_numbers<[1], [0], [0], [1], [0, 0, 1, 1], [], []>} : vector<16x32xbf16>, vector<32x64xbf16>, vector<16x64xf32> -> vector<16x64xf32>
    %228 = vector.extract_strided_slice %227 {offsets = [0, 0], sizes = [16, 32], strides = [1, 1]} : vector<16x64xf32> to vector<16x32xf32>
    %229 = vector.extract_strided_slice %227 {offsets = [0, 32], sizes = [16, 32], strides = [1, 1]} : vector<16x64xf32> to vector<16x32xf32>
    %c0_96 = arith.constant 0 : index
    %c0_97 = arith.constant 0 : index
    %c0_98 = arith.constant 0 : index
    %230 = vector.load %arg4[%c0_96, %c0_97, %c0_98] : memref<2x8x8xf32, #tpu.memory_space<vmem>>, vector<1x8x8xf32>
    %231 = vector.shape_cast %230 : vector<1x8x8xf32> to vector<8x8xf32>
    %232 = vector.extract_strided_slice %224 {offsets = [0, 0], sizes = [8, 8], strides = [1, 1]} : vector<16x32xf32> to vector<8x8xf32>
    %cst_99 = arith.constant 0.353553385 : f32
    %233 = vector.broadcast %cst_99 : f32 to vector<8x8xf32>
    %234 = arith.mulf %232, %233 : vector<8x8xf32>
    %235 = vector.extract_strided_slice %228 {offsets = [0, 0], sizes = [8, 8], strides = [1, 1]} : vector<16x32xf32> to vector<8x8xf32>
    %236 = vector.extract_strided_slice %229 {offsets = [0, 0], sizes = [8, 8], strides = [1, 1]} : vector<16x32xf32> to vector<8x8xf32>
    %237 = tpu.transpose %235, [1, 0] : vector<8x8xf32> -> vector<8x8xf32>
    %cst_100 = arith.constant dense<0.000000e+00> : vector<8x8xf32>
    %238 = tpu.matmul %234, %237, %cst_100 {dimension_numbers = #tpu.dot_dimension_numbers<[1], [0], [0], [1], [0, 0, 1, 1], [], []>} : vector<8x8xf32>, vector<8x8xf32>, vector<8x8xf32> -> vector<8x8xf32>
    %cst_101 = arith.constant 0.000000e+00 : f32
    %239 = vector.broadcast %cst_101 : f32 to vector<8x8xf32>
    %240 = arith.cmpf oeq, %231, %239 : vector<8x8xf32>
    %cst_102 = arith.constant -1.000000e+20 : f32
    %241 = vector.broadcast %cst_102 : f32 to vector<8x8xf32>
    %242 = arith.select %240, %241, %238 : vector<8x8xi1>, vector<8x8xf32>
    %cst_103 = arith.constant dense<0xFF800000> : vector<8xf32>
    %243 = vector.multi_reduction <maximumf>, %242, %cst_103 [1] : vector<8x8xf32> to vector<8xf32>
    %244 = vector.shape_cast %243 : vector<8xf32> to vector<8x1xf32>
    %245 = vector.broadcast %244 : vector<8x1xf32> to vector<8x8xf32>
    %246 = arith.subf %242, %245 : vector<8x8xf32>
    %247 = math.exp %246 : vector<8x8xf32>
    %cst_104 = arith.constant dense<0.000000e+00> : vector<8xf32>
    %248 = vector.multi_reduction <add>, %247, %cst_104 [1] : vector<8x8xf32> to vector<8xf32>
    %249 = vector.shape_cast %248 : vector<8xf32> to vector<8x1xf32>
    %cst_105 = arith.constant dense<0.000000e+00> : vector<8x8xf32>
    %250 = tpu.matmul %247, %236, %cst_105 {dimension_numbers = #tpu.dot_dimension_numbers<[1], [0], [0], [1], [0, 0, 1, 1], [], []>} : vector<8x8xf32>, vector<8x8xf32>, vector<8x8xf32> -> vector<8x8xf32>
    %251 = tpu.reciprocal %249 {approx = true} : vector<8x1xf32> -> vector<8x1xf32>
    %252 = vector.broadcast %251 : vector<8x1xf32> to vector<8x8xf32>
    %253 = arith.mulf %250, %252 : vector<8x8xf32>
    %c0_106 = arith.constant 0 : index
    %c0_107 = arith.constant 0 : index
    %254 = vector.load %arg19[%c0_106, %c0_107] : memref<16x32xf32, #tpu.memory_space<vmem>>, vector<8x8xf32>
    tpu.vector_store %arg19[%c0_106, %c0_107], %253 {strides = array<i32>} : memref<16x32xf32, #tpu.memory_space<vmem>>, vector<8x8xf32>,
    %255 = vector.extract_strided_slice %224 {offsets = [0, 8], sizes = [8, 8], strides = [1, 1]} : vector<16x32xf32> to vector<8x8xf32>
    %cst_108 = arith.constant 0.353553385 : f32
    %256 = vector.broadcast %cst_108 : f32 to vector<8x8xf32>
    %257 = arith.mulf %255, %256 : vector<8x8xf32>
    %258 = vector.extract_strided_slice %228 {offsets = [0, 8], sizes = [8, 8], strides = [1, 1]} : vector<16x32xf32> to vector<8x8xf32>
    %259 = vector.extract_strided_slice %229 {offsets = [0, 8], sizes = [8, 8], strides = [1, 1]} : vector<16x32xf32> to vector<8x8xf32>
    %260 = tpu.transpose %258, [1, 0] : vector<8x8xf32> -> vector<8x8xf32>
    %cst_109 = arith.constant dense<0.000000e+00> : vector<8x8xf32>
    %261 = tpu.matmul %257, %260, %cst_109 {dimension_numbers = #tpu.dot_dimension_numbers<[1], [0], [0], [1], [0, 0, 1, 1], [], []>} : vector<8x8xf32>, vector<8x8xf32>, vector<8x8xf32> -> vector<8x8xf32>
    %cst_110 = arith.constant 0.000000e+00 : f32
    %262 = vector.broadcast %cst_110 : f32 to vector<8x8xf32>
    %263 = arith.cmpf oeq, %231, %262 : vector<8x8xf32>
    %cst_111 = arith.constant -1.000000e+20 : f32
    %264 = vector.broadcast %cst_111 : f32 to vector<8x8xf32>
    %265 = arith.select %263, %264, %261 : vector<8x8xi1>, vector<8x8xf32>
    %cst_112 = arith.constant dense<0xFF800000> : vector<8xf32>
    %266 = vector.multi_reduction <maximumf>, %265, %cst_112 [1] : vector<8x8xf32> to vector<8xf32>
    %267 = vector.shape_cast %266 : vector<8xf32> to vector<8x1xf32>
    %268 = vector.broadcast %267 : vector<8x1xf32> to vector<8x8xf32>
    %269 = arith.subf %265, %268 : vector<8x8xf32>
    %270 = math.exp %269 : vector<8x8xf32>
    %cst_113 = arith.constant dense<0.000000e+00> : vector<8xf32>
    %271 = vector.multi_reduction <add>, %270, %cst_113 [1] : vector<8x8xf32> to vector<8xf32>
    %272 = vector.shape_cast %271 : vector<8xf32> to vector<8x1xf32>
    %cst_114 = arith.constant dense<0.000000e+00> : vector<8x8xf32>
    %273 = tpu.matmul %270, %259, %cst_114 {dimension_numbers = #tpu.dot_dimension_numbers<[1], [0], [0], [1], [0, 0, 1, 1], [], []>} : vector<8x8xf32>, vector<8x8xf32>, vector<8x8xf32> -> vector<8x8xf32>
    %274 = tpu.reciprocal %272 {approx = true} : vector<8x1xf32> -> vector<8x1xf32>
    %275 = vector.broadcast %274 : vector<8x1xf32> to vector<8x8xf32>
    %276 = arith.mulf %273, %275 : vector<8x8xf32>
    %c0_115 = arith.constant 0 : index
    %c8_116 = arith.constant 8 : index
    %277 = vector.load %arg19[%c0_115, %c8_116] : memref<16x32xf32, #tpu.memory_space<vmem>>, vector<8x8xf32>
    tpu.vector_store %arg19[%c0_115, %c8_116], %276 {strides = array<i32>} : memref<16x32xf32, #tpu.memory_space<vmem>>, vector<8x8xf32>,
    %278 = vector.extract_strided_slice %224 {offsets = [0, 16], sizes = [8, 8], strides = [1, 1]} : vector<16x32xf32> to vector<8x8xf32>
    %cst_117 = arith.constant 0.353553385 : f32
    %279 = vector.broadcast %cst_117 : f32 to vector<8x8xf32>
    %280 = arith.mulf %278, %279 : vector<8x8xf32>
    %281 = vector.extract_strided_slice %228 {offsets = [0, 16], sizes = [8, 8], strides = [1, 1]} : vector<16x32xf32> to vector<8x8xf32>
    %282 = vector.extract_strided_slice %229 {offsets = [0, 16], sizes = [8, 8], strides = [1, 1]} : vector<16x32xf32> to vector<8x8xf32>
    %283 = tpu.transpose %281, [1, 0] : vector<8x8xf32> -> vector<8x8xf32>
    %cst_118 = arith.constant dense<0.000000e+00> : vector<8x8xf32>
    %284 = tpu.matmul %280, %283, %cst_118 {dimension_numbers = #tpu.dot_dimension_numbers<[1], [0], [0], [1], [0, 0, 1, 1], [], []>} : vector<8x8xf32>, vector<8x8xf32>, vector<8x8xf32> -> vector<8x8xf32>
    %cst_119 = arith.constant 0.000000e+00 : f32
    %285 = vector.broadcast %cst_119 : f32 to vector<8x8xf32>
    %286 = arith.cmpf oeq, %231, %285 : vector<8x8xf32>
    %cst_120 = arith.constant -1.000000e+20 : f32
    %287 = vector.broadcast %cst_120 : f32 to vector<8x8xf32>
    %288 = arith.select %286, %287, %284 : vector<8x8xi1>, vector<8x8xf32>
    %cst_121 = arith.constant dense<0xFF800000> : vector<8xf32>
    %289 = vector.multi_reduction <maximumf>, %288, %cst_121 [1] : vector<8x8xf32> to vector<8xf32>
    %290 = vector.shape_cast %289 : vector<8xf32> to vector<8x1xf32>
    %291 = vector.broadcast %290 : vector<8x1xf32> to vector<8x8xf32>
    %292 = arith.subf %288, %291 : vector<8x8xf32>
    %293 = math.exp %292 : vector<8x8xf32>
    %cst_122 = arith.constant dense<0.000000e+00> : vector<8xf32>
    %294 = vector.multi_reduction <add>, %293, %cst_122 [1] : vector<8x8xf32> to vector<8xf32>
    %295 = vector.shape_cast %294 : vector<8xf32> to vector<8x1xf32>
    %cst_123 = arith.constant dense<0.000000e+00> : vector<8x8xf32>
    %296 = tpu.matmul %293, %282, %cst_123 {dimension_numbers = #tpu.dot_dimension_numbers<[1], [0], [0], [1], [0, 0, 1, 1], [], []>} : vector<8x8xf32>, vector<8x8xf32>, vector<8x8xf32> -> vector<8x8xf32>
    %297 = tpu.reciprocal %295 {approx = true} : vector<8x1xf32> -> vector<8x1xf32>
    %298 = vector.broadcast %297 : vector<8x1xf32> to vector<8x8xf32>
    %299 = arith.mulf %296, %298 : vector<8x8xf32>
    %c0_124 = arith.constant 0 : index
    %c16_125 = arith.constant 16 : index
    %300 = vector.load %arg19[%c0_124, %c16_125] : memref<16x32xf32, #tpu.memory_space<vmem>>, vector<8x8xf32>
    tpu.vector_store %arg19[%c0_124, %c16_125], %299 {strides = array<i32>} : memref<16x32xf32, #tpu.memory_space<vmem>>, vector<8x8xf32>,
    %301 = vector.extract_strided_slice %224 {offsets = [0, 24], sizes = [8, 8], strides = [1, 1]} : vector<16x32xf32> to vector<8x8xf32>
    %cst_126 = arith.constant 0.353553385 : f32
    %302 = vector.broadcast %cst_126 : f32 to vector<8x8xf32>
    %303 = arith.mulf %301, %302 : vector<8x8xf32>
    %304 = vector.extract_strided_slice %228 {offsets = [0, 24], sizes = [8, 8], strides = [1, 1]} : vector<16x32xf32> to vector<8x8xf32>
    %305 = vector.extract_strided_slice %229 {offsets = [0, 24], sizes = [8, 8], strides = [1, 1]} : vector<16x32xf32> to vector<8x8xf32>
    %306 = tpu.transpose %304, [1, 0] : vector<8x8xf32> -> vector<8x8xf32>
    %cst_127 = arith.constant dense<0.000000e+00> : vector<8x8xf32>
    %307 = tpu.matmul %303, %306, %cst_127 {dimension_numbers = #tpu.dot_dimension_numbers<[1], [0], [0], [1], [0, 0, 1, 1], [], []>} : vector<8x8xf32>, vector<8x8xf32>, vector<8x8xf32> -> vector<8x8xf32>
    %cst_128 = arith.constant 0.000000e+00 : f32
    %308 = vector.broadcast %cst_128 : f32 to vector<8x8xf32>
    %309 = arith.cmpf oeq, %231, %308 : vector<8x8xf32>
    %cst_129 = arith.constant -1.000000e+20 : f32
    %310 = vector.broadcast %cst_129 : f32 to vector<8x8xf32>
    %311 = arith.select %309, %310, %307 : vector<8x8xi1>, vector<8x8xf32>
    %cst_130 = arith.constant dense<0xFF800000> : vector<8xf32>
    %312 = vector.multi_reduction <maximumf>, %311, %cst_130 [1] : vector<8x8xf32> to vector<8xf32>
    %313 = vector.shape_cast %312 : vector<8xf32> to vector<8x1xf32>
    %314 = vector.broadcast %313 : vector<8x1xf32> to vector<8x8xf32>
    %315 = arith.subf %311, %314 : vector<8x8xf32>
    %316 = math.exp %315 : vector<8x8xf32>
    %cst_131 = arith.constant dense<0.000000e+00> : vector<8xf32>
    %317 = vector.multi_reduction <add>, %316, %cst_131 [1] : vector<8x8xf32> to vector<8xf32>
    %318 = vector.shape_cast %317 : vector<8xf32> to vector<8x1xf32>
    %cst_132 = arith.constant dense<0.000000e+00> : vector<8x8xf32>
    %319 = tpu.matmul %316, %305, %cst_132 {dimension_numbers = #tpu.dot_dimension_numbers<[1], [0], [0], [1], [0, 0, 1, 1], [], []>} : vector<8x8xf32>, vector<8x8xf32>, vector<8x8xf32> -> vector<8x8xf32>
    %320 = tpu.reciprocal %318 {approx = true} : vector<8x1xf32> -> vector<8x1xf32>
    %321 = vector.broadcast %320 : vector<8x1xf32> to vector<8x8xf32>
    %322 = arith.mulf %319, %321 : vector<8x8xf32>
    %c0_133 = arith.constant 0 : index
    %c24_134 = arith.constant 24 : index
    %323 = vector.load %arg19[%c0_133, %c24_134] : memref<16x32xf32, #tpu.memory_space<vmem>>, vector<8x8xf32>
    tpu.vector_store %arg19[%c0_133, %c24_134], %322 {strides = array<i32>} : memref<16x32xf32, #tpu.memory_space<vmem>>, vector<8x8xf32>,
    %c1_135 = arith.constant 1 : index
    %c0_136 = arith.constant 0 : index
    %c0_137 = arith.constant 0 : index
    %324 = vector.load %arg4[%c1_135, %c0_136, %c0_137] : memref<2x8x8xf32, #tpu.memory_space<vmem>>, vector<1x8x8xf32>
    %325 = vector.shape_cast %324 : vector<1x8x8xf32> to vector<8x8xf32>
    %326 = vector.extract_strided_slice %224 {offsets = [8, 0], sizes = [8, 8], strides = [1, 1]} : vector<16x32xf32> to vector<8x8xf32>
    %cst_138 = arith.constant 0.353553385 : f32
    %327 = vector.broadcast %cst_138 : f32 to vector<8x8xf32>
    %328 = arith.mulf %326, %327 : vector<8x8xf32>
    %329 = vector.extract_strided_slice %228 {offsets = [8, 0], sizes = [8, 8], strides = [1, 1]} : vector<16x32xf32> to vector<8x8xf32>
    %330 = vector.extract_strided_slice %229 {offsets = [8, 0], sizes = [8, 8], strides = [1, 1]} : vector<16x32xf32> to vector<8x8xf32>
    %331 = tpu.transpose %329, [1, 0] : vector<8x8xf32> -> vector<8x8xf32>
    %cst_139 = arith.constant dense<0.000000e+00> : vector<8x8xf32>
    %332 = tpu.matmul %328, %331, %cst_139 {dimension_numbers = #tpu.dot_dimension_numbers<[1], [0], [0], [1], [0, 0, 1, 1], [], []>} : vector<8x8xf32>, vector<8x8xf32>, vector<8x8xf32> -> vector<8x8xf32>
    %cst_140 = arith.constant 0.000000e+00 : f32
    %333 = vector.broadcast %cst_140 : f32 to vector<8x8xf32>
    %334 = arith.cmpf oeq, %325, %333 : vector<8x8xf32>
    %cst_141 = arith.constant -1.000000e+20 : f32
    %335 = vector.broadcast %cst_141 : f32 to vector<8x8xf32>
    %336 = arith.select %334, %335, %332 : vector<8x8xi1>, vector<8x8xf32>
    %cst_142 = arith.constant dense<0xFF800000> : vector<8xf32>
    %337 = vector.multi_reduction <maximumf>, %336, %cst_142 [1] : vector<8x8xf32> to vector<8xf32>
    %338 = vector.shape_cast %337 : vector<8xf32> to vector<8x1xf32>
    %339 = vector.broadcast %338 : vector<8x1xf32> to vector<8x8xf32>
    %340 = arith.subf %336, %339 : vector<8x8xf32>
    %341 = math.exp %340 : vector<8x8xf32>
    %cst_143 = arith.constant dense<0.000000e+00> : vector<8xf32>
    %342 = vector.multi_reduction <add>, %341, %cst_143 [1] : vector<8x8xf32> to vector<8xf32>
    %343 = vector.shape_cast %342 : vector<8xf32> to vector<8x1xf32>
    %cst_144 = arith.constant dense<0.000000e+00> : vector<8x8xf32>
    %344 = tpu.matmul %341, %330, %cst_144 {dimension_numbers = #tpu.dot_dimension_numbers<[1], [0], [0], [1], [0, 0, 1, 1], [], []>} : vector<8x8xf32>, vector<8x8xf32>, vector<8x8xf32> -> vector<8x8xf32>
    %345 = tpu.reciprocal %343 {approx = true} : vector<8x1xf32> -> vector<8x1xf32>
    %346 = vector.broadcast %345 : vector<8x1xf32> to vector<8x8xf32>
    %347 = arith.mulf %344, %346 : vector<8x8xf32>
    %c8_145 = arith.constant 8 : index
    %c0_146 = arith.constant 0 : index
    %348 = vector.load %arg19[%c8_145, %c0_146] : memref<16x32xf32, #tpu.memory_space<vmem>>, vector<8x8xf32>
    tpu.vector_store %arg19[%c8_145, %c0_146], %347 {strides = array<i32>} : memref<16x32xf32, #tpu.memory_space<vmem>>, vector<8x8xf32>,
    %349 = vector.extract_strided_slice %224 {offsets = [8, 8], sizes = [8, 8], strides = [1, 1]} : vector<16x32xf32> to vector<8x8xf32>
    %cst_147 = arith.constant 0.353553385 : f32
    %350 = vector.broadcast %cst_147 : f32 to vector<8x8xf32>
    %351 = arith.mulf %349, %350 : vector<8x8xf32>
    %352 = vector.extract_strided_slice %228 {offsets = [8, 8], sizes = [8, 8], strides = [1, 1]} : vector<16x32xf32> to vector<8x8xf32>
    %353 = vector.extract_strided_slice %229 {offsets = [8, 8], sizes = [8, 8], strides = [1, 1]} : vector<16x32xf32> to vector<8x8xf32>
    %354 = tpu.transpose %352, [1, 0] : vector<8x8xf32> -> vector<8x8xf32>
    %cst_148 = arith.constant dense<0.000000e+00> : vector<8x8xf32>
    %355 = tpu.matmul %351, %354, %cst_148 {dimension_numbers = #tpu.dot_dimension_numbers<[1], [0], [0], [1], [0, 0, 1, 1], [], []>} : vector<8x8xf32>, vector<8x8xf32>, vector<8x8xf32> -> vector<8x8xf32>
    %cst_149 = arith.constant 0.000000e+00 : f32
    %356 = vector.broadcast %cst_149 : f32 to vector<8x8xf32>
    %357 = arith.cmpf oeq, %325, %356 : vector<8x8xf32>
    %cst_150 = arith.constant -1.000000e+20 : f32
    %358 = vector.broadcast %cst_150 : f32 to vector<8x8xf32>
    %359 = arith.select %357, %358, %355 : vector<8x8xi1>, vector<8x8xf32>
    %cst_151 = arith.constant dense<0xFF800000> : vector<8xf32>
    %360 = vector.multi_reduction <maximumf>, %359, %cst_151 [1] : vector<8x8xf32> to vector<8xf32>
    %361 = vector.shape_cast %360 : vector<8xf32> to vector<8x1xf32>
    %362 = vector.broadcast %361 : vector<8x1xf32> to vector<8x8xf32>
    %363 = arith.subf %359, %362 : vector<8x8xf32>
    %364 = math.exp %363 : vector<8x8xf32>
    %cst_152 = arith.constant dense<0.000000e+00> : vector<8xf32>
    %365 = vector.multi_reduction <add>, %364, %cst_152 [1] : vector<8x8xf32> to vector<8xf32>
    %366 = vector.shape_cast %365 : vector<8xf32> to vector<8x1xf32>
    %cst_153 = arith.constant dense<0.000000e+00> : vector<8x8xf32>
    %367 = tpu.matmul %364, %353, %cst_153 {dimension_numbers = #tpu.dot_dimension_numbers<[1], [0], [0], [1], [0, 0, 1, 1], [], []>} : vector<8x8xf32>, vector<8x8xf32>, vector<8x8xf32> -> vector<8x8xf32>
    %368 = tpu.reciprocal %366 {approx = true} : vector<8x1xf32> -> vector<8x1xf32>
    %369 = vector.broadcast %368 : vector<8x1xf32> to vector<8x8xf32>
    %370 = arith.mulf %367, %369 : vector<8x8xf32>
    %c8_154 = arith.constant 8 : index
    %c8_155 = arith.constant 8 : index
    %371 = vector.load %arg19[%c8_154, %c8_155] : memref<16x32xf32, #tpu.memory_space<vmem>>, vector<8x8xf32>
    tpu.vector_store %arg19[%c8_154, %c8_155], %370 {strides = array<i32>} : memref<16x32xf32, #tpu.memory_space<vmem>>, vector<8x8xf32>,
    %372 = vector.extract_strided_slice %224 {offsets = [8, 16], sizes = [8, 8], strides = [1, 1]} : vector<16x32xf32> to vector<8x8xf32>
    %cst_156 = arith.constant 0.353553385 : f32
    %373 = vector.broadcast %cst_156 : f32 to vector<8x8xf32>
    %374 = arith.mulf %372, %373 : vector<8x8xf32>
    %375 = vector.extract_strided_slice %228 {offsets = [8, 16], sizes = [8, 8], strides = [1, 1]} : vector<16x32xf32> to vector<8x8xf32>
    %376 = vector.extract_strided_slice %229 {offsets = [8, 16], sizes = [8, 8], strides = [1, 1]} : vector<16x32xf32> to vector<8x8xf32>
    %377 = tpu.transpose %375, [1, 0] : vector<8x8xf32> -> vector<8x8xf32>
    %cst_157 = arith.constant dense<0.000000e+00> : vector<8x8xf32>
    %378 = tpu.matmul %374, %377, %cst_157 {dimension_numbers = #tpu.dot_dimension_numbers<[1], [0], [0], [1], [0, 0, 1, 1], [], []>} : vector<8x8xf32>, vector<8x8xf32>, vector<8x8xf32> -> vector<8x8xf32>
    %cst_158 = arith.constant 0.000000e+00 : f32
    %379 = vector.broadcast %cst_158 : f32 to vector<8x8xf32>
    %380 = arith.cmpf oeq, %325, %379 : vector<8x8xf32>
    %cst_159 = arith.constant -1.000000e+20 : f32
    %381 = vector.broadcast %cst_159 : f32 to vector<8x8xf32>
    %382 = arith.select %380, %381, %378 : vector<8x8xi1>, vector<8x8xf32>
    %cst_160 = arith.constant dense<0xFF800000> : vector<8xf32>
    %383 = vector.multi_reduction <maximumf>, %382, %cst_160 [1] : vector<8x8xf32> to vector<8xf32>
    %384 = vector.shape_cast %383 : vector<8xf32> to vector<8x1xf32>
    %385 = vector.broadcast %384 : vector<8x1xf32> to vector<8x8xf32>
    %386 = arith.subf %382, %385 : vector<8x8xf32>
    %387 = math.exp %386 : vector<8x8xf32>
    %cst_161 = arith.constant dense<0.000000e+00> : vector<8xf32>
    %388 = vector.multi_reduction <add>, %387, %cst_161 [1] : vector<8x8xf32> to vector<8xf32>
    %389 = vector.shape_cast %388 : vector<8xf32> to vector<8x1xf32>
    %cst_162 = arith.constant dense<0.000000e+00> : vector<8x8xf32>
    %390 = tpu.matmul %387, %376, %cst_162 {dimension_numbers = #tpu.dot_dimension_numbers<[1], [0], [0], [1], [0, 0, 1, 1], [], []>} : vector<8x8xf32>, vector<8x8xf32>, vector<8x8xf32> -> vector<8x8xf32>
    %391 = tpu.reciprocal %389 {approx = true} : vector<8x1xf32> -> vector<8x1xf32>
    %392 = vector.broadcast %391 : vector<8x1xf32> to vector<8x8xf32>
    %393 = arith.mulf %390, %392 : vector<8x8xf32>
    %c8_163 = arith.constant 8 : index
    %c16_164 = arith.constant 16 : index
    %394 = vector.load %arg19[%c8_163, %c16_164] : memref<16x32xf32, #tpu.memory_space<vmem>>, vector<8x8xf32>
    tpu.vector_store %arg19[%c8_163, %c16_164], %393 {strides = array<i32>} : memref<16x32xf32, #tpu.memory_space<vmem>>, vector<8x8xf32>,
    %395 = vector.extract_strided_slice %224 {offsets = [8, 24], sizes = [8, 8], strides = [1, 1]} : vector<16x32xf32> to vector<8x8xf32>
    %cst_165 = arith.constant 0.353553385 : f32
    %396 = vector.broadcast %cst_165 : f32 to vector<8x8xf32>
    %397 = arith.mulf %395, %396 : vector<8x8xf32>
    %398 = vector.extract_strided_slice %228 {offsets = [8, 24], sizes = [8, 8], strides = [1, 1]} : vector<16x32xf32> to vector<8x8xf32>
    %399 = vector.extract_strided_slice %229 {offsets = [8, 24], sizes = [8, 8], strides = [1, 1]} : vector<16x32xf32> to vector<8x8xf32>
    %400 = tpu.transpose %398, [1, 0] : vector<8x8xf32> -> vector<8x8xf32>
    %cst_166 = arith.constant dense<0.000000e+00> : vector<8x8xf32>
    %401 = tpu.matmul %397, %400, %cst_166 {dimension_numbers = #tpu.dot_dimension_numbers<[1], [0], [0], [1], [0, 0, 1, 1], [], []>} : vector<8x8xf32>, vector<8x8xf32>, vector<8x8xf32> -> vector<8x8xf32>
    %cst_167 = arith.constant 0.000000e+00 : f32
    %402 = vector.broadcast %cst_167 : f32 to vector<8x8xf32>
    %403 = arith.cmpf oeq, %325, %402 : vector<8x8xf32>
    %cst_168 = arith.constant -1.000000e+20 : f32
    %404 = vector.broadcast %cst_168 : f32 to vector<8x8xf32>
    %405 = arith.select %403, %404, %401 : vector<8x8xi1>, vector<8x8xf32>
    %cst_169 = arith.constant dense<0xFF800000> : vector<8xf32>
    %406 = vector.multi_reduction <maximumf>, %405, %cst_169 [1] : vector<8x8xf32> to vector<8xf32>
    %407 = vector.shape_cast %406 : vector<8xf32> to vector<8x1xf32>
    %408 = vector.broadcast %407 : vector<8x1xf32> to vector<8x8xf32>
    %409 = arith.subf %405, %408 : vector<8x8xf32>
    %410 = math.exp %409 : vector<8x8xf32>
    %cst_170 = arith.constant dense<0.000000e+00> : vector<8xf32>
    %411 = vector.multi_reduction <add>, %410, %cst_170 [1] : vector<8x8xf32> to vector<8xf32>
    %412 = vector.shape_cast %411 : vector<8xf32> to vector<8x1xf32>
    %cst_171 = arith.constant dense<0.000000e+00> : vector<8x8xf32>
    %413 = tpu.matmul %410, %399, %cst_171 {dimension_numbers = #tpu.dot_dimension_numbers<[1], [0], [0], [1], [0, 0, 1, 1], [], []>} : vector<8x8xf32>, vector<8x8xf32>, vector<8x8xf32> -> vector<8x8xf32>
    %414 = tpu.reciprocal %412 {approx = true} : vector<8x1xf32> -> vector<8x1xf32>
    %415 = vector.broadcast %414 : vector<8x1xf32> to vector<8x8xf32>
    %416 = arith.mulf %413, %415 : vector<8x8xf32>
    %c8_172 = arith.constant 8 : index
    %c24_173 = arith.constant 24 : index
    %417 = vector.load %arg19[%c8_172, %c24_173] : memref<16x32xf32, #tpu.memory_space<vmem>>, vector<8x8xf32>
    tpu.vector_store %arg19[%c8_172, %c24_173], %416 {strides = array<i32>} : memref<16x32xf32, #tpu.memory_space<vmem>>, vector<8x8xf32>,
    %c0_174 = arith.constant 0 : index
    %c0_175 = arith.constant 0 : index
    %418 = vector.load %arg19[%c0_174, %c0_175] : memref<16x32xf32, #tpu.memory_space<vmem>>, vector<16x32xf32>
    %419 = arith.addf %418, %220 : vector<16x32xf32>
    %c0_176 = arith.constant 0 : index
    %c0_177 = arith.constant 0 : index
    %420 = vector.load %arg10[%c0_176, %c0_177] : memref<1x32xf32, #tpu.memory_space<vmem>>, vector<1x32xf32>
    %c0_178 = arith.constant 0 : index
    %c0_179 = arith.constant 0 : index
    %421 = vector.load %arg11[%c0_178, %c0_179] : memref<1x32xf32, #tpu.memory_space<vmem>>, vector<1x32xf32>
    %cst_180 = arith.constant dense<0.000000e+00> : vector<16xf32>
    %422 = vector.multi_reduction <add>, %419, %cst_180 [1] : vector<16x32xf32> to vector<16xf32>
    %423 = vector.shape_cast %422 : vector<16xf32> to vector<16x1xf32>
    %cst_181 = arith.constant 3.200000e+01 : f32
    %424 = vector.broadcast %cst_181 : f32 to vector<16x1xf32>
    %425 = arith.divf %423, %424 : vector<16x1xf32>
    %426 = vector.broadcast %425 : vector<16x1xf32> to vector<16x32xf32>
    %427 = arith.subf %419, %426 : vector<16x32xf32>
    %428 = arith.mulf %427, %427 : vector<16x32xf32>
    %cst_182 = arith.constant dense<0.000000e+00> : vector<16xf32>
    %429 = vector.multi_reduction <add>, %428, %cst_182 [1] : vector<16x32xf32> to vector<16xf32>
    %430 = vector.shape_cast %429 : vector<16xf32> to vector<16x1xf32>
    %cst_183 = arith.constant 3.200000e+01 : f32
    %431 = vector.broadcast %cst_183 : f32 to vector<16x1xf32>
    %432 = arith.divf %430, %431 : vector<16x1xf32>
    %433 = vector.broadcast %425 : vector<16x1xf32> to vector<16x32xf32>
    %434 = arith.subf %419, %433 : vector<16x32xf32>
    %cst_184 = arith.constant 9.99999974E-6 : f32
    %435 = vector.broadcast %cst_184 : f32 to vector<16x1xf32>
    %436 = arith.addf %432, %435 : vector<16x1xf32>
    %437 = math.rsqrt %436 : vector<16x1xf32>
    %438 = vector.broadcast %437 : vector<16x1xf32> to vector<16x32xf32>
    %439 = arith.mulf %434, %438 : vector<16x32xf32>
    %440 = vector.broadcast %420 : vector<1x32xf32> to vector<16x32xf32>
    %441 = arith.mulf %439, %440 : vector<16x32xf32>
    %442 = vector.broadcast %421 : vector<1x32xf32> to vector<16x32xf32>
    %443 = arith.addf %441, %442 : vector<16x32xf32>
    %444 = arith.truncf %443 : vector<16x32xf32> to vector<16x32xbf16>
    %c0_185 = arith.constant 0 : index
    %c0_186 = arith.constant 0 : index
    %445 = vector.load %arg14[%c0_185, %c0_186] : memref<32x128xbf16, #tpu.memory_space<vmem>>, vector<32x128xbf16>
    %cst_187 = arith.constant dense<0.000000e+00> : vector<16x128xf32>
    %446 = tpu.matmul %444, %445, %cst_187 {dimension_numbers = #tpu.dot_dimension_numbers<[1], [0], [0], [1], [0, 0, 1, 1], [], []>} : vector<16x32xbf16>, vector<32x128xbf16>, vector<16x128xf32> -> vector<16x128xf32>
    %c0_188 = arith.constant 0 : index
    %c0_189 = arith.constant 0 : index
    %447 = vector.load %arg15[%c0_188, %c0_189] : memref<1x128xf32, #tpu.memory_space<vmem>>, vector<1x128xf32>
    %448 = vector.broadcast %447 : vector<1x128xf32> to vector<16x128xf32>
    %449 = arith.addf %446, %448 : vector<16x128xf32>
    %cst_190 = arith.constant 0.000000e+00 : f32
    %450 = vector.broadcast %cst_190 : f32 to vector<16x128xf32>
    %451 = arith.maximumf %449, %450 : vector<16x128xf32>
    %452 = arith.truncf %451 : vector<16x128xf32> to vector<16x128xbf16>
    %c0_191 = arith.constant 0 : index
    %c0_192 = arith.constant 0 : index
    %453 = vector.load %arg16[%c0_191, %c0_192] : memref<128x32xbf16, #tpu.memory_space<vmem>>, vector<128x32xbf16>
    %cst_193 = arith.constant dense<0.000000e+00> : vector<16x32xf32>
    %454 = tpu.matmul %452, %453, %cst_193 {dimension_numbers = #tpu.dot_dimension_numbers<[1], [0], [0], [1], [0, 0, 1, 1], [], []>} : vector<16x128xbf16>, vector<128x32xbf16>, vector<16x32xf32> -> vector<16x32xf32>
    %c0_194 = arith.constant 0 : index
    %c0_195 = arith.constant 0 : index
    %455 = vector.load %arg17[%c0_194, %c0_195] : memref<1x32xf32, #tpu.memory_space<vmem>>, vector<1x32xf32>
    %456 = vector.broadcast %455 : vector<1x32xf32> to vector<16x32xf32>
    %457 = arith.addf %454, %456 : vector<16x32xf32>
    %458 = arith.addf %457, %443 : vector<16x32xf32>
    %c0_196 = arith.constant 0 : index
    %c0_197 = arith.constant 0 : index
    %459 = vector.load %arg12[%c0_196, %c0_197] : memref<1x32xf32, #tpu.memory_space<vmem>>, vector<1x32xf32>
    %c0_198 = arith.constant 0 : index
    %c0_199 = arith.constant 0 : index
    %460 = vector.load %arg13[%c0_198, %c0_199] : memref<1x32xf32, #tpu.memory_space<vmem>>, vector<1x32xf32>
    %cst_200 = arith.constant dense<0.000000e+00> : vector<16xf32>
    %461 = vector.multi_reduction <add>, %458, %cst_200 [1] : vector<16x32xf32> to vector<16xf32>
    %462 = vector.shape_cast %461 : vector<16xf32> to vector<16x1xf32>
    %cst_201 = arith.constant 3.200000e+01 : f32
    %463 = vector.broadcast %cst_201 : f32 to vector<16x1xf32>
    %464 = arith.divf %462, %463 : vector<16x1xf32>
    %465 = vector.broadcast %464 : vector<16x1xf32> to vector<16x32xf32>
    %466 = arith.subf %458, %465 : vector<16x32xf32>
    %467 = arith.mulf %466, %466 : vector<16x32xf32>
    %cst_202 = arith.constant dense<0.000000e+00> : vector<16xf32>
    %468 = vector.multi_reduction <add>, %467, %cst_202 [1] : vector<16x32xf32> to vector<16xf32>
    %469 = vector.shape_cast %468 : vector<16xf32> to vector<16x1xf32>
    %cst_203 = arith.constant 3.200000e+01 : f32
    %470 = vector.broadcast %cst_203 : f32 to vector<16x1xf32>
    %471 = arith.divf %469, %470 : vector<16x1xf32>
    %472 = vector.broadcast %464 : vector<16x1xf32> to vector<16x32xf32>
    %473 = arith.subf %458, %472 : vector<16x32xf32>
    %cst_204 = arith.constant 9.99999974E-6 : f32
    %474 = vector.broadcast %cst_204 : f32 to vector<16x1xf32>
    %475 = arith.addf %471, %474 : vector<16x1xf32>
    %476 = math.rsqrt %475 : vector<16x1xf32>
    %477 = vector.broadcast %476 : vector<16x1xf32> to vector<16x32xf32>
    %478 = arith.mulf %473, %477 : vector<16x32xf32>
    %479 = vector.broadcast %459 : vector<1x32xf32> to vector<16x32xf32>
    %480 = arith.mulf %478, %479 : vector<16x32xf32>
    %481 = vector.broadcast %460 : vector<1x32xf32> to vector<16x32xf32>
    %482 = arith.addf %480, %481 : vector<16x32xf32>
    %c0_205 = arith.constant 0 : index
    %c0_206 = arith.constant 0 : index
    %483 = vector.load %arg18[%c0_205, %c0_206] : memref<16x32xf32, #tpu.memory_space<vmem>>, vector<16x32xf32>
    tpu.vector_store %arg18[%c0_205, %c0_206], %482 {strides = array<i32>} : memref<16x32xf32, #tpu.memory_space<vmem>>, vector<16x32xf32>,
    return
  }
  func.func @transform_0(%arg0: i32) -> (i32, i32) {
    %c0_i32 = arith.constant 0 : i32
    %c0_i32_0 = arith.constant 0 : i32
    return %arg0, %c0_i32 : i32, i32
  }
  func.func @transform_1(%arg0: i32) -> (i32, i32) {
    %c0_i32 = arith.constant 0 : i32
    %c0_i32_0 = arith.constant 0 : i32
    return %arg0, %c0_i32 : i32, i32
  }
  func.func @transform_2(%arg0: i32) -> (i32, i32, i32) {
    %c0_i32 = arith.constant 0 : i32
    %c0_i32_0 = arith.constant 0 : i32
    %c0_i32_1 = arith.constant 0 : i32
    return %arg0, %c0_i32, %c0_i32_0 : i32, i32, i32
  }
  func.func @transform_3(%arg0: i32) -> (i32, i32, i32) {
    %c0_i32 = arith.constant 0 : i32
    %c0_i32_0 = arith.constant 0 : i32
    %c0_i32_1 = arith.constant 0 : i32
    return %arg0, %c0_i32, %c0_i32_0 : i32, i32, i32
  }
  func.func @transform_4(%arg0: i32) -> (i32, i32) {
    %c0_i32 = arith.constant 0 : i32
    %c0_i32_0 = arith.constant 0 : i32
    %c0_i32_1 = arith.constant 0 : i32
    return %c0_i32, %c0_i32_0 : i32, i32
  }
  func.func @transform_5(%arg0: i32) -> (i32, i32) {
    %c0_i32 = arith.constant 0 : i32
    %c0_i32_0 = arith.constant 0 : i32
    %c0_i32_1 = arith.constant 0 : i32
    return %c0_i32, %c0_i32_0 : i32, i32
  }
  func.func @transform_6(%arg0: i32) -> (i32, i32) {
    %c0_i32 = arith.constant 0 : i32
    %c0_i32_0 = arith.constant 0 : i32
    %c0_i32_1 = arith.constant 0 : i32
    return %c0_i32, %c0_i32_0 : i32, i32
  }
  func.func @transform_7(%arg0: i32) -> (i32, i32) {
    %c0_i32 = arith.constant 0 : i32
    %c0_i32_0 = arith.constant 0 : i32
    %c0_i32_1 = arith.constant 0 : i32
    return %c0_i32, %c0_i32_0 : i32, i32
  }
  func.func @transform_8(%arg0: i32) -> (i32, i32) {
    %c0_i32 = arith.constant 0 : i32
    %c0_i32_0 = arith.constant 0 : i32
    %c0_i32_1 = arith.constant 0 : i32
    return %c0_i32, %c0_i32_0 : i32, i32
  }
  func.func @transform_9(%arg0: i32) -> (i32, i32) {
    %c0_i32 = arith.constant 0 : i32
    %c0_i32_0 = arith.constant 0 : i32
    %c0_i32_1 = arith.constant 0 : i32
    return %c0_i32, %c0_i32_0 : i32, i32
  }
  func.func @transform_10(%arg0: i32) -> (i32, i32) {
    %c0_i32 = arith.constant 0 : i32
    %c0_i32_0 = arith.constant 0 : i32
    %c0_i32_1 = arith.constant 0 : i32
    return %c0_i32, %c0_i32_0 : i32, i32
  }
  func.func @transform_11(%arg0: i32) -> (i32, i32) {
    %c0_i32 = arith.constant 0 : i32
    %c0_i32_0 = arith.constant 0 : i32
    %c0_i32_1 = arith.constant 0 : i32
    return %c0_i32, %c0_i32_0 : i32, i32
  }
  func.func @transform_12(%arg0: i32) -> (i32, i32) {
    %c0_i32 = arith.constant 0 : i32
    %c0_i32_0 = arith.constant 0 : i32
    %c0_i32_1 = arith.constant 0 : i32
    return %c0_i32, %c0_i32_0 : i32, i32
  }
  func.func @transform_13(%arg0: i32) -> (i32, i32) {
    %c0_i32 = arith.constant 0 : i32
    %c0_i32_0 = arith.constant 0 : i32
    %c0_i32_1 = arith.constant 0 : i32
    return %c0_i32, %c0_i32_0 : i32, i32
  }
  func.func @transform_14(%arg0: i32) -> (i32, i32) {
    %c0_i32 = arith.constant 0 : i32
    %c0_i32_0 = arith.constant 0 : i32
    %c0_i32_1 = arith.constant 0 : i32
    return %c0_i32, %c0_i32_0 : i32, i32
  }
  func.func @transform_15(%arg0: i32) -> (i32, i32) {
    %c0_i32 = arith.constant 0 : i32
    %c0_i32_0 = arith.constant 0 : i32
    %c0_i32_1 = arith.constant 0 : i32
    return %c0_i32, %c0_i32_0 : i32, i32
  }
  func.func @transform_16(%arg0: i32) -> (i32, i32) {
    %c0_i32 = arith.constant 0 : i32
    %c0_i32_0 = arith.constant 0 : i32
    %c0_i32_1 = arith.constant 0 : i32
    return %c0_i32, %c0_i32_0 : i32, i32
  }
  func.func @transform_17(%arg0: i32) -> (i32, i32) {
    %c0_i32 = arith.constant 0 : i32
    %c0_i32_0 = arith.constant 0 : i32
    return %arg0, %c0_i32 : i32, i32
  }
}

</mosaic_0001>

<llo_original>
// kernel: decoder_forward.5
$region0: #{decoder_forward.5}
  #allocation0 [shape = 'u32[]', space=smem, size = 0x4, offset = 0x4, fixed_abs, tag = 'smem constant byte address 0x4 - core index']
  #allocation1 [shape = 'u32[144,128]{1,0:T(1,128)}', space=vmem, size = 0x12000, scoped, tag = 'internal scratch']
  %s0 = inlined_call_operand.vmem [shape: f32[16,32], index: 0, kind: input, shape index: {}]
  %s1 = inlined_call_operand.vmem [shape: bf16[32,128], index: 1, kind: input, shape index: {}]
  %s2 = inlined_call_operand.vmem [shape: f32[1,128], index: 2, kind: input, shape index: {}]
  %s3 = inlined_call_operand.vmem [shape: f32[16,128], index: 3, kind: output, shape index: {}]
  %s4 = sld [smem:[#allocation0]]
  $region22: #{decoder_forward.5} parent=0
    _
  %s6 = ssub.s32 1, %s4
  %s7 = scalar_select 0, %s6, %s4
  // Predicated region
  $region2: #{decoder_forward.5} parent=0 // pred_check
    _
  $region3: #{decoder_forward.5} parent=0 // pred_check_branch
    %9 = sbr.rel (0) target = $region5
  $region4: #{decoder_forward.5} parent=0 // pred_region
    _
  $region5: #{decoder_forward.5} parent=0 // pred_fallthru
    _
  // Predicated region
  $region6: #{decoder_forward.5} parent=0 // pred_check
    _
  $region7: #{decoder_forward.5} parent=0 // pred_check_branch
    %11 = sbr.rel (0) target = $region9
  $region8: #{decoder_forward.5} parent=0 // pred_region
    _
  $region9: #{decoder_forward.5} parent=0 // pred_fallthru
    _
  // Predicated region
  $region10: #{decoder_forward.5} parent=0 // pred_check
    _
  $region11: #{decoder_forward.5} parent=0 // pred_check_branch
    %13 = sbr.rel (0) target = $region13
  $region12: #{decoder_forward.5} parent=0 // pred_region
    _
  $region13: #{decoder_forward.5} parent=0 // pred_fallthru
    _
  %v15 = vld [vmem:[%s0] sm:$0xff]
  %v16 = vld [vmem:[%s0 + $0x8] sm:$0xff]
  %v17 = vpack.c.bf16 %v16, %v15
  %v18 = vld [vmem:[%s1] sm:$0xf]
  %v19 = vld [vmem:[%s1 + $0x4] sm:$0xf]
  %v20 = vld [vmem:[%s1 + $0x8] sm:$0xf]
  %v21 = vld [vmem:[%s1 + $0xc] sm:$0xf]
  %v22 = vld [vmem:[%s2] sm:$0x1]
  %v24 = vlaneseq
  %v25 = vshrl.u32 %v24, 7
  %v26 = vsub.s32 0, %v25
  %v27 = vrot.slane %v22, %v26
  %v33 = vunpack.c.l.b16 %v18
  %v34 = vunpack.c.l.b16 %v19
  %v35 = vunpack.c.l.b16 %v20
  %v36 = vunpack.c.l.b16 %v21
  %v37 = vpack.c.b16 %v34, %v33
  %v38 = vpack.c.b16 %v36, %v35
  %vm41 = vcmask 261120
  %v43 = vsel %vm41, %v17, 0
  %45 = vmatprep.subr.bf16.mxu0 0
  %46 = vmatpush1.bf16.msra.mxu0 0
  %47 = vmatprep.subr.bf16.mxu0 0
  %48 = vmatpush1.bf16.msra.mxu0 0
  %49 = vmatprep.subr.bf16.mxu0 0
  %50 = vmatpush1.bf16.msra.mxu0 0
  %51 = vmatprep.subr.bf16.mxu0 0
  %52 = vmatpush1.bf16.msra.mxu0 0
  %53 = vmatprep.subr.bf16.mxu0 0
  %54 = vmatpush1.bf16.msra.mxu0 0
  %55 = vmatprep.subr.bf16.mxu0 0
  %56 = vmatpush1.bf16.msra.mxu0 0
  %57 = vmatprep.subr.bf16.mxu0 0
  %58 = vmatpush1.bf16.msra.mxu0 %v38
  %59 = vmatprep.subr.bf16.mxu0 0
  %60 = vmatpush1.bf16.msra.mxu0 %v37
  %61 = vmatprep.subr.bf16.mxu0 0
  %62 = vmatpush2.bf16.msra.mxu0 0
  %63 = vmatprep.subr.bf16.mxu0 0
  %64 = vmatpush2.bf16.msra.mxu0 0
  %65 = vmatprep.subr.bf16.mxu0 0
  %66 = vmatpush2.bf16.msra.mxu0 0
  %67 = vmatprep.subr.bf16.mxu0 0
  %68 = vmatpush2.bf16.msra.mxu0 0
  %69 = vmatprep.subr.bf16.mxu0 0
  %70 = vmatpush2.bf16.msra.mxu0 0
  %71 = vmatprep.subr.bf16.mxu0 0
  %72 = vmatpush2.bf16.msra.mxu0 0
  %73 = vmatprep.subr.bf16.mxu0 0
  %74 = vmatpush2.bf16.msra.mxu0 0
  %75 = vmatprep.subr.bf16.mxu0 0
  %76 = vmatpush2.bf16.msra.mxu0 0
  %77 = vmatprep.mubr.bf16.mxu0 0
  %78 = vmatmul.mubr.bf16.gmra.mxu0 %v43
  %v79 = vpop.f32.mrf.mxu0
  %v80 = vadd.f32 %v27, %v79
  %v81 = vpop.f32.mrf.mxu0
  %v82 = vpop.f32.mrf.mxu0
  %v83 = vadd.f32 %v27, %v82
  %v84 = vpop.f32.mrf.mxu0
  %85 = vdwg.mxu0
  %86 = vst [vmem:[%s3] sm:$0xff] %v80
  %87 = vst [vmem:[%s3 + $0x8] sm:$0xff] %v83
  // Predicated region
  $region14: #{decoder_forward.5} parent=0 // pred_check
    _
  $region15: #{decoder_forward.5} parent=0 // pred_check_branch
    %89 = sbr.rel (0) target = $region17
  $region16: #{decoder_forward.5} parent=0 // pred_region
    _
  $region17: #{decoder_forward.5} parent=0 // pred_fallthru
    _
  // Predicated region
  $region18: #{decoder_forward.5} parent=0 // pred_check
    _
  $region19: #{decoder_forward.5} parent=0 // pred_check_branch
    %91 = sbr.rel (0) target = $region21
  $region20: #{decoder_forward.5} parent=0 // pred_region
    _
  $region21: #{decoder_forward.5} parent=0 // pred_fallthru
    _

// kernel: decoder_forward.3
$region0: #{decoder_forward.3}
  #allocation0 [shape = 'u32[]', space=smem, size = 0x4, offset = 0x4, fixed_abs, tag = 'smem constant byte address 0x4 - core index']
  #allocation1 [shape = 'u32[144,128]{1,0:T(1,128)}', space=vmem, size = 0x12000, scoped, tag = 'internal scratch']
  #allocation2 [shape = 'f32[16,32]{1,0:T(8,128)}', space=vmem, size = 0x2000, scoped, tag = 'scratch operand']
  %s0 = inlined_call_operand.vmem [shape: f32[16,32], index: 0, kind: input, shape index: {}]
  %s1 = inlined_call_operand.vmem [shape: f32[16,32], index: 1, kind: input, shape index: {}]
  %s2 = inlined_call_operand.vmem [shape: f32[2,8,8], index: 2, kind: input, shape index: {}]
  %s3 = inlined_call_operand.vmem [shape: f32[2,8,8], index: 3, kind: input, shape index: {}]
  %s4 = inlined_call_operand.vmem [shape: bf16[32,96], index: 4, kind: input, shape index: {}]
  %s5 = inlined_call_operand.vmem [shape: bf16[32,32], index: 5, kind: input, shape index: {}]
  %s6 = inlined_call_operand.vmem [shape: bf16[32,64], index: 6, kind: input, shape index: {}]
  %s7 = inlined_call_operand.vmem [shape: f32[1,32], index: 7, kind: input, shape index: {}]
  %s8 = inlined_call_operand.vmem [shape: f32[1,32], index: 8, kind: input, shape index: {}]
  %s9 = inlined_call_operand.vmem [shape: f32[1,32], index: 9, kind: input, shape index: {}]
  %s10 = inlined_call_operand.vmem [shape: f32[1,32], index: 10, kind: input, shape index: {}]
  %s11 = inlined_call_operand.vmem [shape: f32[1,32], index: 11, kind: input, shape index: {}]
  %s12 = inlined_call_operand.vmem [shape: f32[1,32], index: 12, kind: input, shape index: {}]
  %s13 = inlined_call_operand.vmem [shape: bf16[32,128], index: 13, kind: input, shape index: {}]
  %s14 = inlined_call_operand.vmem [shape: f32[1,128], index: 14, kind: input, shape index: {}]
  %s15 = inlined_call_operand.vmem [shape: bf16[128,32], index: 15, kind: input, shape index: {}]
  %s16 = inlined_call_operand.vmem [shape: f32[1,32], index: 16, kind: input, shape index: {}]
  %s17 = inlined_call_operand.vmem [shape: f32[16,32], index: 17, kind: output, shape index: {}]
  %s18 = sld [smem:[#allocation0]]
  $region78: #{decoder_forward.3} parent=0
    _
  %s20 = ssub.s32 1, %s18
  %s21 = scalar_select 0, %s20, %s18
  // Predicated region
  $region2: #{decoder_forward.3} parent=0 // pred_check
    _
  $region3: #{decoder_forward.3} parent=0 // pred_check_branch
    %23 = sbr.rel (0) target = $region5
  $region4: #{decoder_forward.3} parent=0 // pred_region
    _
  $region5: #{decoder_forward.3} parent=0 // pred_fallthru
    _
  // Predicated region
  $region6: #{decoder_forward.3} parent=0 // pred_check
    _
  $region7: #{decoder_forward.3} parent=0 // pred_check_branch
    %25 = sbr.rel (0) target = $region9
  $region8: #{decoder_forward.3} parent=0 // pred_region
    _
  $region9: #{decoder_forward.3} parent=0 // pred_fallthru
    _
  // Predicated region
  $region10: #{decoder_forward.3} parent=0 // pred_check
    _
  $region11: #{decoder_forward.3} parent=0 // pred_check_branch
    %27 = sbr.rel (0) target = $region13
  $region12: #{decoder_forward.3} parent=0 // pred_region
    _
  $region13: #{decoder_forward.3} parent=0 // pred_fallthru
    _
  // Predicated region
  $region14: #{decoder_forward.3} parent=0 // pred_check
    _
  $region15: #{decoder_forward.3} parent=0 // pred_check_branch
    %29 = sbr.rel (0) target = $region17
  $region16: #{decoder_forward.3} parent=0 // pred_region
    _
  $region17: #{decoder_forward.3} parent=0 // pred_fallthru
    _
  // Predicated region
  $region18: #{decoder_forward.3} parent=0 // pred_check
    _
  $region19: #{decoder_forward.3} parent=0 // pred_check_branch
    %31 = sbr.rel (0) target = $region21
  $region20: #{decoder_forward.3} parent=0 // pred_region
    _
  $region21: #{decoder_forward.3} parent=0 // pred_fallthru
    _
  // Predicated region
  $region22: #{decoder_forward.3} parent=0 // pred_check
    _
  $region23: #{decoder_forward.3} parent=0 // pred_check_branch
    %33 = sbr.rel (0) target = $region25
  $region24: #{decoder_forward.3} parent=0 // pred_region
    _
  $region25: #{decoder_forward.3} parent=0 // pred_fallthru
    _
  // Predicated region
  $region26: #{decoder_forward.3} parent=0 // pred_check
    _
  $region27: #{decoder_forward.3} parent=0 // pred_check_branch
    %35 = sbr.rel (0) target = $region29
  $region28: #{decoder_forward.3} parent=0 // pred_region
    _
  $region29: #{decoder_forward.3} parent=0 // pred_fallthru
    _
  // Predicated region
  $region30: #{decoder_forward.3} parent=0 // pred_check
    _
  $region31: #{decoder_forward.3} parent=0 // pred_check_branch
    %37 = sbr.rel (0) target = $region33
  $region32: #{decoder_forward.3} parent=0 // pred_region
    _
  $region33: #{decoder_forward.3} parent=0 // pred_fallthru
    _
  // Predicated region
  $region34: #{decoder_forward.3} parent=0 // pred_check
    _
  $region35: #{decoder_forward.3} parent=0 // pred_check_branch
    %39 = sbr.rel (0) target = $region37
  $region36: #{decoder_forward.3} parent=0 // pred_region
    _
  $region37: #{decoder_forward.3} parent=0 // pred_fallthru
    _
  // Predicated region
  $region38: #{decoder_forward.3} parent=0 // pred_check
    _
  $region39: #{decoder_forward.3} parent=0 // pred_check_branch
    %41 = sbr.rel (0) target = $region41
  $region40: #{decoder_forward.3} parent=0 // pred_region
    _
  $region41: #{decoder_forward.3} parent=0 // pred_fallthru
    _
  // Predicated region
  $region42: #{decoder_forward.3} parent=0 // pred_check
    _
  $region43: #{decoder_forward.3} parent=0 // pred_check_branch
    %43 = sbr.rel (0) target = $region45
  $region44: #{decoder_forward.3} parent=0 // pred_region
    _
  $region45: #{decoder_forward.3} parent=0 // pred_fallthru
    _
  // Predicated region
  $region46: #{decoder_forward.3} parent=0 // pred_check
    _
  $region47: #{decoder_forward.3} parent=0 // pred_check_branch
    %45 = sbr.rel (0) target = $region49
  $region48: #{decoder_forward.3} parent=0 // pred_region
    _
  $region49: #{decoder_forward.3} parent=0 // pred_fallthru
    _
  // Predicated region
  $region50: #{decoder_forward.3} parent=0 // pred_check
    _
  $region51: #{decoder_forward.3} parent=0 // pred_check_branch
    %47 = sbr.rel (0) target = $region53
  $region52: #{decoder_forward.3} parent=0 // pred_region
    _
  $region53: #{decoder_forward.3} parent=0 // pred_fallthru
    _
  // Predicated region
  $region54: #{decoder_forward.3} parent=0 // pred_check
    _
  $region55: #{decoder_forward.3} parent=0 // pred_check_branch
    %49 = sbr.rel (0) target = $region57
  $region56: #{decoder_forward.3} parent=0 // pred_region
    _
  $region57: #{decoder_forward.3} parent=0 // pred_fallthru
    _
  // Predicated region
  $region58: #{decoder_forward.3} parent=0 // pred_check
    _
  $region59: #{decoder_forward.3} parent=0 // pred_check_branch
    %51 = sbr.rel (0) target = $region61
  $region60: #{decoder_forward.3} parent=0 // pred_region
    _
  $region61: #{decoder_forward.3} parent=0 // pred_fallthru
    _
  // Predicated region
  $region62: #{decoder_forward.3} parent=0 // pred_check
    _
  $region63: #{decoder_forward.3} parent=0 // pred_check_branch
    %53 = sbr.rel (0) target = $region65
  $region64: #{decoder_forward.3} parent=0 // pred_region
    _
  $region65: #{decoder_forward.3} parent=0 // pred_fallthru
    _
  // Predicated region
  $region66: #{decoder_forward.3} parent=0 // pred_check
    _
  $region67: #{decoder_forward.3} parent=0 // pred_check_branch
    %55 = sbr.rel (0) target = $region69
  $region68: #{decoder_forward.3} parent=0 // pred_region
    _
  $region69: #{decoder_forward.3} parent=0 // pred_fallthru
    _
  %v57 = vld [vmem:[%s0] sm:$0xff]
  %v58 = vld [vmem:[%s0 + $0x8] sm:$0xff]
  %v59 = vpack.c.bf16 %v58, %v57
  %v60 = vld [vmem:[%s4] sm:$0xf]
  %v61 = vld [vmem:[%s4 + $0x4] sm:$0xf]
  %v62 = vld [vmem:[%s4 + $0x8] sm:$0xf]
  %v63 = vld [vmem:[%s4 + $0xc] sm:$0xf]
  %v68 = vunpack.c.l.b16 %v60
  %v69 = vunpack.c.l.b16 %v61
  %v70 = vunpack.c.l.b16 %v62
  %v71 = vunpack.c.l.b16 %v63
  %v72 = vpack.c.b16 %v69, %v68
  %v73 = vpack.c.b16 %v71, %v70
  %vm76 = vcmask 261120
  %v78 = vsel %vm76, %v59, 0
  %80 = vmatprep.subr.bf16.mxu0 0
  %81 = vmatpush1.bf16.msra.mxu0 0
  %82 = vmatprep.subr.bf16.mxu0 0
  %83 = vmatpush1.bf16.msra.mxu0 0
  %84 = vmatprep.subr.bf16.mxu0 0
  %85 = vmatpush1.bf16.msra.mxu0 0
  %86 = vmatprep.subr.bf16.mxu0 0
  %87 = vmatpush1.bf16.msra.mxu0 0
  %88 = vmatprep.subr.bf16.mxu0 0
  %89 = vmatpush1.bf16.msra.mxu0 0
  %90 = vmatprep.subr.bf16.mxu0 0
  %91 = vmatpush1.bf16.msra.mxu0 0
  %92 = vmatprep.subr.bf16.mxu0 0
  %93 = vmatpush1.bf16.msra.mxu0 %v73
  %94 = vmatprep.subr.bf16.mxu0 0
  %95 = vmatpush1.bf16.msra.mxu0 %v72
  %96 = vmatprep.subr.bf16.mxu0 0
  %97 = vmatpush2.bf16.msra.mxu0 0
  %98 = vmatprep.subr.bf16.mxu0 0
  %99 = vmatpush2.bf16.msra.mxu0 0
  %100 = vmatprep.subr.bf16.mxu0 0
  %101 = vmatpush2.bf16.msra.mxu0 0
  %102 = vmatprep.subr.bf16.mxu0 0
  %103 = vmatpush2.bf16.msra.mxu0 0
  %104 = vmatprep.subr.bf16.mxu0 0
  %105 = vmatpush2.bf16.msra.mxu0 0
  %106 = vmatprep.subr.bf16.mxu0 0
  %107 = vmatpush2.bf16.msra.mxu0 0
  %108 = vmatprep.subr.bf16.mxu0 0
  %109 = vmatpush2.bf16.msra.mxu0 0
  %110 = vmatprep.subr.bf16.mxu0 0
  %111 = vmatpush2.bf16.msra.mxu0 0
  %112 = vmatprep.mubr.bf16.mxu0 0
  %113 = vmatmul.mubr.bf16.gmra.mxu0 %v78
  %v114 = vpop.f32.mrf.mxu0
  %v115 = vadd.f32 0.0, %v114
  %v116 = vpop.f32.mrf.mxu0
  %v117 = vpop.f32.mrf.mxu0
  %v118 = vadd.f32 0.0, %v117
  %v119 = vpop.f32.mrf.mxu0
  %120 = vdwg.mxu0
  %v121 = vld [vmem:[%s2] sm:$0xff]
  %v122 = vmul.f32 %v115, 0.35355338
  %124 = vrot.lane.b32.xlu0 %v115, 96
  %v125 = vpop.permute.xlu0 %124
  %vm126 = vcmask 64512
  %v128 = vsel %vm126, %v122, 0
  %v130 = vsel %vm126, %v125, 0
  %132 = vmatprep.subr.mxu0 0.0
  %133 = vmatpush1.xpose.msra.mxu0 0.0
  %134 = vmatprep.subr.mxu0 0.0
  %135 = vmatpush1.xpose.msra.mxu0 0.0
  %136 = vmatprep.subr.mxu0 0.0
  %137 = vmatpush1.xpose.msra.mxu0 0.0
  %138 = vmatprep.subr.mxu0 0.0
  %139 = vmatpush1.xpose.msra.mxu0 0.0
  %140 = vmatprep.subr.mxu0 0.0
  %141 = vmatpush1.xpose.msra.mxu0 0.0
  %142 = vmatprep.subr.mxu0 0.0
  %143 = vmatpush1.xpose.msra.mxu0 0.0
  %144 = vmatprep.subr.mxu0 0.0
  %145 = vmatpush1.xpose.msra.mxu0 0.0
  %146 = vmatprep.subr.mxu0 0.0
  %147 = vmatpush1.xpose.msra.mxu0 0.0
  %148 = vmatprep.subr.mxu0 0.0
  %149 = vmatpush1.xpose.msra.mxu0 0.0
  %150 = vmatprep.subr.mxu0 0.0
  %151 = vmatpush1.xpose.msra.mxu0 0.0
  %152 = vmatprep.subr.mxu0 0.0
  %153 = vmatpush1.xpose.msra.mxu0 0.0
  %154 = vmatprep.subr.mxu0 0.0
  %155 = vmatpush1.xpose.msra.mxu0 0.0
  %156 = vmatprep.subr.mxu0 0.0
  %157 = vmatpush1.xpose.msra.mxu0 0.0
  %158 = vmatprep.subr.mxu0 0.0
  %159 = vmatpush1.xpose.msra.mxu0 0.0
  %160 = vmatprep.subr.mxu0 0.0
  %161 = vmatpush1.xpose.msra.mxu0 0.0
  %162 = vmatprep.subr.mxu0 0.0
  %163 = vmatpush1.xpose.msra.mxu0 %v130
  %164 = vmatprep.subr.mxu0 0.0
  %165 = vmatpush2.xpose.msra.mxu0 0.0
  %166 = vmatprep.subr.mxu0 0.0
  %167 = vmatpush2.xpose.msra.mxu0 0.0
  %168 = vmatprep.subr.mxu0 0.0
  %169 = vmatpush2.xpose.msra.mxu0 0.0
  %170 = vmatprep.subr.mxu0 0.0
  %171 = vmatpush2.xpose.msra.mxu0 0.0
  %172 = vmatprep.subr.mxu0 0.0
  %173 = vmatpush2.xpose.msra.mxu0 0.0
  %174 = vmatprep.subr.mxu0 0.0
  %175 = vmatpush2.xpose.msra.mxu0 0.0
  %176 = vmatprep.subr.mxu0 0.0
  %177 = vmatpush2.xpose.msra.mxu0 0.0
  %178 = vmatprep.subr.mxu0 0.0
  %179 = vmatpush2.xpose.msra.mxu0 0.0
  %180 = vmatprep.subr.mxu0 0.0
  %181 = vmatpush2.xpose.msra.mxu0 0.0
  %182 = vmatprep.subr.mxu0 0.0
  %183 = vmatpush2.xpose.msra.mxu0 0.0
  %184 = vmatprep.subr.mxu0 0.0
  %185 = vmatpush2.xpose.msra.mxu0 0.0
  %186 = vmatprep.subr.mxu0 0.0
  %187 = vmatpush2.xpose.msra.mxu0 0.0
  %188 = vmatprep.subr.mxu0 0.0
  %189 = vmatpush2.xpose.msra.mxu0 0.0
  %190 = vmatprep.subr.mxu0 0.0
  %191 = vmatpush2.xpose.msra.mxu0 0.0
  %192 = vmatprep.subr.mxu0 0.0
  %193 = vmatpush2.xpose.msra.mxu0 0.0
  %194 = vmatprep.subr.mxu0 0.0
  %195 = vmatpush2.xpose.msra.mxu0 0.0
  %196 = vmatprep.mubr.f32.mxu0 0.0
  %197 = vmatmul.mubr.f32.gmra.mxu0 %v128
  %v198 = vpop.f32.mrf.mxu0
  %v199 = vadd.f32 0.0, %v198
  %v200 = vpop.f32.mrf.mxu0
  %201 = vdwg.mxu0
  %vm202 = vcmp.eq.f32.partialorder %v121, 0.0
  %v203 = vsel %vm202, -1e+20, %v199
  %v204 = vsel %vm126, %v203, -inf
  %205 = vmax.xlane.f32.xlu0 %v204
  %v206 = vpop.xlane.xlu0 %205
  %v207 = vsub.f32 %v203, %v206
  %v208 = vmul.f32 %v207, 1.442695
  %v209 = vpow.pop %v208
  %v210 = vsel %vm126, %v209, 0.0
  %211 = vadd.xlane.f32.xlu0 %v210
  %v212 = vpop.xlane.xlu0 %211
  %213 = vrot.lane.b32.xlu0 %v115, 64
  %v214 = vpop.permute.xlu0 %213
  %v217 = vsel %vm126, %v209, 0
  %219 = vmatprep.subr.mxu0 0.0
  %220 = vmatpush1.msra.mxu0 0.0
  %221 = vmatprep.subr.mxu0 0.0
  %222 = vmatpush1.msra.mxu0 0.0
  %223 = vmatprep.subr.mxu0 0.0
  %224 = vmatpush1.msra.mxu0 0.0
  %225 = vmatprep.subr.mxu0 0.0
  %226 = vmatpush1.msra.mxu0 0.0
  %227 = vmatprep.subr.mxu0 0.0
  %228 = vmatpush1.msra.mxu0 0.0
  %229 = vmatprep.subr.mxu0 0.0
  %230 = vmatpush1.msra.mxu0 0.0
  %231 = vmatprep.subr.mxu0 0.0
  %232 = vmatpush1.msra.mxu0 0.0
  %233 = vmatprep.subr.mxu0 0.0
  %234 = vmatpush1.msra.mxu0 0.0
  %235 = vmatprep.subr.mxu0 0.0
  %236 = vmatpush1.msra.mxu0 0.0
  %237 = vmatprep.subr.mxu0 0.0
  %238 = vmatpush1.msra.mxu0 0.0
  %239 = vmatprep.subr.mxu0 0.0
  %240 = vmatpush1.msra.mxu0 0.0
  %241 = vmatprep.subr.mxu0 0.0
  %242 = vmatpush1.msra.mxu0 0.0
  %243 = vmatprep.subr.mxu0 0.0
  %244 = vmatpush1.msra.mxu0 0.0
  %245 = vmatprep.subr.mxu0 0.0
  %246 = vmatpush1.msra.mxu0 0.0
  %247 = vmatprep.subr.mxu0 0.0
  %248 = vmatpush1.msra.mxu0 0.0
  %249 = vmatprep.subr.mxu0 0.0
  %250 = vmatpush1.msra.mxu0 %v214
  %251 = vmatprep.subr.mxu0 0.0
  %252 = vmatpush2.msra.mxu0 0.0
  %253 = vmatprep.subr.mxu0 0.0
  %254 = vmatpush2.msra.mxu0 0.0
  %255 = vmatprep.subr.mxu0 0.0
  %256 = vmatpush2.msra.mxu0 0.0
  %257 = vmatprep.subr.mxu0 0.0
  %258 = vmatpush2.msra.mxu0 0.0
  %259 = vmatprep.subr.mxu0 0.0
  %260 = vmatpush2.msra.mxu0 0.0
  %261 = vmatprep.subr.mxu0 0.0
  %262 = vmatpush2.msra.mxu0 0.0
  %263 = vmatprep.subr.mxu0 0.0
  %264 = vmatpush2.msra.mxu0 0.0
  %265 = vmatprep.subr.mxu0 0.0
  %266 = vmatpush2.msra.mxu0 0.0
  %267 = vmatprep.subr.mxu0 0.0
  %268 = vmatpush2.msra.mxu0 0.0
  %269 = vmatprep.subr.mxu0 0.0
  %270 = vmatpush2.msra.mxu0 0.0
  %271 = vmatprep.subr.mxu0 0.0
  %272 = vmatpush2.msra.mxu0 0.0
  %273 = vmatprep.subr.mxu0 0.0
  %274 = vmatpush2.msra.mxu0 0.0
  %275 = vmatprep.subr.mxu0 0.0
  %276 = vmatpush2.msra.mxu0 0.0
  %277 = vmatprep.subr.mxu0 0.0
  %278 = vmatpush2.msra.mxu0 0.0
  %279 = vmatprep.subr.mxu0 0.0
  %280 = vmatpush2.msra.mxu0 0.0
  %281 = vmatprep.subr.mxu0 0.0
  %282 = vmatpush2.msra.mxu0 0.0
  %283 = vmatprep.mubr.f32.mxu0 0.0
  %284 = vmatmul.mubr.f32.gmra.mxu0 %v217
  %v285 = vpop.f32.mrf.mxu0
  %v286 = vadd.f32 0.0, %v285
  %v287 = vpop.f32.mrf.mxu0
  %288 = vdwg.mxu0
  %v289 = vrcp.pop %v212
  %v290 = vmul.f32 %v286, %v289
  %291 = vst.msk [vmem:[#allocation2] sm:$0xff] %vm126, %v290
  %292 = vrot.lane.b32.xlu0 %v122, 120
  %v293 = vpop.permute.xlu0 %292
  %294 = vrot.lane.b32.xlu0 %v115, 88
  %v295 = vpop.permute.xlu0 %294
  %v296 = vsel %vm126, %v293, 0
  %v298 = vsel %vm126, %v295, 0
  %300 = vmatprep.subr.mxu0 0.0
  %301 = vmatpush1.xpose.msra.mxu0 0.0
  %302 = vmatprep.subr.mxu0 0.0
  %303 = vmatpush1.xpose.msra.mxu0 0.0
  %304 = vmatprep.subr.mxu0 0.0
  %305 = vmatpush1.xpose.msra.mxu0 0.0
  %306 = vmatprep.subr.mxu0 0.0
  %307 = vmatpush1.xpose.msra.mxu0 0.0
  %308 = vmatprep.subr.mxu0 0.0
  %309 = vmatpush1.xpose.msra.mxu0 0.0
  %310 = vmatprep.subr.mxu0 0.0
  %311 = vmatpush1.xpose.msra.mxu0 0.0
  %312 = vmatprep.subr.mxu0 0.0
  %313 = vmatpush1.xpose.msra.mxu0 0.0
  %314 = vmatprep.subr.mxu0 0.0
  %315 = vmatpush1.xpose.msra.mxu0 0.0
  %316 = vmatprep.subr.mxu0 0.0
  %317 = vmatpush1.xpose.msra.mxu0 0.0
  %318 = vmatprep.subr.mxu0 0.0
  %319 = vmatpush1.xpose.msra.mxu0 0.0
  %320 = vmatprep.subr.mxu0 0.0
  %321 = vmatpush1.xpose.msra.mxu0 0.0
  %322 = vmatprep.subr.mxu0 0.0
  %323 = vmatpush1.xpose.msra.mxu0 0.0
  %324 = vmatprep.subr.mxu0 0.0
  %325 = vmatpush1.xpose.msra.mxu0 0.0
  %326 = vmatprep.subr.mxu0 0.0
  %327 = vmatpush1.xpose.msra.mxu0 0.0
  %328 = vmatprep.subr.mxu0 0.0
  %329 = vmatpush1.xpose.msra.mxu0 0.0
  %330 = vmatprep.subr.mxu0 0.0
  %331 = vmatpush1.xpose.msra.mxu0 %v298
  %332 = vmatprep.subr.mxu0 0.0
  %333 = vmatpush2.xpose.msra.mxu0 0.0
  %334 = vmatprep.subr.mxu0 0.0
  %335 = vmatpush2.xpose.msra.mxu0 0.0
  %336 = vmatprep.subr.mxu0 0.0
  %337 = vmatpush2.xpose.msra.mxu0 0.0
  %338 = vmatprep.subr.mxu0 0.0
  %339 = vmatpush2.xpose.msra.mxu0 0.0
  %340 = vmatprep.subr.mxu0 0.0
  %341 = vmatpush2.xpose.msra.mxu0 0.0
  %342 = vmatprep.subr.mxu0 0.0
  %343 = vmatpush2.xpose.msra.mxu0 0.0
  %344 = vmatprep.subr.mxu0 0.0
  %345 = vmatpush2.xpose.msra.mxu0 0.0
  %346 = vmatprep.subr.mxu0 0.0
  %347 = vmatpush2.xpose.msra.mxu0 0.0
  %348 = vmatprep.subr.mxu0 0.0
  %349 = vmatpush2.xpose.msra.mxu0 0.0
  %350 = vmatprep.subr.mxu0 0.0
  %351 = vmatpush2.xpose.msra.mxu0 0.0
  %352 = vmatprep.subr.mxu0 0.0
  %353 = vmatpush2.xpose.msra.mxu0 0.0
  %354 = vmatprep.subr.mxu0 0.0
  %355 = vmatpush2.xpose.msra.mxu0 0.0
  %356 = vmatprep.subr.mxu0 0.0
  %357 = vmatpush2.xpose.msra.mxu0 0.0
  %358 = vmatprep.subr.mxu0 0.0
  %359 = vmatpush2.xpose.msra.mxu0 0.0
  %360 = vmatprep.subr.mxu0 0.0
  %361 = vmatpush2.xpose.msra.mxu0 0.0
  %362 = vmatprep.subr.mxu0 0.0
  %363 = vmatpush2.xpose.msra.mxu0 0.0
  %364 = vmatprep.mubr.f32.mxu0 0.0
  %365 = vmatmul.mubr.f32.gmra.mxu0 %v296
  %v366 = vpop.f32.mrf.mxu0
  %v367 = vadd.f32 0.0, %v366
  %v368 = vpop.f32.mrf.mxu0
  %369 = vdwg.mxu0
  %v370 = vsel %vm202, -1e+20, %v367
  %v371 = vsel %vm126, %v370, -inf
  %372 = vmax.xlane.f32.xlu0 %v371
  %v373 = vpop.xlane.xlu0 %372
  %v374 = vsub.f32 %v370, %v373
  %v375 = vmul.f32 %v374, 1.442695
  %v376 = vpow.pop %v375
  %v377 = vsel %vm126, %v376, 0.0
  %378 = vadd.xlane.f32.xlu0 %v377
  %v379 = vpop.xlane.xlu0 %378
  %380 = vrot.lane.b32.xlu0 %v115, 56
  %v381 = vpop.permute.xlu0 %380
  %v384 = vsel %vm126, %v376, 0
  %386 = vmatprep.subr.mxu0 0.0
  %387 = vmatpush1.msra.mxu0 0.0
  %388 = vmatprep.subr.mxu0 0.0
  %389 = vmatpush1.msra.mxu0 0.0
  %390 = vmatprep.subr.mxu0 0.0
  %391 = vmatpush1.msra.mxu0 0.0
  %392 = vmatprep.subr.mxu0 0.0
  %393 = vmatpush1.msra.mxu0 0.0
  %394 = vmatprep.subr.mxu0 0.0
  %395 = vmatpush1.msra.mxu0 0.0
  %396 = vmatprep.subr.mxu0 0.0
  %397 = vmatpush1.msra.mxu0 0.0
  %398 = vmatprep.subr.mxu0 0.0
  %399 = vmatpush1.msra.mxu0 0.0
  %400 = vmatprep.subr.mxu0 0.0
  %401 = vmatpush1.msra.mxu0 0.0
  %402 = vmatprep.subr.mxu0 0.0
  %403 = vmatpush1.msra.mxu0 0.0
  %404 = vmatprep.subr.mxu0 0.0
  %405 = vmatpush1.msra.mxu0 0.0
  %406 = vmatprep.subr.mxu0 0.0
  %407 = vmatpush1.msra.mxu0 0.0
  %408 = vmatprep.subr.mxu0 0.0
  %409 = vmatpush1.msra.mxu0 0.0
  %410 = vmatprep.subr.mxu0 0.0
  %411 = vmatpush1.msra.mxu0 0.0
  %412 = vmatprep.subr.mxu0 0.0
  %413 = vmatpush1.msra.mxu0 0.0
  %414 = vmatprep.subr.mxu0 0.0
  %415 = vmatpush1.msra.mxu0 0.0
  %416 = vmatprep.subr.mxu0 0.0
  %417 = vmatpush1.msra.mxu0 %v381
  %418 = vmatprep.subr.mxu0 0.0
  %419 = vmatpush2.msra.mxu0 0.0
  %420 = vmatprep.subr.mxu0 0.0
  %421 = vmatpush2.msra.mxu0 0.0
  %422 = vmatprep.subr.mxu0 0.0
  %423 = vmatpush2.msra.mxu0 0.0
  %424 = vmatprep.subr.mxu0 0.0
  %425 = vmatpush2.msra.mxu0 0.0
  %426 = vmatprep.subr.mxu0 0.0
  %427 = vmatpush2.msra.mxu0 0.0
  %428 = vmatprep.subr.mxu0 0.0
  %429 = vmatpush2.msra.mxu0 0.0
  %430 = vmatprep.subr.mxu0 0.0
  %431 = vmatpush2.msra.mxu0 0.0
  %432 = vmatprep.subr.mxu0 0.0
  %433 = vmatpush2.msra.mxu0 0.0
  %434 = vmatprep.subr.mxu0 0.0
  %435 = vmatpush2.msra.mxu0 0.0
  %436 = vmatprep.subr.mxu0 0.0
  %437 = vmatpush2.msra.mxu0 0.0
  %438 = vmatprep.subr.mxu0 0.0
  %439 = vmatpush2.msra.mxu0 0.0
  %440 = vmatprep.subr.mxu0 0.0
  %441 = vmatpush2.msra.mxu0 0.0
  %442 = vmatprep.subr.mxu0 0.0
  %443 = vmatpush2.msra.mxu0 0.0
  %444 = vmatprep.subr.mxu0 0.0
  %445 = vmatpush2.msra.mxu0 0.0
  %446 = vmatprep.subr.mxu0 0.0
  %447 = vmatpush2.msra.mxu0 0.0
  %448 = vmatprep.subr.mxu0 0.0
  %449 = vmatpush2.msra.mxu0 0.0
  %450 = vmatprep.mubr.f32.mxu0 0.0
  %451 = vmatmul.mubr.f32.gmra.mxu0 %v384
  %v452 = vpop.f32.mrf.mxu0
  %v453 = vadd.f32 0.0, %v452
  %v454 = vpop.f32.mrf.mxu0
  %455 = vdwg.mxu0
  %v456 = vrcp.pop %v379
  %v457 = vmul.f32 %v453, %v456
  %459 = vrot.lane.b32.xlu0 %v457, 8
  %v460 = vpop.permute.xlu0 %459
  %vm462 = vcmask 130112
  %463 = vst.msk [vmem:[#allocation2] sm:$0xff] %vm462, %v460
  %464 = vrot.lane.b32.xlu0 %v122, 112
  %v465 = vpop.permute.xlu0 %464
  %466 = vrot.lane.b32.xlu0 %v115, 80
  %v467 = vpop.permute.xlu0 %466
  %v468 = vsel %vm126, %v465, 0
  %v470 = vsel %vm126, %v467, 0
  %472 = vmatprep.subr.mxu0 0.0
  %473 = vmatpush1.xpose.msra.mxu0 0.0
  %474 = vmatprep.subr.mxu0 0.0
  %475 = vmatpush1.xpose.msra.mxu0 0.0
  %476 = vmatprep.subr.mxu0 0.0
  %477 = vmatpush1.xpose.msra.mxu0 0.0
  %478 = vmatprep.subr.mxu0 0.0
  %479 = vmatpush1.xpose.msra.mxu0 0.0
  %480 = vmatprep.subr.mxu0 0.0
  %481 = vmatpush1.xpose.msra.mxu0 0.0
  %482 = vmatprep.subr.mxu0 0.0
  %483 = vmatpush1.xpose.msra.mxu0 0.0
  %484 = vmatprep.subr.mxu0 0.0
  %485 = vmatpush1.xpose.msra.mxu0 0.0
  %486 = vmatprep.subr.mxu0 0.0
  %487 = vmatpush1.xpose.msra.mxu0 0.0
  %488 = vmatprep.subr.mxu0 0.0
  %489 = vmatpush1.xpose.msra.mxu0 0.0
  %490 = vmatprep.subr.mxu0 0.0
  %491 = vmatpush1.xpose.msra.mxu0 0.0
  %492 = vmatprep.subr.mxu0 0.0
  %493 = vmatpush1.xpose.msra.mxu0 0.0
  %494 = vmatprep.subr.mxu0 0.0
  %495 = vmatpush1.xpose.msra.mxu0 0.0
  %496 = vmatprep.subr.mxu0 0.0
  %497 = vmatpush1.xpose.msra.mxu0 0.0
  %498 = vmatprep.subr.mxu0 0.0
  %499 = vmatpush1.xpose.msra.mxu0 0.0
  %500 = vmatprep.subr.mxu0 0.0
  %501 = vmatpush1.xpose.msra.mxu0 0.0
  %502 = vmatprep.subr.mxu0 0.0
  %503 = vmatpush1.xpose.msra.mxu0 %v470
  %504 = vmatprep.subr.mxu0 0.0
  %505 = vmatpush2.xpose.msra.mxu0 0.0
  %506 = vmatprep.subr.mxu0 0.0
  %507 = vmatpush2.xpose.msra.mxu0 0.0
  %508 = vmatprep.subr.mxu0 0.0
  %509 = vmatpush2.xpose.msra.mxu0 0.0
  %510 = vmatprep.subr.mxu0 0.0
  %511 = vmatpush2.xpose.msra.mxu0 0.0
  %512 = vmatprep.subr.mxu0 0.0
  %513 = vmatpush2.xpose.msra.mxu0 0.0
  %514 = vmatprep.subr.mxu0 0.0
  %515 = vmatpush2.xpose.msra.mxu0 0.0
  %516 = vmatprep.subr.mxu0 0.0
  %517 = vmatpush2.xpose.msra.mxu0 0.0
  %518 = vmatprep.subr.mxu0 0.0
  %519 = vmatpush2.xpose.msra.mxu0 0.0
  %520 = vmatprep.subr.mxu0 0.0
  %521 = vmatpush2.xpose.msra.mxu0 0.0
  %522 = vmatprep.subr.mxu0 0.0
  %523 = vmatpush2.xpose.msra.mxu0 0.0
  %524 = vmatprep.subr.mxu0 0.0
  %525 = vmatpush2.xpose.msra.mxu0 0.0
  %526 = vmatprep.subr.mxu0 0.0
  %527 = vmatpush2.xpose.msra.mxu0 0.0
  %528 = vmatprep.subr.mxu0 0.0
  %529 = vmatpush2.xpose.msra.mxu0 0.0
  %530 = vmatprep.subr.mxu0 0.0
  %531 = vmatpush2.xpose.msra.mxu0 0.0
  %532 = vmatprep.subr.mxu0 0.0
  %533 = vmatpush2.xpose.msra.mxu0 0.0
  %534 = vmatprep.subr.mxu0 0.0
  %535 = vmatpush2.xpose.msra.mxu0 0.0
  %536 = vmatprep.mubr.f32.mxu0 0.0
  %537 = vmatmul.mubr.f32.gmra.mxu0 %v468
  %v538 = vpop.f32.mrf.mxu0
  %v539 = vadd.f32 0.0, %v538
  %v540 = vpop.f32.mrf.mxu0
  %541 = vdwg.mxu0
  %v542 = vsel %vm202, -1e+20, %v539
  %v543 = vsel %vm126, %v542, -inf
  %544 = vmax.xlane.f32.xlu0 %v543
  %v545 = vpop.xlane.xlu0 %544
  %v546 = vsub.f32 %v542, %v545
  %v547 = vmul.f32 %v546, 1.442695
  %v548 = vpow.pop %v547
  %v549 = vsel %vm126, %v548, 0.0
  %550 = vadd.xlane.f32.xlu0 %v549
  %v551 = vpop.xlane.xlu0 %550
  %552 = vrot.lane.b32.xlu0 %v115, 48
  %v553 = vpop.permute.xlu0 %552
  %v556 = vsel %vm126, %v548, 0
  %558 = vmatprep.subr.mxu0 0.0
  %559 = vmatpush1.msra.mxu0 0.0
  %560 = vmatprep.subr.mxu0 0.0
  %561 = vmatpush1.msra.mxu0 0.0
  %562 = vmatprep.subr.mxu0 0.0
  %563 = vmatpush1.msra.mxu0 0.0
  %564 = vmatprep.subr.mxu0 0.0
  %565 = vmatpush1.msra.mxu0 0.0
  %566 = vmatprep.subr.mxu0 0.0
  %567 = vmatpush1.msra.mxu0 0.0
  %568 = vmatprep.subr.mxu0 0.0
  %569 = vmatpush1.msra.mxu0 0.0
  %570 = vmatprep.subr.mxu0 0.0
  %571 = vmatpush1.msra.mxu0 0.0
  %572 = vmatprep.subr.mxu0 0.0
  %573 = vmatpush1.msra.mxu0 0.0
  %574 = vmatprep.subr.mxu0 0.0
  %575 = vmatpush1.msra.mxu0 0.0
  %576 = vmatprep.subr.mxu0 0.0
  %577 = vmatpush1.msra.mxu0 0.0
  %578 = vmatprep.subr.mxu0 0.0
  %579 = vmatpush1.msra.mxu0 0.0
  %580 = vmatprep.subr.mxu0 0.0
  %581 = vmatpush1.msra.mxu0 0.0
  %582 = vmatprep.subr.mxu0 0.0
  %583 = vmatpush1.msra.mxu0 0.0
  %584 = vmatprep.subr.mxu0 0.0
  %585 = vmatpush1.msra.mxu0 0.0
  %586 = vmatprep.subr.mxu0 0.0
  %587 = vmatpush1.msra.mxu0 0.0
  %588 = vmatprep.subr.mxu0 0.0
  %589 = vmatpush1.msra.mxu0 %v553
  %590 = vmatprep.subr.mxu0 0.0
  %591 = vmatpush2.msra.mxu0 0.0
  %592 = vmatprep.subr.mxu0 0.0
  %593 = vmatpush2.msra.mxu0 0.0
  %594 = vmatprep.subr.mxu0 0.0
  %595 = vmatpush2.msra.mxu0 0.0
  %596 = vmatprep.subr.mxu0 0.0
  %597 = vmatpush2.msra.mxu0 0.0
  %598 = vmatprep.subr.mxu0 0.0
  %599 = vmatpush2.msra.mxu0 0.0
  %600 = vmatprep.subr.mxu0 0.0
  %601 = vmatpush2.msra.mxu0 0.0
  %602 = vmatprep.subr.mxu0 0.0
  %603 = vmatpush2.msra.mxu0 0.0
  %604 = vmatprep.subr.mxu0 0.0
  %605 = vmatpush2.msra.mxu0 0.0
  %606 = vmatprep.subr.mxu0 0.0
  %607 = vmatpush2.msra.mxu0 0.0
  %608 = vmatprep.subr.mxu0 0.0
  %609 = vmatpush2.msra.mxu0 0.0
  %610 = vmatprep.subr.mxu0 0.0
  %611 = vmatpush2.msra.mxu0 0.0
  %612 = vmatprep.subr.mxu0 0.0
  %613 = vmatpush2.msra.mxu0 0.0
  %614 = vmatprep.subr.mxu0 0.0
  %615 = vmatpush2.msra.mxu0 0.0
  %616 = vmatprep.subr.mxu0 0.0
  %617 = vmatpush2.msra.mxu0 0.0
  %618 = vmatprep.subr.mxu0 0.0
  %619 = vmatpush2.msra.mxu0 0.0
  %620 = vmatprep.subr.mxu0 0.0
  %621 = vmatpush2.msra.mxu0 0.0
  %622 = vmatprep.mubr.f32.mxu0 0.0
  %623 = vmatmul.mubr.f32.gmra.mxu0 %v556
  %v624 = vpop.f32.mrf.mxu0
  %v625 = vadd.f32 0.0, %v624
  %v626 = vpop.f32.mrf.mxu0
  %627 = vdwg.mxu0
  %v628 = vrcp.pop %v551
  %v629 = vmul.f32 %v625, %v628
  %631 = vrot.lane.b32.xlu0 %v629, 16
  %v632 = vpop.permute.xlu0 %631
  %vm634 = vcmask 195712
  %635 = vst.msk [vmem:[#allocation2] sm:$0xff] %vm634, %v632
  %636 = vrot.lane.b32.xlu0 %v122, 104
  %v637 = vpop.permute.xlu0 %636
  %638 = vrot.lane.b32.xlu0 %v115, 72
  %v639 = vpop.permute.xlu0 %638
  %v640 = vsel %vm126, %v637, 0
  %v642 = vsel %vm126, %v639, 0
  %644 = vmatprep.subr.mxu0 0.0
  %645 = vmatpush1.xpose.msra.mxu0 0.0
  %646 = vmatprep.subr.mxu0 0.0
  %647 = vmatpush1.xpose.msra.mxu0 0.0
  %648 = vmatprep.subr.mxu0 0.0
  %649 = vmatpush1.xpose.msra.mxu0 0.0
  %650 = vmatprep.subr.mxu0 0.0
  %651 = vmatpush1.xpose.msra.mxu0 0.0
  %652 = vmatprep.subr.mxu0 0.0
  %653 = vmatpush1.xpose.msra.mxu0 0.0
  %654 = vmatprep.subr.mxu0 0.0
  %655 = vmatpush1.xpose.msra.mxu0 0.0
  %656 = vmatprep.subr.mxu0 0.0
  %657 = vmatpush1.xpose.msra.mxu0 0.0
  %658 = vmatprep.subr.mxu0 0.0
  %659 = vmatpush1.xpose.msra.mxu0 0.0
  %660 = vmatprep.subr.mxu0 0.0
  %661 = vmatpush1.xpose.msra.mxu0 0.0
  %662 = vmatprep.subr.mxu0 0.0
  %663 = vmatpush1.xpose.msra.mxu0 0.0
  %664 = vmatprep.subr.mxu0 0.0
  %665 = vmatpush1.xpose.msra.mxu0 0.0
  %666 = vmatprep.subr.mxu0 0.0
  %667 = vmatpush1.xpose.msra.mxu0 0.0
  %668 = vmatprep.subr.mxu0 0.0
  %669 = vmatpush1.xpose.msra.mxu0 0.0
  %670 = vmatprep.subr.mxu0 0.0
  %671 = vmatpush1.xpose.msra.mxu0 0.0
  %672 = vmatprep.subr.mxu0 0.0
  %673 = vmatpush1.xpose.msra.mxu0 0.0
  %674 = vmatprep.subr.mxu0 0.0
  %675 = vmatpush1.xpose.msra.mxu0 %v642
  %676 = vmatprep.subr.mxu0 0.0
  %677 = vmatpush2.xpose.msra.mxu0 0.0
  %678 = vmatprep.subr.mxu0 0.0
  %679 = vmatpush2.xpose.msra.mxu0 0.0
  %680 = vmatprep.subr.mxu0 0.0
  %681 = vmatpush2.xpose.msra.mxu0 0.0
  %682 = vmatprep.subr.mxu0 0.0
  %683 = vmatpush2.xpose.msra.mxu0 0.0
  %684 = vmatprep.subr.mxu0 0.0
  %685 = vmatpush2.xpose.msra.mxu0 0.0
  %686 = vmatprep.subr.mxu0 0.0
  %687 = vmatpush2.xpose.msra.mxu0 0.0
  %688 = vmatprep.subr.mxu0 0.0
  %689 = vmatpush2.xpose.msra.mxu0 0.0
  %690 = vmatprep.subr.mxu0 0.0
  %691 = vmatpush2.xpose.msra.mxu0 0.0
  %692 = vmatprep.subr.mxu0 0.0
  %693 = vmatpush2.xpose.msra.mxu0 0.0
  %694 = vmatprep.subr.mxu0 0.0
  %695 = vmatpush2.xpose.msra.mxu0 0.0
  %696 = vmatprep.subr.mxu0 0.0
  %697 = vmatpush2.xpose.msra.mxu0 0.0
  %698 = vmatprep.subr.mxu0 0.0
  %699 = vmatpush2.xpose.msra.mxu0 0.0
  %700 = vmatprep.subr.mxu0 0.0
  %701 = vmatpush2.xpose.msra.mxu0 0.0
  %702 = vmatprep.subr.mxu0 0.0
  %703 = vmatpush2.xpose.msra.mxu0 0.0
  %704 = vmatprep.subr.mxu0 0.0
  %705 = vmatpush2.xpose.msra.mxu0 0.0
  %706 = vmatprep.subr.mxu0 0.0
  %707 = vmatpush2.xpose.msra.mxu0 0.0
  %708 = vmatprep.mubr.f32.mxu0 0.0
  %709 = vmatmul.mubr.f32.gmra.mxu0 %v640
  %v710 = vpop.f32.mrf.mxu0
  %v711 = vadd.f32 0.0, %v710
  %v712 = vpop.f32.mrf.mxu0
  %713 = vdwg.mxu0
  %v714 = vsel %vm202, -1e+20, %v711
  %v715 = vsel %vm126, %v714, -inf
  %716 = vmax.xlane.f32.xlu0 %v715
  %v717 = vpop.xlane.xlu0 %716
  %v718 = vsub.f32 %v714, %v717
  %v719 = vmul.f32 %v718, 1.442695
  %v720 = vpow.pop %v719
  %v721 = vsel %vm126, %v720, 0.0
  %722 = vadd.xlane.f32.xlu0 %v721
  %v723 = vpop.xlane.xlu0 %722
  %724 = vrot.lane.b32.xlu0 %v115, 40
  %v725 = vpop.permute.xlu0 %724
  %v728 = vsel %vm126, %v720, 0
  %730 = vmatprep.subr.mxu0 0.0
  %731 = vmatpush1.msra.mxu0 0.0
  %732 = vmatprep.subr.mxu0 0.0
  %733 = vmatpush1.msra.mxu0 0.0
  %734 = vmatprep.subr.mxu0 0.0
  %735 = vmatpush1.msra.mxu0 0.0
  %736 = vmatprep.subr.mxu0 0.0
  %737 = vmatpush1.msra.mxu0 0.0
  %738 = vmatprep.subr.mxu0 0.0
  %739 = vmatpush1.msra.mxu0 0.0
  %740 = vmatprep.subr.mxu0 0.0
  %741 = vmatpush1.msra.mxu0 0.0
  %742 = vmatprep.subr.mxu0 0.0
  %743 = vmatpush1.msra.mxu0 0.0
  %744 = vmatprep.subr.mxu0 0.0
  %745 = vmatpush1.msra.mxu0 0.0
  %746 = vmatprep.subr.mxu0 0.0
  %747 = vmatpush1.msra.mxu0 0.0
  %748 = vmatprep.subr.mxu0 0.0
  %749 = vmatpush1.msra.mxu0 0.0
  %750 = vmatprep.subr.mxu0 0.0
  %751 = vmatpush1.msra.mxu0 0.0
  %752 = vmatprep.subr.mxu0 0.0
  %753 = vmatpush1.msra.mxu0 0.0
  %754 = vmatprep.subr.mxu0 0.0
  %755 = vmatpush1.msra.mxu0 0.0
  %756 = vmatprep.subr.mxu0 0.0
  %757 = vmatpush1.msra.mxu0 0.0
  %758 = vmatprep.subr.mxu0 0.0
  %759 = vmatpush1.msra.mxu0 0.0
  %760 = vmatprep.subr.mxu0 0.0
  %761 = vmatpush1.msra.mxu0 %v725
  %762 = vmatprep.subr.mxu0 0.0
  %763 = vmatpush2.msra.mxu0 0.0
  %764 = vmatprep.subr.mxu0 0.0
  %765 = vmatpush2.msra.mxu0 0.0
  %766 = vmatprep.subr.mxu0 0.0
  %767 = vmatpush2.msra.mxu0 0.0
  %768 = vmatprep.subr.mxu0 0.0
  %769 = vmatpush2.msra.mxu0 0.0
  %770 = vmatprep.subr.mxu0 0.0
  %771 = vmatpush2.msra.mxu0 0.0
  %772 = vmatprep.subr.mxu0 0.0
  %773 = vmatpush2.msra.mxu0 0.0
  %774 = vmatprep.subr.mxu0 0.0
  %775 = vmatpush2.msra.mxu0 0.0
  %776 = vmatprep.subr.mxu0 0.0
  %777 = vmatpush2.msra.mxu0 0.0
  %778 = vmatprep.subr.mxu0 0.0
  %779 = vmatpush2.msra.mxu0 0.0
  %780 = vmatprep.subr.mxu0 0.0
  %781 = vmatpush2.msra.mxu0 0.0
  %782 = vmatprep.subr.mxu0 0.0
  %783 = vmatpush2.msra.mxu0 0.0
  %784 = vmatprep.subr.mxu0 0.0
  %785 = vmatpush2.msra.mxu0 0.0
  %786 = vmatprep.subr.mxu0 0.0
  %787 = vmatpush2.msra.mxu0 0.0
  %788 = vmatprep.subr.mxu0 0.0
  %789 = vmatpush2.msra.mxu0 0.0
  %790 = vmatprep.subr.mxu0 0.0
  %791 = vmatpush2.msra.mxu0 0.0
  %792 = vmatprep.subr.mxu0 0.0
  %793 = vmatpush2.msra.mxu0 0.0
  %794 = vmatprep.mubr.f32.mxu0 0.0
  %795 = vmatmul.mubr.f32.gmra.mxu0 %v728
  %v796 = vpop.f32.mrf.mxu0
  %v797 = vadd.f32 0.0, %v796
  %v798 = vpop.f32.mrf.mxu0
  %799 = vdwg.mxu0
  %v800 = vrcp.pop %v723
  %v801 = vmul.f32 %v797, %v800
  %803 = vrot.lane.b32.xlu0 %v801, 24
  %v804 = vpop.permute.xlu0 %803
  %vm806 = vcmask 261312
  %807 = vst.msk [vmem:[#allocation2] sm:$0xff] %vm806, %v804
  %s808 = scalar_lea.vmem %s2, 8
  %v809 = vld [vmem:[%s808] sm:$0xff]
  %v810 = vmul.f32 %v118, 0.35355338
  %812 = vrot.lane.b32.xlu0 %v118, 96
  %v813 = vpop.permute.xlu0 %812
  %v815 = vsel %vm126, %v810, 0
  %v817 = vsel %vm126, %v813, 0
  %819 = vmatprep.subr.mxu0 0.0
  %820 = vmatpush1.xpose.msra.mxu0 0.0
  %821 = vmatprep.subr.mxu0 0.0
  %822 = vmatpush1.xpose.msra.mxu0 0.0
  %823 = vmatprep.subr.mxu0 0.0
  %824 = vmatpush1.xpose.msra.mxu0 0.0
  %825 = vmatprep.subr.mxu0 0.0
  %826 = vmatpush1.xpose.msra.mxu0 0.0
  %827 = vmatprep.subr.mxu0 0.0
  %828 = vmatpush1.xpose.msra.mxu0 0.0
  %829 = vmatprep.subr.mxu0 0.0
  %830 = vmatpush1.xpose.msra.mxu0 0.0
  %831 = vmatprep.subr.mxu0 0.0
  %832 = vmatpush1.xpose.msra.mxu0 0.0
  %833 = vmatprep.subr.mxu0 0.0
  %834 = vmatpush1.xpose.msra.mxu0 0.0
  %835 = vmatprep.subr.mxu0 0.0
  %836 = vmatpush1.xpose.msra.mxu0 0.0
  %837 = vmatprep.subr.mxu0 0.0
  %838 = vmatpush1.xpose.msra.mxu0 0.0
  %839 = vmatprep.subr.mxu0 0.0
  %840 = vmatpush1.xpose.msra.mxu0 0.0
  %841 = vmatprep.subr.mxu0 0.0
  %842 = vmatpush1.xpose.msra.mxu0 0.0
  %843 = vmatprep.subr.mxu0 0.0
  %844 = vmatpush1.xpose.msra.mxu0 0.0
  %845 = vmatprep.subr.mxu0 0.0
  %846 = vmatpush1.xpose.msra.mxu0 0.0
  %847 = vmatprep.subr.mxu0 0.0
  %848 = vmatpush1.xpose.msra.mxu0 0.0
  %849 = vmatprep.subr.mxu0 0.0
  %850 = vmatpush1.xpose.msra.mxu0 %v817
  %851 = vmatprep.subr.mxu0 0.0
  %852 = vmatpush2.xpose.msra.mxu0 0.0
  %853 = vmatprep.subr.mxu0 0.0
  %854 = vmatpush2.xpose.msra.mxu0 0.0
  %855 = vmatprep.subr.mxu0 0.0
  %856 = vmatpush2.xpose.msra.mxu0 0.0
  %857 = vmatprep.subr.mxu0 0.0
  %858 = vmatpush2.xpose.msra.mxu0 0.0
  %859 = vmatprep.subr.mxu0 0.0
  %860 = vmatpush2.xpose.msra.mxu0 0.0
  %861 = vmatprep.subr.mxu0 0.0
  %862 = vmatpush2.xpose.msra.mxu0 0.0
  %863 = vmatprep.subr.mxu0 0.0
  %864 = vmatpush2.xpose.msra.mxu0 0.0
  %865 = vmatprep.subr.mxu0 0.0
  %866 = vmatpush2.xpose.msra.mxu0 0.0
  %867 = vmatprep.subr.mxu0 0.0
  %868 = vmatpush2.xpose.msra.mxu0 0.0
  %869 = vmatprep.subr.mxu0 0.0
  %870 = vmatpush2.xpose.msra.mxu0 0.0
  %871 = vmatprep.subr.mxu0 0.0
  %872 = vmatpush2.xpose.msra.mxu0 0.0
  %873 = vmatprep.subr.mxu0 0.0
  %874 = vmatpush2.xpose.msra.mxu0 0.0
  %875 = vmatprep.subr.mxu0 0.0
  %876 = vmatpush2.xpose.msra.mxu0 0.0
  %877 = vmatprep.subr.mxu0 0.0
  %878 = vmatpush2.xpose.msra.mxu0 0.0
  %879 = vmatprep.subr.mxu0 0.0
  %880 = vmatpush2.xpose.msra.mxu0 0.0
  %881 = vmatprep.subr.mxu0 0.0
  %882 = vmatpush2.xpose.msra.mxu0 0.0
  %883 = vmatprep.mubr.f32.mxu0 0.0
  %884 = vmatmul.mubr.f32.gmra.mxu0 %v815
  %v885 = vpop.f32.mrf.mxu0
  %v886 = vadd.f32 0.0, %v885
  %v887 = vpop.f32.mrf.mxu0
  %888 = vdwg.mxu0
  %vm889 = vcmp.eq.f32.partialorder %v809, 0.0
  %v890 = vsel %vm889, -1e+20, %v886
  %v891 = vsel %vm126, %v890, -inf
  %892 = vmax.xlane.f32.xlu0 %v891
  %v893 = vpop.xlane.xlu0 %892
  %v894 = vsub.f32 %v890, %v893
  %v895 = vmul.f32 %v894, 1.442695
  %v896 = vpow.pop %v895
  %v897 = vsel %vm126, %v896, 0.0
  %898 = vadd.xlane.f32.xlu0 %v897
  %v899 = vpop.xlane.xlu0 %898
  %900 = vrot.lane.b32.xlu0 %v118, 64
  %v901 = vpop.permute.xlu0 %900
  %v904 = vsel %vm126, %v896, 0
  %906 = vmatprep.subr.mxu0 0.0
  %907 = vmatpush1.msra.mxu0 0.0
  %908 = vmatprep.subr.mxu0 0.0
  %909 = vmatpush1.msra.mxu0 0.0
  %910 = vmatprep.subr.mxu0 0.0
  %911 = vmatpush1.msra.mxu0 0.0
  %912 = vmatprep.subr.mxu0 0.0
  %913 = vmatpush1.msra.mxu0 0.0
  %914 = vmatprep.subr.mxu0 0.0
  %915 = vmatpush1.msra.mxu0 0.0
  %916 = vmatprep.subr.mxu0 0.0
  %917 = vmatpush1.msra.mxu0 0.0
  %918 = vmatprep.subr.mxu0 0.0
  %919 = vmatpush1.msra.mxu0 0.0
  %920 = vmatprep.subr.mxu0 0.0
  %921 = vmatpush1.msra.mxu0 0.0
  %922 = vmatprep.subr.mxu0 0.0
  %923 = vmatpush1.msra.mxu0 0.0
  %924 = vmatprep.subr.mxu0 0.0
  %925 = vmatpush1.msra.mxu0 0.0
  %926 = vmatprep.subr.mxu0 0.0
  %927 = vmatpush1.msra.mxu0 0.0
  %928 = vmatprep.subr.mxu0 0.0
  %929 = vmatpush1.msra.mxu0 0.0
  %930 = vmatprep.subr.mxu0 0.0
  %931 = vmatpush1.msra.mxu0 0.0
  %932 = vmatprep.subr.mxu0 0.0
  %933 = vmatpush1.msra.mxu0 0.0
  %934 = vmatprep.subr.mxu0 0.0
  %935 = vmatpush1.msra.mxu0 0.0
  %936 = vmatprep.subr.mxu0 0.0
  %937 = vmatpush1.msra.mxu0 %v901
  %938 = vmatprep.subr.mxu0 0.0
  %939 = vmatpush2.msra.mxu0 0.0
  %940 = vmatprep.subr.mxu0 0.0
  %941 = vmatpush2.msra.mxu0 0.0
  %942 = vmatprep.subr.mxu0 0.0
  %943 = vmatpush2.msra.mxu0 0.0
  %944 = vmatprep.subr.mxu0 0.0
  %945 = vmatpush2.msra.mxu0 0.0
  %946 = vmatprep.subr.mxu0 0.0
  %947 = vmatpush2.msra.mxu0 0.0
  %948 = vmatprep.subr.mxu0 0.0
  %949 = vmatpush2.msra.mxu0 0.0
  %950 = vmatprep.subr.mxu0 0.0
  %951 = vmatpush2.msra.mxu0 0.0
  %952 = vmatprep.subr.mxu0 0.0
  %953 = vmatpush2.msra.mxu0 0.0
  %954 = vmatprep.subr.mxu0 0.0
  %955 = vmatpush2.msra.mxu0 0.0
  %956 = vmatprep.subr.mxu0 0.0
  %957 = vmatpush2.msra.mxu0 0.0
  %958 = vmatprep.subr.mxu0 0.0
  %959 = vmatpush2.msra.mxu0 0.0
  %960 = vmatprep.subr.mxu0 0.0
  %961 = vmatpush2.msra.mxu0 0.0
  %962 = vmatprep.subr.mxu0 0.0
  %963 = vmatpush2.msra.mxu0 0.0
  %964 = vmatprep.subr.mxu0 0.0
  %965 = vmatpush2.msra.mxu0 0.0
  %966 = vmatprep.subr.mxu0 0.0
  %967 = vmatpush2.msra.mxu0 0.0
  %968 = vmatprep.subr.mxu0 0.0
  %969 = vmatpush2.msra.mxu0 0.0
  %970 = vmatprep.mubr.f32.mxu0 0.0
  %971 = vmatmul.mubr.f32.gmra.mxu0 %v904
  %v972 = vpop.f32.mrf.mxu0
  %v973 = vadd.f32 0.0, %v972
  %v974 = vpop.f32.mrf.mxu0
  %975 = vdwg.mxu0
  %v976 = vrcp.pop %v899
  %v977 = vmul.f32 %v973, %v976
  %978 = vst.msk [vmem:[#allocation2 + $0x8] sm:$0xff] %vm126, %v977
  %979 = vrot.lane.b32.xlu0 %v810, 120
  %v980 = vpop.permute.xlu0 %979
  %981 = vrot.lane.b32.xlu0 %v118, 88
  %v982 = vpop.permute.xlu0 %981
  %v983 = vsel %vm126, %v980, 0
  %v985 = vsel %vm126, %v982, 0
  %987 = vmatprep.subr.mxu0 0.0
  %988 = vmatpush1.xpose.msra.mxu0 0.0
  %989 = vmatprep.subr.mxu0 0.0
  %990 = vmatpush1.xpose.msra.mxu0 0.0
  %991 = vmatprep.subr.mxu0 0.0
  %992 = vmatpush1.xpose.msra.mxu0 0.0
  %993 = vmatprep.subr.mxu0 0.0
  %994 = vmatpush1.xpose.msra.mxu0 0.0
  %995 = vmatprep.subr.mxu0 0.0
  %996 = vmatpush1.xpose.msra.mxu0 0.0
  %997 = vmatprep.subr.mxu0 0.0
  %998 = vmatpush1.xpose.msra.mxu0 0.0
  %999 = vmatprep.subr.mxu0 0.0
  %1000 = vmatpush1.xpose.msra.mxu0 0.0
  %1001 = vmatprep.subr.mxu0 0.0
  %1002 = vmatpush1.xpose.msra.mxu0 0.0
  %1003 = vmatprep.subr.mxu0 0.0
  %1004 = vmatpush1.xpose.msra.mxu0 0.0
  %1005 = vmatprep.subr.mxu0 0.0
  %1006 = vmatpush1.xpose.msra.mxu0 0.0
  %1007 = vmatprep.subr.mxu0 0.0
  %1008 = vmatpush1.xpose.msra.mxu0 0.0
  %1009 = vmatprep.subr.mxu0 0.0
  %1010 = vmatpush1.xpose.msra.mxu0 0.0
  %1011 = vmatprep.subr.mxu0 0.0
  %1012 = vmatpush1.xpose.msra.mxu0 0.0
  %1013 = vmatprep.subr.mxu0 0.0
  %1014 = vmatpush1.xpose.msra.mxu0 0.0
  %1015 = vmatprep.subr.mxu0 0.0
  %1016 = vmatpush1.xpose.msra.mxu0 0.0
  %1017 = vmatprep.subr.mxu0 0.0
  %1018 = vmatpush1.xpose.msra.mxu0 %v985
  %1019 = vmatprep.subr.mxu0 0.0
  %1020 = vmatpush2.xpose.msra.mxu0 0.0
  %1021 = vmatprep.subr.mxu0 0.0
  %1022 = vmatpush2.xpose.msra.mxu0 0.0
  %1023 = vmatprep.subr.mxu0 0.0
  %1024 = vmatpush2.xpose.msra.mxu0 0.0
  %1025 = vmatprep.subr.mxu0 0.0
  %1026 = vmatpush2.xpose.msra.mxu0 0.0
  %1027 = vmatprep.subr.mxu0 0.0
  %1028 = vmatpush2.xpose.msra.mxu0 0.0
  %1029 = vmatprep.subr.mxu0 0.0
  %1030 = vmatpush2.xpose.msra.mxu0 0.0
  %1031 = vmatprep.subr.mxu0 0.0
  %1032 = vmatpush2.xpose.msra.mxu0 0.0
  %1033 = vmatprep.subr.mxu0 0.0
  %1034 = vmatpush2.xpose.msra.mxu0 0.0
  %1035 = vmatprep.subr.mxu0 0.0
  %1036 = vmatpush2.xpose.msra.mxu0 0.0
  %1037 = vmatprep.subr.mxu0 0.0
  %1038 = vmatpush2.xpose.msra.mxu0 0.0
  %1039 = vmatprep.subr.mxu0 0.0
  %1040 = vmatpush2.xpose.msra.mxu0 0.0
  %1041 = vmatprep.subr.mxu0 0.0
  %1042 = vmatpush2.xpose.msra.mxu0 0.0
  %1043 = vmatprep.subr.mxu0 0.0
  %1044 = vmatpush2.xpose.msra.mxu0 0.0
  %1045 = vmatprep.subr.mxu0 0.0
  %1046 = vmatpush2.xpose.msra.mxu0 0.0
  %1047 = vmatprep.subr.mxu0 0.0
  %1048 = vmatpush2.xpose.msra.mxu0 0.0
  %1049 = vmatprep.subr.mxu0 0.0
  %1050 = vmatpush2.xpose.msra.mxu0 0.0
  %1051 = vmatprep.mubr.f32.mxu0 0.0
  %1052 = vmatmul.mubr.f32.gmra.mxu0 %v983
  %v1053 = vpop.f32.mrf.mxu0
  %v1054 = vadd.f32 0.0, %v1053
  %v1055 = vpop.f32.mrf.mxu0
  %1056 = vdwg.mxu0
  %v1057 = vsel %vm889, -1e+20, %v1054
  %v1058 = vsel %vm126, %v1057, -inf
  %1059 = vmax.xlane.f32.xlu0 %v1058
  %v1060 = vpop.xlane.xlu0 %1059
  %v1061 = vsub.f32 %v1057, %v1060
  %v1062 = vmul.f32 %v1061, 1.442695
  %v1063 = vpow.pop %v1062
  %v1064 = vsel %vm126, %v1063, 0.0
  %1065 = vadd.xlane.f32.xlu0 %v1064
  %v1066 = vpop.xlane.xlu0 %1065
  %1067 = vrot.lane.b32.xlu0 %v118, 56
  %v1068 = vpop.permute.xlu0 %1067
  %v1071 = vsel %vm126, %v1063, 0
  %1073 = vmatprep.subr.mxu0 0.0
  %1074 = vmatpush1.msra.mxu0 0.0
  %1075 = vmatprep.subr.mxu0 0.0
  %1076 = vmatpush1.msra.mxu0 0.0
  %1077 = vmatprep.subr.mxu0 0.0
  %1078 = vmatpush1.msra.mxu0 0.0
  %1079 = vmatprep.subr.mxu0 0.0
  %1080 = vmatpush1.msra.mxu0 0.0
  %1081 = vmatprep.subr.mxu0 0.0
  %1082 = vmatpush1.msra.mxu0 0.0
  %1083 = vmatprep.subr.mxu0 0.0
  %1084 = vmatpush1.msra.mxu0 0.0
  %1085 = vmatprep.subr.mxu0 0.0
  %1086 = vmatpush1.msra.mxu0 0.0
  %1087 = vmatprep.subr.mxu0 0.0
  %1088 = vmatpush1.msra.mxu0 0.0
  %1089 = vmatprep.subr.mxu0 0.0
  %1090 = vmatpush1.msra.mxu0 0.0
  %1091 = vmatprep.subr.mxu0 0.0
  %1092 = vmatpush1.msra.mxu0 0.0
  %1093 = vmatprep.subr.mxu0 0.0
  %1094 = vmatpush1.msra.mxu0 0.0
  %1095 = vmatprep.subr.mxu0 0.0
  %1096 = vmatpush1.msra.mxu0 0.0
  %1097 = vmatprep.subr.mxu0 0.0
  %1098 = vmatpush1.msra.mxu0 0.0
  %1099 = vmatprep.subr.mxu0 0.0
  %1100 = vmatpush1.msra.mxu0 0.0
  %1101 = vmatprep.subr.mxu0 0.0
  %1102 = vmatpush1.msra.mxu0 0.0
  %1103 = vmatprep.subr.mxu0 0.0
  %1104 = vmatpush1.msra.mxu0 %v1068
  %1105 = vmatprep.subr.mxu0 0.0
  %1106 = vmatpush2.msra.mxu0 0.0
  %1107 = vmatprep.subr.mxu0 0.0
  %1108 = vmatpush2.msra.mxu0 0.0
  %1109 = vmatprep.subr.mxu0 0.0
  %1110 = vmatpush2.msra.mxu0 0.0
  %1111 = vmatprep.subr.mxu0 0.0
  %1112 = vmatpush2.msra.mxu0 0.0
  %1113 = vmatprep.subr.mxu0 0.0
  %1114 = vmatpush2.msra.mxu0 0.0
  %1115 = vmatprep.subr.mxu0 0.0
  %1116 = vmatpush2.msra.mxu0 0.0
  %1117 = vmatprep.subr.mxu0 0.0
  %1118 = vmatpush2.msra.mxu0 0.0
  %1119 = vmatprep.subr.mxu0 0.0
  %1120 = vmatpush2.msra.mxu0 0.0
  %1121 = vmatprep.subr.mxu0 0.0
  %1122 = vmatpush2.msra.mxu0 0.0
  %1123 = vmatprep.subr.mxu0 0.0
  %1124 = vmatpush2.msra.mxu0 0.0
  %1125 = vmatprep.subr.mxu0 0.0
  %1126 = vmatpush2.msra.mxu0 0.0
  %1127 = vmatprep.subr.mxu0 0.0
  %1128 = vmatpush2.msra.mxu0 0.0
  %1129 = vmatprep.subr.mxu0 0.0
  %1130 = vmatpush2.msra.mxu0 0.0
  %1131 = vmatprep.subr.mxu0 0.0
  %1132 = vmatpush2.msra.mxu0 0.0
  %1133 = vmatprep.subr.mxu0 0.0
  %1134 = vmatpush2.msra.mxu0 0.0
  %1135 = vmatprep.subr.mxu0 0.0
  %1136 = vmatpush2.msra.mxu0 0.0
  %1137 = vmatprep.mubr.f32.mxu0 0.0
  %1138 = vmatmul.mubr.f32.gmra.mxu0 %v1071
  %v1139 = vpop.f32.mrf.mxu0
  %v1140 = vadd.f32 0.0, %v1139
  %v1141 = vpop.f32.mrf.mxu0
  %1142 = vdwg.mxu0
  %v1143 = vrcp.pop %v1066
  %v1144 = vmul.f32 %v1140, %v1143
  %1146 = vrot.lane.b32.xlu0 %v1144, 8
  %v1147 = vpop.permute.xlu0 %1146
  %1149 = vst.msk [vmem:[#allocation2 + $0x8] sm:$0xff] %vm462, %v1147
  %1150 = vrot.lane.b32.xlu0 %v810, 112
  %v1151 = vpop.permute.xlu0 %1150
  %1152 = vrot.lane.b32.xlu0 %v118, 80
  %v1153 = vpop.permute.xlu0 %1152
  %v1154 = vsel %vm126, %v1151, 0
  %v1156 = vsel %vm126, %v1153, 0
  %1158 = vmatprep.subr.mxu0 0.0
  %1159 = vmatpush1.xpose.msra.mxu0 0.0
  %1160 = vmatprep.subr.mxu0 0.0
  %1161 = vmatpush1.xpose.msra.mxu0 0.0
  %1162 = vmatprep.subr.mxu0 0.0
  %1163 = vmatpush1.xpose.msra.mxu0 0.0
  %1164 = vmatprep.subr.mxu0 0.0
  %1165 = vmatpush1.xpose.msra.mxu0 0.0
  %1166 = vmatprep.subr.mxu0 0.0
  %1167 = vmatpush1.xpose.msra.mxu0 0.0
  %1168 = vmatprep.subr.mxu0 0.0
  %1169 = vmatpush1.xpose.msra.mxu0 0.0
  %1170 = vmatprep.subr.mxu0 0.0
  %1171 = vmatpush1.xpose.msra.mxu0 0.0
  %1172 = vmatprep.subr.mxu0 0.0
  %1173 = vmatpush1.xpose.msra.mxu0 0.0
  %1174 = vmatprep.subr.mxu0 0.0
  %1175 = vmatpush1.xpose.msra.mxu0 0.0
  %1176 = vmatprep.subr.mxu0 0.0
  %1177 = vmatpush1.xpose.msra.mxu0 0.0
  %1178 = vmatprep.subr.mxu0 0.0
  %1179 = vmatpush1.xpose.msra.mxu0 0.0
  %1180 = vmatprep.subr.mxu0 0.0
  %1181 = vmatpush1.xpose.msra.mxu0 0.0
  %1182 = vmatprep.subr.mxu0 0.0
  %1183 = vmatpush1.xpose.msra.mxu0 0.0
  %1184 = vmatprep.subr.mxu0 0.0
  %1185 = vmatpush1.xpose.msra.mxu0 0.0
  %1186 = vmatprep.subr.mxu0 0.0
  %1187 = vmatpush1.xpose.msra.mxu0 0.0
  %1188 = vmatprep.subr.mxu0 0.0
  %1189 = vmatpush1.xpose.msra.mxu0 %v1156
  %1190 = vmatprep.subr.mxu0 0.0
  %1191 = vmatpush2.xpose.msra.mxu0 0.0
  %1192 = vmatprep.subr.mxu0 0.0
  %1193 = vmatpush2.xpose.msra.mxu0 0.0
  %1194 = vmatprep.subr.mxu0 0.0
  %1195 = vmatpush2.xpose.msra.mxu0 0.0
  %1196 = vmatprep.subr.mxu0 0.0
  %1197 = vmatpush2.xpose.msra.mxu0 0.0
  %1198 = vmatprep.subr.mxu0 0.0
  %1199 = vmatpush2.xpose.msra.mxu0 0.0
  %1200 = vmatprep.subr.mxu0 0.0
  %1201 = vmatpush2.xpose.msra.mxu0 0.0
  %1202 = vmatprep.subr.mxu0 0.0
  %1203 = vmatpush2.xpose.msra.mxu0 0.0
  %1204 = vmatprep.subr.mxu0 0.0
  %1205 = vmatpush2.xpose.msra.mxu0 0.0
  %1206 = vmatprep.subr.mxu0 0.0
  %1207 = vmatpush2.xpose.msra.mxu0 0.0
  %1208 = vmatprep.subr.mxu0 0.0
  %1209 = vmatpush2.xpose.msra.mxu0 0.0
  %1210 = vmatprep.subr.mxu0 0.0
  %1211 = vmatpush2.xpose.msra.mxu0 0.0
  %1212 = vmatprep.subr.mxu0 0.0
  %1213 = vmatpush2.xpose.msra.mxu0 0.0
  %1214 = vmatprep.subr.mxu0 0.0
  %1215 = vmatpush2.xpose.msra.mxu0 0.0
  %1216 = vmatprep.subr.mxu0 0.0
  %1217 = vmatpush2.xpose.msra.mxu0 0.0
  %1218 = vmatprep.subr.mxu0 0.0
  %1219 = vmatpush2.xpose.msra.mxu0 0.0
  %1220 = vmatprep.subr.mxu0 0.0
  %1221 = vmatpush2.xpose.msra.mxu0 0.0
  %1222 = vmatprep.mubr.f32.mxu0 0.0
  %1223 = vmatmul.mubr.f32.gmra.mxu0 %v1154
  %v1224 = vpop.f32.mrf.mxu0
  %v1225 = vadd.f32 0.0, %v1224
  %v1226 = vpop.f32.mrf.mxu0
  %1227 = vdwg.mxu0
  %v1228 = vsel %vm889, -1e+20, %v1225
  %v1229 = vsel %vm126, %v1228, -inf
  %1230 = vmax.xlane.f32.xlu0 %v1229
  %v1231 = vpop.xlane.xlu0 %1230
  %v1232 = vsub.f32 %v1228, %v1231
  %v1233 = vmul.f32 %v1232, 1.442695
  %v1234 = vpow.pop %v1233
  %v1235 = vsel %vm126, %v1234, 0.0
  %1236 = vadd.xlane.f32.xlu0 %v1235
  %v1237 = vpop.xlane.xlu0 %1236
  %1238 = vrot.lane.b32.xlu0 %v118, 48
  %v1239 = vpop.permute.xlu0 %1238
  %v1242 = vsel %vm126, %v1234, 0
  %1244 = vmatprep.subr.mxu0 0.0
  %1245 = vmatpush1.msra.mxu0 0.0
  %1246 = vmatprep.subr.mxu0 0.0
  %1247 = vmatpush1.msra.mxu0 0.0
  %1248 = vmatprep.subr.mxu0 0.0
  %1249 = vmatpush1.msra.mxu0 0.0
  %1250 = vmatprep.subr.mxu0 0.0
  %1251 = vmatpush1.msra.mxu0 0.0
  %1252 = vmatprep.subr.mxu0 0.0
  %1253 = vmatpush1.msra.mxu0 0.0
  %1254 = vmatprep.subr.mxu0 0.0
  %1255 = vmatpush1.msra.mxu0 0.0
  %1256 = vmatprep.subr.mxu0 0.0
  %1257 = vmatpush1.msra.mxu0 0.0
  %1258 = vmatprep.subr.mxu0 0.0
  %1259 = vmatpush1.msra.mxu0 0.0
  %1260 = vmatprep.subr.mxu0 0.0
  %1261 = vmatpush1.msra.mxu0 0.0
  %1262 = vmatprep.subr.mxu0 0.0
  %1263 = vmatpush1.msra.mxu0 0.0
  %1264 = vmatprep.subr.mxu0 0.0
  %1265 = vmatpush1.msra.mxu0 0.0
  %1266 = vmatprep.subr.mxu0 0.0
  %1267 = vmatpush1.msra.mxu0 0.0
  %1268 = vmatprep.subr.mxu0 0.0
  %1269 = vmatpush1.msra.mxu0 0.0
  %1270 = vmatprep.subr.mxu0 0.0
  %1271 = vmatpush1.msra.mxu0 0.0
  %1272 = vmatprep.subr.mxu0 0.0
  %1273 = vmatpush1.msra.mxu0 0.0
  %1274 = vmatprep.subr.mxu0 0.0
  %1275 = vmatpush1.msra.mxu0 %v1239
  %1276 = vmatprep.subr.mxu0 0.0
  %1277 = vmatpush2.msra.mxu0 0.0
  %1278 = vmatprep.subr.mxu0 0.0
  %1279 = vmatpush2.msra.mxu0 0.0
  %1280 = vmatprep.subr.mxu0 0.0
  %1281 = vmatpush2.msra.mxu0 0.0
  %1282 = vmatprep.subr.mxu0 0.0
  %1283 = vmatpush2.msra.mxu0 0.0
  %1284 = vmatprep.subr.mxu0 0.0
  %1285 = vmatpush2.msra.mxu0 0.0
  %1286 = vmatprep.subr.mxu0 0.0
  %1287 = vmatpush2.msra.mxu0 0.0
  %1288 = vmatprep.subr.mxu0 0.0
  %1289 = vmatpush2.msra.mxu0 0.0
  %1290 = vmatprep.subr.mxu0 0.0
  %1291 = vmatpush2.msra.mxu0 0.0
  %1292 = vmatprep.subr.mxu0 0.0
  %1293 = vmatpush2.msra.mxu0 0.0
  %1294 = vmatprep.subr.mxu0 0.0
  %1295 = vmatpush2.msra.mxu0 0.0
  %1296 = vmatprep.subr.mxu0 0.0
  %1297 = vmatpush2.msra.mxu0 0.0
  %1298 = vmatprep.subr.mxu0 0.0
  %1299 = vmatpush2.msra.mxu0 0.0
  %1300 = vmatprep.subr.mxu0 0.0
  %1301 = vmatpush2.msra.mxu0 0.0
  %1302 = vmatprep.subr.mxu0 0.0
  %1303 = vmatpush2.msra.mxu0 0.0
  %1304 = vmatprep.subr.mxu0 0.0
  %1305 = vmatpush2.msra.mxu0 0.0
  %1306 = vmatprep.subr.mxu0 0.0
  %1307 = vmatpush2.msra.mxu0 0.0
  %1308 = vmatprep.mubr.f32.mxu0 0.0
  %1309 = vmatmul.mubr.f32.gmra.mxu0 %v1242
  %v1310 = vpop.f32.mrf.mxu0
  %v1311 = vadd.f32 0.0, %v1310
  %v1312 = vpop.f32.mrf.mxu0
  %1313 = vdwg.mxu0
  %v1314 = vrcp.pop %v1237
  %v1315 = vmul.f32 %v1311, %v1314
  %1317 = vrot.lane.b32.xlu0 %v1315, 16
  %v1318 = vpop.permute.xlu0 %1317
  %1320 = vst.msk [vmem:[#allocation2 + $0x8] sm:$0xff] %vm634, %v1318
  %1321 = vrot.lane.b32.xlu0 %v810, 104
  %v1322 = vpop.permute.xlu0 %1321
  %1323 = vrot.lane.b32.xlu0 %v118, 72
  %v1324 = vpop.permute.xlu0 %1323
  %v1325 = vsel %vm126, %v1322, 0
  %v1327 = vsel %vm126, %v1324, 0
  %1329 = vmatprep.subr.mxu0 0.0
  %1330 = vmatpush1.xpose.msra.mxu0 0.0
  %1331 = vmatprep.subr.mxu0 0.0
  %1332 = vmatpush1.xpose.msra.mxu0 0.0
  %1333 = vmatprep.subr.mxu0 0.0
  %1334 = vmatpush1.xpose.msra.mxu0 0.0
  %1335 = vmatprep.subr.mxu0 0.0
  %1336 = vmatpush1.xpose.msra.mxu0 0.0
  %1337 = vmatprep.subr.mxu0 0.0
  %1338 = vmatpush1.xpose.msra.mxu0 0.0
  %1339 = vmatprep.subr.mxu0 0.0
  %1340 = vmatpush1.xpose.msra.mxu0 0.0
  %1341 = vmatprep.subr.mxu0 0.0
  %1342 = vmatpush1.xpose.msra.mxu0 0.0
  %1343 = vmatprep.subr.mxu0 0.0
  %1344 = vmatpush1.xpose.msra.mxu0 0.0
  %1345 = vmatprep.subr.mxu0 0.0
  %1346 = vmatpush1.xpose.msra.mxu0 0.0
  %1347 = vmatprep.subr.mxu0 0.0
  %1348 = vmatpush1.xpose.msra.mxu0 0.0
  %1349 = vmatprep.subr.mxu0 0.0
  %1350 = vmatpush1.xpose.msra.mxu0 0.0
  %1351 = vmatprep.subr.mxu0 0.0
  %1352 = vmatpush1.xpose.msra.mxu0 0.0
  %1353 = vmatprep.subr.mxu0 0.0
  %1354 = vmatpush1.xpose.msra.mxu0 0.0
  %1355 = vmatprep.subr.mxu0 0.0
  %1356 = vmatpush1.xpose.msra.mxu0 0.0
  %1357 = vmatprep.subr.mxu0 0.0
  %1358 = vmatpush1.xpose.msra.mxu0 0.0
  %1359 = vmatprep.subr.mxu0 0.0
  %1360 = vmatpush1.xpose.msra.mxu0 %v1327
  %1361 = vmatprep.subr.mxu0 0.0
  %1362 = vmatpush2.xpose.msra.mxu0 0.0
  %1363 = vmatprep.subr.mxu0 0.0
  %1364 = vmatpush2.xpose.msra.mxu0 0.0
  %1365 = vmatprep.subr.mxu0 0.0
  %1366 = vmatpush2.xpose.msra.mxu0 0.0
  %1367 = vmatprep.subr.mxu0 0.0
  %1368 = vmatpush2.xpose.msra.mxu0 0.0
  %1369 = vmatprep.subr.mxu0 0.0
  %1370 = vmatpush2.xpose.msra.mxu0 0.0
  %1371 = vmatprep.subr.mxu0 0.0
  %1372 = vmatpush2.xpose.msra.mxu0 0.0
  %1373 = vmatprep.subr.mxu0 0.0
  %1374 = vmatpush2.xpose.msra.mxu0 0.0
  %1375 = vmatprep.subr.mxu0 0.0
  %1376 = vmatpush2.xpose.msra.mxu0 0.0
  %1377 = vmatprep.subr.mxu0 0.0
  %1378 = vmatpush2.xpose.msra.mxu0 0.0
  %1379 = vmatprep.subr.mxu0 0.0
  %1380 = vmatpush2.xpose.msra.mxu0 0.0
  %1381 = vmatprep.subr.mxu0 0.0
  %1382 = vmatpush2.xpose.msra.mxu0 0.0
  %1383 = vmatprep.subr.mxu0 0.0
  %1384 = vmatpush2.xpose.msra.mxu0 0.0
  %1385 = vmatprep.subr.mxu0 0.0
  %1386 = vmatpush2.xpose.msra.mxu0 0.0
  %1387 = vmatprep.subr.mxu0 0.0
  %1388 = vmatpush2.xpose.msra.mxu0 0.0
  %1389 = vmatprep.subr.mxu0 0.0
  %1390 = vmatpush2.xpose.msra.mxu0 0.0
  %1391 = vmatprep.subr.mxu0 0.0
  %1392 = vmatpush2.xpose.msra.mxu0 0.0
  %1393 = vmatprep.mubr.f32.mxu0 0.0
  %1394 = vmatmul.mubr.f32.gmra.mxu0 %v1325
  %v1395 = vpop.f32.mrf.mxu0
  %v1396 = vadd.f32 0.0, %v1395
  %v1397 = vpop.f32.mrf.mxu0
  %1398 = vdwg.mxu0
  %v1399 = vsel %vm889, -1e+20, %v1396
  %v1400 = vsel %vm126, %v1399, -inf
  %1401 = vmax.xlane.f32.xlu0 %v1400
  %v1402 = vpop.xlane.xlu0 %1401
  %v1403 = vsub.f32 %v1399, %v1402
  %v1404 = vmul.f32 %v1403, 1.442695
  %v1405 = vpow.pop %v1404
  %v1406 = vsel %vm126, %v1405, 0.0
  %1407 = vadd.xlane.f32.xlu0 %v1406
  %v1408 = vpop.xlane.xlu0 %1407
  %1409 = vrot.lane.b32.xlu0 %v118, 40
  %v1410 = vpop.permute.xlu0 %1409
  %v1413 = vsel %vm126, %v1405, 0
  %1415 = vmatprep.subr.mxu0 0.0
  %1416 = vmatpush1.msra.mxu0 0.0
  %1417 = vmatprep.subr.mxu0 0.0
  %1418 = vmatpush1.msra.mxu0 0.0
  %1419 = vmatprep.subr.mxu0 0.0
  %1420 = vmatpush1.msra.mxu0 0.0
  %1421 = vmatprep.subr.mxu0 0.0
  %1422 = vmatpush1.msra.mxu0 0.0
  %1423 = vmatprep.subr.mxu0 0.0
  %1424 = vmatpush1.msra.mxu0 0.0
  %1425 = vmatprep.subr.mxu0 0.0
  %1426 = vmatpush1.msra.mxu0 0.0
  %1427 = vmatprep.subr.mxu0 0.0
  %1428 = vmatpush1.msra.mxu0 0.0
  %1429 = vmatprep.subr.mxu0 0.0
  %1430 = vmatpush1.msra.mxu0 0.0
  %1431 = vmatprep.subr.mxu0 0.0
  %1432 = vmatpush1.msra.mxu0 0.0
  %1433 = vmatprep.subr.mxu0 0.0
  %1434 = vmatpush1.msra.mxu0 0.0
  %1435 = vmatprep.subr.mxu0 0.0
  %1436 = vmatpush1.msra.mxu0 0.0
  %1437 = vmatprep.subr.mxu0 0.0
  %1438 = vmatpush1.msra.mxu0 0.0
  %1439 = vmatprep.subr.mxu0 0.0
  %1440 = vmatpush1.msra.mxu0 0.0
  %1441 = vmatprep.subr.mxu0 0.0
  %1442 = vmatpush1.msra.mxu0 0.0
  %1443 = vmatprep.subr.mxu0 0.0
  %1444 = vmatpush1.msra.mxu0 0.0
  %1445 = vmatprep.subr.mxu0 0.0
  %1446 = vmatpush1.msra.mxu0 %v1410
  %1447 = vmatprep.subr.mxu0 0.0
  %1448 = vmatpush2.msra.mxu0 0.0
  %1449 = vmatprep.subr.mxu0 0.0
  %1450 = vmatpush2.msra.mxu0 0.0
  %1451 = vmatprep.subr.mxu0 0.0
  %1452 = vmatpush2.msra.mxu0 0.0
  %1453 = vmatprep.subr.mxu0 0.0
  %1454 = vmatpush2.msra.mxu0 0.0
  %1455 = vmatprep.subr.mxu0 0.0
  %1456 = vmatpush2.msra.mxu0 0.0
  %1457 = vmatprep.subr.mxu0 0.0
  %1458 = vmatpush2.msra.mxu0 0.0
  %1459 = vmatprep.subr.mxu0 0.0
  %1460 = vmatpush2.msra.mxu0 0.0
  %1461 = vmatprep.subr.mxu0 0.0
  %1462 = vmatpush2.msra.mxu0 0.0
  %1463 = vmatprep.subr.mxu0 0.0
  %1464 = vmatpush2.msra.mxu0 0.0
  %1465 = vmatprep.subr.mxu0 0.0
  %1466 = vmatpush2.msra.mxu0 0.0
  %1467 = vmatprep.subr.mxu0 0.0
  %1468 = vmatpush2.msra.mxu0 0.0
  %1469 = vmatprep.subr.mxu0 0.0
  %1470 = vmatpush2.msra.mxu0 0.0
  %1471 = vmatprep.subr.mxu0 0.0
  %1472 = vmatpush2.msra.mxu0 0.0
  %1473 = vmatprep.subr.mxu0 0.0
  %1474 = vmatpush2.msra.mxu0 0.0
  %1475 = vmatprep.subr.mxu0 0.0
  %1476 = vmatpush2.msra.mxu0 0.0
  %1477 = vmatprep.subr.mxu0 0.0
  %1478 = vmatpush2.msra.mxu0 0.0
  %1479 = vmatprep.mubr.f32.mxu0 0.0
  %1480 = vmatmul.mubr.f32.gmra.mxu0 %v1413
  %v1481 = vpop.f32.mrf.mxu0
  %v1482 = vadd.f32 0.0, %v1481
  %v1483 = vpop.f32.mrf.mxu0
  %1484 = vdwg.mxu0
  %v1485 = vrcp.pop %v1408
  %v1486 = vmul.f32 %v1482, %v1485
  %1488 = vrot.lane.b32.xlu0 %v1486, 24
  %v1489 = vpop.permute.xlu0 %1488
  %1491 = vst.msk [vmem:[#allocation2 + $0x8] sm:$0xff] %vm806, %v1489
  %v1492 = vld [vmem:[#allocation2] sm:$0xff]
  %v1493 = vld [vmem:[#allocation2 + $0x8] sm:$0xff]
  %v1494 = vadd.f32 %v1492, %v57
  %v1495 = vadd.f32 %v1493, %v58
  %v1496 = vld [vmem:[%s7] sm:$0x1]
  %v1497 = vld [vmem:[%s8] sm:$0x1]
  %v1498 = vsel %vm76, %v1494, 0.0
  %1499 = vadd.xlane.f32.xlu0 %v1498
  %v1500 = vpop.xlane.xlu0 %1499
  %v1501 = vsel %vm76, %v1495, 0.0
  %1502 = vadd.xlane.f32.xlu0 %v1501
  %v1503 = vpop.xlane.xlu0 %1502
  %v1504 = vrcp.pop 32.0
  %v1505 = vmul.f32 %v1500, %v1504
  %v1506 = vmul.f32 %v1503, %v1504
  %v1507 = vsub.f32 %v1494, %v1505
  %v1508 = vsub.f32 %v1495, %v1506
  %v1509 = vmul.f32 %v1507, %v1507
  %v1510 = vmul.f32 %v1508, %v1508
  %v1511 = vsel %vm76, %v1509, 0.0
  %1512 = vadd.xlane.f32.xlu0 %v1511
  %v1513 = vpop.xlane.xlu0 %1512
  %v1514 = vsel %vm76, %v1510, 0.0
  %1515 = vadd.xlane.f32.xlu0 %v1514
  %v1516 = vpop.xlane.xlu0 %1515
  %v1517 = vmul.f32 %v1513, %v1504
  %v1518 = vmul.f32 %v1516, %v1504
  %v1519 = vadd.f32 %v1517, 1e-05
  %v1520 = vadd.f32 %v1518, 1e-05
  %v1521 = vrsqrt.pop %v1519
  %v1522 = vrsqrt.pop %v1520
  %v1523 = vmul.f32 %v1507, %v1521
  %v1524 = vmul.f32 %v1508, %v1522
  %v1526 = vlaneseq
  %v1527 = vshrl.u32 %v1526, 7
  %v1528 = vsub.s32 0, %v1527
  %v1529 = vrot.slane %v1496, %v1528
  %v1531 = vmul.f32 %v1523, %v1529
  %v1532 = vmul.f32 %v1524, %v1529
  %v1534 = vlaneseq
  %v1535 = vshrl.u32 %v1534, 7
  %v1536 = vsub.s32 0, %v1535
  %v1537 = vrot.slane %v1497, %v1536
  %v1539 = vadd.f32 %v1531, %v1537
  %v1540 = vadd.f32 %v1532, %v1537
  %v1541 = vld [vmem:[%s1] sm:$0xff]
  %v1542 = vld [vmem:[%s1 + $0x8] sm:$0xff]
  %v1543 = vpack.c.bf16 %v1540, %v1539
  %v1544 = vld [vmem:[%s5] sm:$0xf]
  %v1545 = vld [vmem:[%s5 + $0x4] sm:$0xf]
  %v1546 = vld [vmem:[%s5 + $0x8] sm:$0xf]
  %v1547 = vld [vmem:[%s5 + $0xc] sm:$0xf]
  %v1552 = vunpack.c.l.b16 %v1544
  %v1553 = vunpack.c.l.b16 %v1545
  %v1554 = vunpack.c.l.b16 %v1546
  %v1555 = vunpack.c.l.b16 %v1547
  %v1556 = vpack.c.b16 %v1553, %v1552
  %v1557 = vpack.c.b16 %v1555, %v1554
  %v1561 = vsel %vm76, %v1543, 0
  %1563 = vmatprep.subr.bf16.mxu0 0
  %1564 = vmatpush1.bf16.msra.mxu0 0
  %1565 = vmatprep.subr.bf16.mxu0 0
  %1566 = vmatpush1.bf16.msra.mxu0 0
  %1567 = vmatprep.subr.bf16.mxu0 0
  %1568 = vmatpush1.bf16.msra.mxu0 0
  %1569 = vmatprep.subr.bf16.mxu0 0
  %1570 = vmatpush1.bf16.msra.mxu0 0
  %1571 = vmatprep.subr.bf16.mxu0 0
  %1572 = vmatpush1.bf16.msra.mxu0 0
  %1573 = vmatprep.subr.bf16.mxu0 0
  %1574 = vmatpush1.bf16.msra.mxu0 0
  %1575 = vmatprep.subr.bf16.mxu0 0
  %1576 = vmatpush1.bf16.msra.mxu0 %v1557
  %1577 = vmatprep.subr.bf16.mxu0 0
  %1578 = vmatpush1.bf16.msra.mxu0 %v1556
  %1579 = vmatprep.subr.bf16.mxu0 0
  %1580 = vmatpush2.bf16.msra.mxu0 0
  %1581 = vmatprep.subr.bf16.mxu0 0
  %1582 = vmatpush2.bf16.msra.mxu0 0
  %1583 = vmatprep.subr.bf16.mxu0 0
  %1584 = vmatpush2.bf16.msra.mxu0 0
  %1585 = vmatprep.subr.bf16.mxu0 0
  %1586 = vmatpush2.bf16.msra.mxu0 0
  %1587 = vmatprep.subr.bf16.mxu0 0
  %1588 = vmatpush2.bf16.msra.mxu0 0
  %1589 = vmatprep.subr.bf16.mxu0 0
  %1590 = vmatpush2.bf16.msra.mxu0 0
  %1591 = vmatprep.subr.bf16.mxu0 0
  %1592 = vmatpush2.bf16.msra.mxu0 0
  %1593 = vmatprep.subr.bf16.mxu0 0
  %1594 = vmatpush2.bf16.msra.mxu0 0
  %1595 = vmatprep.mubr.bf16.mxu0 0
  %1596 = vmatmul.mubr.bf16.gmra.mxu0 %v1561
  %v1597 = vpop.f32.mrf.mxu0
  %v1598 = vadd.f32 0.0, %v1597
  %v1599 = vpop.f32.mrf.mxu0
  %v1600 = vpop.f32.mrf.mxu0
  %v1601 = vadd.f32 0.0, %v1600
  %v1602 = vpop.f32.mrf.mxu0
  %1603 = vdwg.mxu0
  %v1604 = vpack.c.bf16 %v1542, %v1541
  %v1605 = vld [vmem:[%s6] sm:$0xf]
  %v1606 = vld [vmem:[%s6 + $0x4] sm:$0xf]
  %v1607 = vld [vmem:[%s6 + $0x8] sm:$0xf]
  %v1608 = vld [vmem:[%s6 + $0xc] sm:$0xf]
  %v1613 = vunpack.c.l.b16 %v1605
  %v1614 = vunpack.c.l.b16 %v1606
  %v1615 = vunpack.c.l.b16 %v1607
  %v1616 = vunpack.c.l.b16 %v1608
  %v1617 = vpack.c.b16 %v1614, %v1613
  %v1618 = vpack.c.b16 %v1616, %v1615
  %v1622 = vsel %vm76, %v1604, 0
  %1624 = vmatprep.subr.bf16.mxu0 0
  %1625 = vmatpush1.bf16.msra.mxu0 0
  %1626 = vmatprep.subr.bf16.mxu0 0
  %1627 = vmatpush1.bf16.msra.mxu0 0
  %1628 = vmatprep.subr.bf16.mxu0 0
  %1629 = vmatpush1.bf16.msra.mxu0 0
  %1630 = vmatprep.subr.bf16.mxu0 0
  %1631 = vmatpush1.bf16.msra.mxu0 0
  %1632 = vmatprep.subr.bf16.mxu0 0
  %1633 = vmatpush1.bf16.msra.mxu0 0
  %1634 = vmatprep.subr.bf16.mxu0 0
  %1635 = vmatpush1.bf16.msra.mxu0 0
  %1636 = vmatprep.subr.bf16.mxu0 0
  %1637 = vmatpush1.bf16.msra.mxu0 %v1618
  %1638 = vmatprep.subr.bf16.mxu0 0
  %1639 = vmatpush1.bf16.msra.mxu0 %v1617
  %1640 = vmatprep.subr.bf16.mxu0 0
  %1641 = vmatpush2.bf16.msra.mxu0 0
  %1642 = vmatprep.subr.bf16.mxu0 0
  %1643 = vmatpush2.bf16.msra.mxu0 0
  %1644 = vmatprep.subr.bf16.mxu0 0
  %1645 = vmatpush2.bf16.msra.mxu0 0
  %1646 = vmatprep.subr.bf16.mxu0 0
  %1647 = vmatpush2.bf16.msra.mxu0 0
  %1648 = vmatprep.subr.bf16.mxu0 0
  %1649 = vmatpush2.bf16.msra.mxu0 0
  %1650 = vmatprep.subr.bf16.mxu0 0
  %1651 = vmatpush2.bf16.msra.mxu0 0
  %1652 = vmatprep.subr.bf16.mxu0 0
  %1653 = vmatpush2.bf16.msra.mxu0 0
  %1654 = vmatprep.subr.bf16.mxu0 0
  %1655 = vmatpush2.bf16.msra.mxu0 0
  %1656 = vmatprep.mubr.bf16.mxu0 0
  %1657 = vmatmul.mubr.bf16.gmra.mxu0 %v1622
  %v1658 = vpop.f32.mrf.mxu0
  %v1659 = vadd.f32 0.0, %v1658
  %v1660 = vpop.f32.mrf.mxu0
  %v1661 = vpop.f32.mrf.mxu0
  %v1662 = vadd.f32 0.0, %v1661
  %v1663 = vpop.f32.mrf.mxu0
  %1664 = vdwg.mxu0
  %v1665 = vld [vmem:[%s3] sm:$0xff]
  %v1666 = vmul.f32 %v1598, 0.35355338
  %v1668 = vsel %vm126, %v1666, 0
  %v1671 = vsel %vm126, %v1659, 0
  %1673 = vmatprep.subr.mxu0 0.0
  %1674 = vmatpush1.xpose.msra.mxu0 0.0
  %1675 = vmatprep.subr.mxu0 0.0
  %1676 = vmatpush1.xpose.msra.mxu0 0.0
  %1677 = vmatprep.subr.mxu0 0.0
  %1678 = vmatpush1.xpose.msra.mxu0 0.0
  %1679 = vmatprep.subr.mxu0 0.0
  %1680 = vmatpush1.xpose.msra.mxu0 0.0
  %1681 = vmatprep.subr.mxu0 0.0
  %1682 = vmatpush1.xpose.msra.mxu0 0.0
  %1683 = vmatprep.subr.mxu0 0.0
  %1684 = vmatpush1.xpose.msra.mxu0 0.0
  %1685 = vmatprep.subr.mxu0 0.0
  %1686 = vmatpush1.xpose.msra.mxu0 0.0
  %1687 = vmatprep.subr.mxu0 0.0
  %1688 = vmatpush1.xpose.msra.mxu0 0.0
  %1689 = vmatprep.subr.mxu0 0.0
  %1690 = vmatpush1.xpose.msra.mxu0 0.0
  %1691 = vmatprep.subr.mxu0 0.0
  %1692 = vmatpush1.xpose.msra.mxu0 0.0
  %1693 = vmatprep.subr.mxu0 0.0
  %1694 = vmatpush1.xpose.msra.mxu0 0.0
  %1695 = vmatprep.subr.mxu0 0.0
  %1696 = vmatpush1.xpose.msra.mxu0 0.0
  %1697 = vmatprep.subr.mxu0 0.0
  %1698 = vmatpush1.xpose.msra.mxu0 0.0
  %1699 = vmatprep.subr.mxu0 0.0
  %1700 = vmatpush1.xpose.msra.mxu0 0.0
  %1701 = vmatprep.subr.mxu0 0.0
  %1702 = vmatpush1.xpose.msra.mxu0 0.0
  %1703 = vmatprep.subr.mxu0 0.0
  %1704 = vmatpush1.xpose.msra.mxu0 %v1671
  %1705 = vmatprep.subr.mxu0 0.0
  %1706 = vmatpush2.xpose.msra.mxu0 0.0
  %1707 = vmatprep.subr.mxu0 0.0
  %1708 = vmatpush2.xpose.msra.mxu0 0.0
  %1709 = vmatprep.subr.mxu0 0.0
  %1710 = vmatpush2.xpose.msra.mxu0 0.0
  %1711 = vmatprep.subr.mxu0 0.0
  %1712 = vmatpush2.xpose.msra.mxu0 0.0
  %1713 = vmatprep.subr.mxu0 0.0
  %1714 = vmatpush2.xpose.msra.mxu0 0.0
  %1715 = vmatprep.subr.mxu0 0.0
  %1716 = vmatpush2.xpose.msra.mxu0 0.0
  %1717 = vmatprep.subr.mxu0 0.0
  %1718 = vmatpush2.xpose.msra.mxu0 0.0
  %1719 = vmatprep.subr.mxu0 0.0
  %1720 = vmatpush2.xpose.msra.mxu0 0.0
  %1721 = vmatprep.subr.mxu0 0.0
  %1722 = vmatpush2.xpose.msra.mxu0 0.0
  %1723 = vmatprep.subr.mxu0 0.0
  %1724 = vmatpush2.xpose.msra.mxu0 0.0
  %1725 = vmatprep.subr.mxu0 0.0
  %1726 = vmatpush2.xpose.msra.mxu0 0.0
  %1727 = vmatprep.subr.mxu0 0.0
  %1728 = vmatpush2.xpose.msra.mxu0 0.0
  %1729 = vmatprep.subr.mxu0 0.0
  %1730 = vmatpush2.xpose.msra.mxu0 0.0
  %1731 = vmatprep.subr.mxu0 0.0
  %1732 = vmatpush2.xpose.msra.mxu0 0.0
  %1733 = vmatprep.subr.mxu0 0.0
  %1734 = vmatpush2.xpose.msra.mxu0 0.0
  %1735 = vmatprep.subr.mxu0 0.0
  %1736 = vmatpush2.xpose.msra.mxu0 0.0
  %1737 = vmatprep.mubr.f32.mxu0 0.0
  %1738 = vmatmul.mubr.f32.gmra.mxu0 %v1668
  %v1739 = vpop.f32.mrf.mxu0
  %v1740 = vadd.f32 0.0, %v1739
  %v1741 = vpop.f32.mrf.mxu0
  %1742 = vdwg.mxu0
  %vm1743 = vcmp.eq.f32.partialorder %v1665, 0.0
  %v1744 = vsel %vm1743, -1e+20, %v1740
  %v1745 = vsel %vm126, %v1744, -inf
  %1746 = vmax.xlane.f32.xlu0 %v1745
  %v1747 = vpop.xlane.xlu0 %1746
  %v1748 = vsub.f32 %v1744, %v1747
  %v1749 = vmul.f32 %v1748, 1.442695
  %v1750 = vpow.pop %v1749
  %v1751 = vsel %vm126, %v1750, 0.0
  %1752 = vadd.xlane.f32.xlu0 %v1751
  %v1753 = vpop.xlane.xlu0 %1752
  %1754 = vrot.lane.b32.xlu0 %v1659, 96
  %v1755 = vpop.permute.xlu0 %1754
  %v1758 = vsel %vm126, %v1750, 0
  %1760 = vmatprep.subr.mxu0 0.0
  %1761 = vmatpush1.msra.mxu0 0.0
  %1762 = vmatprep.subr.mxu0 0.0
  %1763 = vmatpush1.msra.mxu0 0.0
  %1764 = vmatprep.subr.mxu0 0.0
  %1765 = vmatpush1.msra.mxu0 0.0
  %1766 = vmatprep.subr.mxu0 0.0
  %1767 = vmatpush1.msra.mxu0 0.0
  %1768 = vmatprep.subr.mxu0 0.0
  %1769 = vmatpush1.msra.mxu0 0.0
  %1770 = vmatprep.subr.mxu0 0.0
  %1771 = vmatpush1.msra.mxu0 0.0
  %1772 = vmatprep.subr.mxu0 0.0
  %1773 = vmatpush1.msra.mxu0 0.0
  %1774 = vmatprep.subr.mxu0 0.0
  %1775 = vmatpush1.msra.mxu0 0.0
  %1776 = vmatprep.subr.mxu0 0.0
  %1777 = vmatpush1.msra.mxu0 0.0
  %1778 = vmatprep.subr.mxu0 0.0
  %1779 = vmatpush1.msra.mxu0 0.0
  %1780 = vmatprep.subr.mxu0 0.0
  %1781 = vmatpush1.msra.mxu0 0.0
  %1782 = vmatprep.subr.mxu0 0.0
  %1783 = vmatpush1.msra.mxu0 0.0
  %1784 = vmatprep.subr.mxu0 0.0
  %1785 = vmatpush1.msra.mxu0 0.0
  %1786 = vmatprep.subr.mxu0 0.0
  %1787 = vmatpush1.msra.mxu0 0.0
  %1788 = vmatprep.subr.mxu0 0.0
  %1789 = vmatpush1.msra.mxu0 0.0
  %1790 = vmatprep.subr.mxu0 0.0
  %1791 = vmatpush1.msra.mxu0 %v1755
  %1792 = vmatprep.subr.mxu0 0.0
  %1793 = vmatpush2.msra.mxu0 0.0
  %1794 = vmatprep.subr.mxu0 0.0
  %1795 = vmatpush2.msra.mxu0 0.0
  %1796 = vmatprep.subr.mxu0 0.0
  %1797 = vmatpush2.msra.mxu0 0.0
  %1798 = vmatprep.subr.mxu0 0.0
  %1799 = vmatpush2.msra.mxu0 0.0
  %1800 = vmatprep.subr.mxu0 0.0
  %1801 = vmatpush2.msra.mxu0 0.0
  %1802 = vmatprep.subr.mxu0 0.0
  %1803 = vmatpush2.msra.mxu0 0.0
  %1804 = vmatprep.subr.mxu0 0.0
  %1805 = vmatpush2.msra.mxu0 0.0
  %1806 = vmatprep.subr.mxu0 0.0
  %1807 = vmatpush2.msra.mxu0 0.0
  %1808 = vmatprep.subr.mxu0 0.0
  %1809 = vmatpush2.msra.mxu0 0.0
  %1810 = vmatprep.subr.mxu0 0.0
  %1811 = vmatpush2.msra.mxu0 0.0
  %1812 = vmatprep.subr.mxu0 0.0
  %1813 = vmatpush2.msra.mxu0 0.0
  %1814 = vmatprep.subr.mxu0 0.0
  %1815 = vmatpush2.msra.mxu0 0.0
  %1816 = vmatprep.subr.mxu0 0.0
  %1817 = vmatpush2.msra.mxu0 0.0
  %1818 = vmatprep.subr.mxu0 0.0
  %1819 = vmatpush2.msra.mxu0 0.0
  %1820 = vmatprep.subr.mxu0 0.0
  %1821 = vmatpush2.msra.mxu0 0.0
  %1822 = vmatprep.subr.mxu0 0.0
  %1823 = vmatpush2.msra.mxu0 0.0
  %1824 = vmatprep.mubr.f32.mxu0 0.0
  %1825 = vmatmul.mubr.f32.gmra.mxu0 %v1758
  %v1826 = vpop.f32.mrf.mxu0
  %v1827 = vadd.f32 0.0, %v1826
  %v1828 = vpop.f32.mrf.mxu0
  %1829 = vdwg.mxu0
  %v1830 = vrcp.pop %v1753
  %v1831 = vmul.f32 %v1827, %v1830
  %1832 = vst.msk [vmem:[#allocation2] sm:$0xff] %vm126, %v1831
  %1833 = vrot.lane.b32.xlu0 %v1666, 120
  %v1834 = vpop.permute.xlu0 %1833
  %1835 = vrot.lane.b32.xlu0 %v1659, 120
  %v1836 = vpop.permute.xlu0 %1835
  %v1837 = vsel %vm126, %v1834, 0
  %v1839 = vsel %vm126, %v1836, 0
  %1841 = vmatprep.subr.mxu0 0.0
  %1842 = vmatpush1.xpose.msra.mxu0 0.0
  %1843 = vmatprep.subr.mxu0 0.0
  %1844 = vmatpush1.xpose.msra.mxu0 0.0
  %1845 = vmatprep.subr.mxu0 0.0
  %1846 = vmatpush1.xpose.msra.mxu0 0.0
  %1847 = vmatprep.subr.mxu0 0.0
  %1848 = vmatpush1.xpose.msra.mxu0 0.0
  %1849 = vmatprep.subr.mxu0 0.0
  %1850 = vmatpush1.xpose.msra.mxu0 0.0
  %1851 = vmatprep.subr.mxu0 0.0
  %1852 = vmatpush1.xpose.msra.mxu0 0.0
  %1853 = vmatprep.subr.mxu0 0.0
  %1854 = vmatpush1.xpose.msra.mxu0 0.0
  %1855 = vmatprep.subr.mxu0 0.0
  %1856 = vmatpush1.xpose.msra.mxu0 0.0
  %1857 = vmatprep.subr.mxu0 0.0
  %1858 = vmatpush1.xpose.msra.mxu0 0.0
  %1859 = vmatprep.subr.mxu0 0.0
  %1860 = vmatpush1.xpose.msra.mxu0 0.0
  %1861 = vmatprep.subr.mxu0 0.0
  %1862 = vmatpush1.xpose.msra.mxu0 0.0
  %1863 = vmatprep.subr.mxu0 0.0
  %1864 = vmatpush1.xpose.msra.mxu0 0.0
  %1865 = vmatprep.subr.mxu0 0.0
  %1866 = vmatpush1.xpose.msra.mxu0 0.0
  %1867 = vmatprep.subr.mxu0 0.0
  %1868 = vmatpush1.xpose.msra.mxu0 0.0
  %1869 = vmatprep.subr.mxu0 0.0
  %1870 = vmatpush1.xpose.msra.mxu0 0.0
  %1871 = vmatprep.subr.mxu0 0.0
  %1872 = vmatpush1.xpose.msra.mxu0 %v1839
  %1873 = vmatprep.subr.mxu0 0.0
  %1874 = vmatpush2.xpose.msra.mxu0 0.0
  %1875 = vmatprep.subr.mxu0 0.0
  %1876 = vmatpush2.xpose.msra.mxu0 0.0
  %1877 = vmatprep.subr.mxu0 0.0
  %1878 = vmatpush2.xpose.msra.mxu0 0.0
  %1879 = vmatprep.subr.mxu0 0.0
  %1880 = vmatpush2.xpose.msra.mxu0 0.0
  %1881 = vmatprep.subr.mxu0 0.0
  %1882 = vmatpush2.xpose.msra.mxu0 0.0
  %1883 = vmatprep.subr.mxu0 0.0
  %1884 = vmatpush2.xpose.msra.mxu0 0.0
  %1885 = vmatprep.subr.mxu0 0.0
  %1886 = vmatpush2.xpose.msra.mxu0 0.0
  %1887 = vmatprep.subr.mxu0 0.0
  %1888 = vmatpush2.xpose.msra.mxu0 0.0
  %1889 = vmatprep.subr.mxu0 0.0
  %1890 = vmatpush2.xpose.msra.mxu0 0.0
  %1891 = vmatprep.subr.mxu0 0.0
  %1892 = vmatpush2.xpose.msra.mxu0 0.0
  %1893 = vmatprep.subr.mxu0 0.0
  %1894 = vmatpush2.xpose.msra.mxu0 0.0
  %1895 = vmatprep.subr.mxu0 0.0
  %1896 = vmatpush2.xpose.msra.mxu0 0.0
  %1897 = vmatprep.subr.mxu0 0.0
  %1898 = vmatpush2.xpose.msra.mxu0 0.0
  %1899 = vmatprep.subr.mxu0 0.0
  %1900 = vmatpush2.xpose.msra.mxu0 0.0
  %1901 = vmatprep.subr.mxu0 0.0
  %1902 = vmatpush2.xpose.msra.mxu0 0.0
  %1903 = vmatprep.subr.mxu0 0.0
  %1904 = vmatpush2.xpose.msra.mxu0 0.0
  %1905 = vmatprep.mubr.f32.mxu0 0.0
  %1906 = vmatmul.mubr.f32.gmra.mxu0 %v1837
  %v1907 = vpop.f32.mrf.mxu0
  %v1908 = vadd.f32 0.0, %v1907
  %v1909 = vpop.f32.mrf.mxu0
  %1910 = vdwg.mxu0
  %v1911 = vsel %vm1743, -1e+20, %v1908
  %v1912 = vsel %vm126, %v1911, -inf
  %1913 = vmax.xlane.f32.xlu0 %v1912
  %v1914 = vpop.xlane.xlu0 %1913
  %v1915 = vsub.f32 %v1911, %v1914
  %v1916 = vmul.f32 %v1915, 1.442695
  %v1917 = vpow.pop %v1916
  %v1918 = vsel %vm126, %v1917, 0.0
  %1919 = vadd.xlane.f32.xlu0 %v1918
  %v1920 = vpop.xlane.xlu0 %1919
  %1921 = vrot.lane.b32.xlu0 %v1659, 88
  %v1922 = vpop.permute.xlu0 %1921
  %v1925 = vsel %vm126, %v1917, 0
  %1927 = vmatprep.subr.mxu0 0.0
  %1928 = vmatpush1.msra.mxu0 0.0
  %1929 = vmatprep.subr.mxu0 0.0
  %1930 = vmatpush1.msra.mxu0 0.0
  %1931 = vmatprep.subr.mxu0 0.0
  %1932 = vmatpush1.msra.mxu0 0.0
  %1933 = vmatprep.subr.mxu0 0.0
  %1934 = vmatpush1.msra.mxu0 0.0
  %1935 = vmatprep.subr.mxu0 0.0
  %1936 = vmatpush1.msra.mxu0 0.0
  %1937 = vmatprep.subr.mxu0 0.0
  %1938 = vmatpush1.msra.mxu0 0.0
  %1939 = vmatprep.subr.mxu0 0.0
  %1940 = vmatpush1.msra.mxu0 0.0
  %1941 = vmatprep.subr.mxu0 0.0
  %1942 = vmatpush1.msra.mxu0 0.0
  %1943 = vmatprep.subr.mxu0 0.0
  %1944 = vmatpush1.msra.mxu0 0.0
  %1945 = vmatprep.subr.mxu0 0.0
  %1946 = vmatpush1.msra.mxu0 0.0
  %1947 = vmatprep.subr.mxu0 0.0
  %1948 = vmatpush1.msra.mxu0 0.0
  %1949 = vmatprep.subr.mxu0 0.0
  %1950 = vmatpush1.msra.mxu0 0.0
  %1951 = vmatprep.subr.mxu0 0.0
  %1952 = vmatpush1.msra.mxu0 0.0
  %1953 = vmatprep.subr.mxu0 0.0
  %1954 = vmatpush1.msra.mxu0 0.0
  %1955 = vmatprep.subr.mxu0 0.0
  %1956 = vmatpush1.msra.mxu0 0.0
  %1957 = vmatprep.subr.mxu0 0.0
  %1958 = vmatpush1.msra.mxu0 %v1922
  %1959 = vmatprep.subr.mxu0 0.0
  %1960 = vmatpush2.msra.mxu0 0.0
  %1961 = vmatprep.subr.mxu0 0.0
  %1962 = vmatpush2.msra.mxu0 0.0
  %1963 = vmatprep.subr.mxu0 0.0
  %1964 = vmatpush2.msra.mxu0 0.0
  %1965 = vmatprep.subr.mxu0 0.0
  %1966 = vmatpush2.msra.mxu0 0.0
  %1967 = vmatprep.subr.mxu0 0.0
  %1968 = vmatpush2.msra.mxu0 0.0
  %1969 = vmatprep.subr.mxu0 0.0
  %1970 = vmatpush2.msra.mxu0 0.0
  %1971 = vmatprep.subr.mxu0 0.0
  %1972 = vmatpush2.msra.mxu0 0.0
  %1973 = vmatprep.subr.mxu0 0.0
  %1974 = vmatpush2.msra.mxu0 0.0
  %1975 = vmatprep.subr.mxu0 0.0
  %1976 = vmatpush2.msra.mxu0 0.0
  %1977 = vmatprep.subr.mxu0 0.0
  %1978 = vmatpush2.msra.mxu0 0.0
  %1979 = vmatprep.subr.mxu0 0.0
  %1980 = vmatpush2.msra.mxu0 0.0
  %1981 = vmatprep.subr.mxu0 0.0
  %1982 = vmatpush2.msra.mxu0 0.0
  %1983 = vmatprep.subr.mxu0 0.0
  %1984 = vmatpush2.msra.mxu0 0.0
  %1985 = vmatprep.subr.mxu0 0.0
  %1986 = vmatpush2.msra.mxu0 0.0
  %1987 = vmatprep.subr.mxu0 0.0
  %1988 = vmatpush2.msra.mxu0 0.0
  %1989 = vmatprep.subr.mxu0 0.0
  %1990 = vmatpush2.msra.mxu0 0.0
  %1991 = vmatprep.mubr.f32.mxu0 0.0
  %1992 = vmatmul.mubr.f32.gmra.mxu0 %v1925
  %v1993 = vpop.f32.mrf.mxu0
  %v1994 = vadd.f32 0.0, %v1993
  %v1995 = vpop.f32.mrf.mxu0
  %1996 = vdwg.mxu0
  %v1997 = vrcp.pop %v1920
  %v1998 = vmul.f32 %v1994, %v1997
  %2000 = vrot.lane.b32.xlu0 %v1998, 8
  %v2001 = vpop.permute.xlu0 %2000
  %2003 = vst.msk [vmem:[#allocation2] sm:$0xff] %vm462, %v2001
  %2004 = vrot.lane.b32.xlu0 %v1666, 112
  %v2005 = vpop.permute.xlu0 %2004
  %2006 = vrot.lane.b32.xlu0 %v1659, 112
  %v2007 = vpop.permute.xlu0 %2006
  %v2008 = vsel %vm126, %v2005, 0
  %v2010 = vsel %vm126, %v2007, 0
  %2012 = vmatprep.subr.mxu0 0.0
  %2013 = vmatpush1.xpose.msra.mxu0 0.0
  %2014 = vmatprep.subr.mxu0 0.0
  %2015 = vmatpush1.xpose.msra.mxu0 0.0
  %2016 = vmatprep.subr.mxu0 0.0
  %2017 = vmatpush1.xpose.msra.mxu0 0.0
  %2018 = vmatprep.subr.mxu0 0.0
  %2019 = vmatpush1.xpose.msra.mxu0 0.0
  %2020 = vmatprep.subr.mxu0 0.0
  %2021 = vmatpush1.xpose.msra.mxu0 0.0
  %2022 = vmatprep.subr.mxu0 0.0
  %2023 = vmatpush1.xpose.msra.mxu0 0.0
  %2024 = vmatprep.subr.mxu0 0.0
  %2025 = vmatpush1.xpose.msra.mxu0 0.0
  %2026 = vmatprep.subr.mxu0 0.0
  %2027 = vmatpush1.xpose.msra.mxu0 0.0
  %2028 = vmatprep.subr.mxu0 0.0
  %2029 = vmatpush1.xpose.msra.mxu0 0.0
  %2030 = vmatprep.subr.mxu0 0.0
  %2031 = vmatpush1.xpose.msra.mxu0 0.0
  %2032 = vmatprep.subr.mxu0 0.0
  %2033 = vmatpush1.xpose.msra.mxu0 0.0
  %2034 = vmatprep.subr.mxu0 0.0
  %2035 = vmatpush1.xpose.msra.mxu0 0.0
  %2036 = vmatprep.subr.mxu0 0.0
  %2037 = vmatpush1.xpose.msra.mxu0 0.0
  %2038 = vmatprep.subr.mxu0 0.0
  %2039 = vmatpush1.xpose.msra.mxu0 0.0
  %2040 = vmatprep.subr.mxu0 0.0
  %2041 = vmatpush1.xpose.msra.mxu0 0.0
  %2042 = vmatprep.subr.mxu0 0.0
  %2043 = vmatpush1.xpose.msra.mxu0 %v2010
  %2044 = vmatprep.subr.mxu0 0.0
  %2045 = vmatpush2.xpose.msra.mxu0 0.0
  %2046 = vmatprep.subr.mxu0 0.0
  %2047 = vmatpush2.xpose.msra.mxu0 0.0
  %2048 = vmatprep.subr.mxu0 0.0
  %2049 = vmatpush2.xpose.msra.mxu0 0.0
  %2050 = vmatprep.subr.mxu0 0.0
  %2051 = vmatpush2.xpose.msra.mxu0 0.0
  %2052 = vmatprep.subr.mxu0 0.0
  %2053 = vmatpush2.xpose.msra.mxu0 0.0
  %2054 = vmatprep.subr.mxu0 0.0
  %2055 = vmatpush2.xpose.msra.mxu0 0.0
  %2056 = vmatprep.subr.mxu0 0.0
  %2057 = vmatpush2.xpose.msra.mxu0 0.0
  %2058 = vmatprep.subr.mxu0 0.0
  %2059 = vmatpush2.xpose.msra.mxu0 0.0
  %2060 = vmatprep.subr.mxu0 0.0
  %2061 = vmatpush2.xpose.msra.mxu0 0.0
  %2062 = vmatprep.subr.mxu0 0.0
  %2063 = vmatpush2.xpose.msra.mxu0 0.0
  %2064 = vmatprep.subr.mxu0 0.0
  %2065 = vmatpush2.xpose.msra.mxu0 0.0
  %2066 = vmatprep.subr.mxu0 0.0
  %2067 = vmatpush2.xpose.msra.mxu0 0.0
  %2068 = vmatprep.subr.mxu0 0.0
  %2069 = vmatpush2.xpose.msra.mxu0 0.0
  %2070 = vmatprep.subr.mxu0 0.0
  %2071 = vmatpush2.xpose.msra.mxu0 0.0
  %2072 = vmatprep.subr.mxu0 0.0
  %2073 = vmatpush2.xpose.msra.mxu0 0.0
  %2074 = vmatprep.subr.mxu0 0.0
  %2075 = vmatpush2.xpose.msra.mxu0 0.0
  %2076 = vmatprep.mubr.f32.mxu0 0.0
  %2077 = vmatmul.mubr.f32.gmra.mxu0 %v2008
  %v2078 = vpop.f32.mrf.mxu0
  %v2079 = vadd.f32 0.0, %v2078
  %v2080 = vpop.f32.mrf.mxu0
  %2081 = vdwg.mxu0
  %v2082 = vsel %vm1743, -1e+20, %v2079
  %v2083 = vsel %vm126, %v2082, -inf
  %2084 = vmax.xlane.f32.xlu0 %v2083
  %v2085 = vpop.xlane.xlu0 %2084
  %v2086 = vsub.f32 %v2082, %v2085
  %v2087 = vmul.f32 %v2086, 1.442695
  %v2088 = vpow.pop %v2087
  %v2089 = vsel %vm126, %v2088, 0.0
  %2090 = vadd.xlane.f32.xlu0 %v2089
  %v2091 = vpop.xlane.xlu0 %2090
  %2092 = vrot.lane.b32.xlu0 %v1659, 80
  %v2093 = vpop.permute.xlu0 %2092
  %v2096 = vsel %vm126, %v2088, 0
  %2098 = vmatprep.subr.mxu0 0.0
  %2099 = vmatpush1.msra.mxu0 0.0
  %2100 = vmatprep.subr.mxu0 0.0
  %2101 = vmatpush1.msra.mxu0 0.0
  %2102 = vmatprep.subr.mxu0 0.0
  %2103 = vmatpush1.msra.mxu0 0.0
  %2104 = vmatprep.subr.mxu0 0.0
  %2105 = vmatpush1.msra.mxu0 0.0
  %2106 = vmatprep.subr.mxu0 0.0
  %2107 = vmatpush1.msra.mxu0 0.0
  %2108 = vmatprep.subr.mxu0 0.0
  %2109 = vmatpush1.msra.mxu0 0.0
  %2110 = vmatprep.subr.mxu0 0.0
  %2111 = vmatpush1.msra.mxu0 0.0
  %2112 = vmatprep.subr.mxu0 0.0
  %2113 = vmatpush1.msra.mxu0 0.0
  %2114 = vmatprep.subr.mxu0 0.0
  %2115 = vmatpush1.msra.mxu0 0.0
  %2116 = vmatprep.subr.mxu0 0.0
  %2117 = vmatpush1.msra.mxu0 0.0
  %2118 = vmatprep.subr.mxu0 0.0
  %2119 = vmatpush1.msra.mxu0 0.0
  %2120 = vmatprep.subr.mxu0 0.0
  %2121 = vmatpush1.msra.mxu0 0.0
  %2122 = vmatprep.subr.mxu0 0.0
  %2123 = vmatpush1.msra.mxu0 0.0
  %2124 = vmatprep.subr.mxu0 0.0
  %2125 = vmatpush1.msra.mxu0 0.0
  %2126 = vmatprep.subr.mxu0 0.0
  %2127 = vmatpush1.msra.mxu0 0.0
  %2128 = vmatprep.subr.mxu0 0.0
  %2129 = vmatpush1.msra.mxu0 %v2093
  %2130 = vmatprep.subr.mxu0 0.0
  %2131 = vmatpush2.msra.mxu0 0.0
  %2132 = vmatprep.subr.mxu0 0.0
  %2133 = vmatpush2.msra.mxu0 0.0
  %2134 = vmatprep.subr.mxu0 0.0
  %2135 = vmatpush2.msra.mxu0 0.0
  %2136 = vmatprep.subr.mxu0 0.0
  %2137 = vmatpush2.msra.mxu0 0.0
  %2138 = vmatprep.subr.mxu0 0.0
  %2139 = vmatpush2.msra.mxu0 0.0
  %2140 = vmatprep.subr.mxu0 0.0
  %2141 = vmatpush2.msra.mxu0 0.0
  %2142 = vmatprep.subr.mxu0 0.0
  %2143 = vmatpush2.msra.mxu0 0.0
  %2144 = vmatprep.subr.mxu0 0.0
  %2145 = vmatpush2.msra.mxu0 0.0
  %2146 = vmatprep.subr.mxu0 0.0
  %2147 = vmatpush2.msra.mxu0 0.0
  %2148 = vmatprep.subr.mxu0 0.0
  %2149 = vmatpush2.msra.mxu0 0.0
  %2150 = vmatprep.subr.mxu0 0.0
  %2151 = vmatpush2.msra.mxu0 0.0
  %2152 = vmatprep.subr.mxu0 0.0
  %2153 = vmatpush2.msra.mxu0 0.0
  %2154 = vmatprep.subr.mxu0 0.0
  %2155 = vmatpush2.msra.mxu0 0.0
  %2156 = vmatprep.subr.mxu0 0.0
  %2157 = vmatpush2.msra.mxu0 0.0
  %2158 = vmatprep.subr.mxu0 0.0
  %2159 = vmatpush2.msra.mxu0 0.0
  %2160 = vmatprep.subr.mxu0 0.0
  %2161 = vmatpush2.msra.mxu0 0.0
  %2162 = vmatprep.mubr.f32.mxu0 0.0
  %2163 = vmatmul.mubr.f32.gmra.mxu0 %v2096
  %v2164 = vpop.f32.mrf.mxu0
  %v2165 = vadd.f32 0.0, %v2164
  %v2166 = vpop.f32.mrf.mxu0
  %2167 = vdwg.mxu0
  %v2168 = vrcp.pop %v2091
  %v2169 = vmul.f32 %v2165, %v2168
  %2171 = vrot.lane.b32.xlu0 %v2169, 16
  %v2172 = vpop.permute.xlu0 %2171
  %2174 = vst.msk [vmem:[#allocation2] sm:$0xff] %vm634, %v2172
  %2175 = vrot.lane.b32.xlu0 %v1666, 104
  %v2176 = vpop.permute.xlu0 %2175
  %2177 = vrot.lane.b32.xlu0 %v1659, 104
  %v2178 = vpop.permute.xlu0 %2177
  %v2179 = vsel %vm126, %v2176, 0
  %v2181 = vsel %vm126, %v2178, 0
  %2183 = vmatprep.subr.mxu0 0.0
  %2184 = vmatpush1.xpose.msra.mxu0 0.0
  %2185 = vmatprep.subr.mxu0 0.0
  %2186 = vmatpush1.xpose.msra.mxu0 0.0
  %2187 = vmatprep.subr.mxu0 0.0
  %2188 = vmatpush1.xpose.msra.mxu0 0.0
  %2189 = vmatprep.subr.mxu0 0.0
  %2190 = vmatpush1.xpose.msra.mxu0 0.0
  %2191 = vmatprep.subr.mxu0 0.0
  %2192 = vmatpush1.xpose.msra.mxu0 0.0
  %2193 = vmatprep.subr.mxu0 0.0
  %2194 = vmatpush1.xpose.msra.mxu0 0.0
  %2195 = vmatprep.subr.mxu0 0.0
  %2196 = vmatpush1.xpose.msra.mxu0 0.0
  %2197 = vmatprep.subr.mxu0 0.0
  %2198 = vmatpush1.xpose.msra.mxu0 0.0
  %2199 = vmatprep.subr.mxu0 0.0
  %2200 = vmatpush1.xpose.msra.mxu0 0.0
  %2201 = vmatprep.subr.mxu0 0.0
  %2202 = vmatpush1.xpose.msra.mxu0 0.0
  %2203 = vmatprep.subr.mxu0 0.0
  %2204 = vmatpush1.xpose.msra.mxu0 0.0
  %2205 = vmatprep.subr.mxu0 0.0
  %2206 = vmatpush1.xpose.msra.mxu0 0.0
  %2207 = vmatprep.subr.mxu0 0.0
  %2208 = vmatpush1.xpose.msra.mxu0 0.0
  %2209 = vmatprep.subr.mxu0 0.0
  %2210 = vmatpush1.xpose.msra.mxu0 0.0
  %2211 = vmatprep.subr.mxu0 0.0
  %2212 = vmatpush1.xpose.msra.mxu0 0.0
  %2213 = vmatprep.subr.mxu0 0.0
  %2214 = vmatpush1.xpose.msra.mxu0 %v2181
  %2215 = vmatprep.subr.mxu0 0.0
  %2216 = vmatpush2.xpose.msra.mxu0 0.0
  %2217 = vmatprep.subr.mxu0 0.0
  %2218 = vmatpush2.xpose.msra.mxu0 0.0
  %2219 = vmatprep.subr.mxu0 0.0
  %2220 = vmatpush2.xpose.msra.mxu0 0.0
  %2221 = vmatprep.subr.mxu0 0.0
  %2222 = vmatpush2.xpose.msra.mxu0 0.0
  %2223 = vmatprep.subr.mxu0 0.0
  %2224 = vmatpush2.xpose.msra.mxu0 0.0
  %2225 = vmatprep.subr.mxu0 0.0
  %2226 = vmatpush2.xpose.msra.mxu0 0.0
  %2227 = vmatprep.subr.mxu0 0.0
  %2228 = vmatpush2.xpose.msra.mxu0 0.0
  %2229 = vmatprep.subr.mxu0 0.0
  %2230 = vmatpush2.xpose.msra.mxu0 0.0
  %2231 = vmatprep.subr.mxu0 0.0
  %2232 = vmatpush2.xpose.msra.mxu0 0.0
  %2233 = vmatprep.subr.mxu0 0.0
  %2234 = vmatpush2.xpose.msra.mxu0 0.0
  %2235 = vmatprep.subr.mxu0 0.0
  %2236 = vmatpush2.xpose.msra.mxu0 0.0
  %2237 = vmatprep.subr.mxu0 0.0
  %2238 = vmatpush2.xpose.msra.mxu0 0.0
  %2239 = vmatprep.subr.mxu0 0.0
  %2240 = vmatpush2.xpose.msra.mxu0 0.0
  %2241 = vmatprep.subr.mxu0 0.0
  %2242 = vmatpush2.xpose.msra.mxu0 0.0
  %2243 = vmatprep.subr.mxu0 0.0
  %2244 = vmatpush2.xpose.msra.mxu0 0.0
  %2245 = vmatprep.subr.mxu0 0.0
  %2246 = vmatpush2.xpose.msra.mxu0 0.0
  %2247 = vmatprep.mubr.f32.mxu0 0.0
  %2248 = vmatmul.mubr.f32.gmra.mxu0 %v2179
  %v2249 = vpop.f32.mrf.mxu0
  %v2250 = vadd.f32 0.0, %v2249
  %v2251 = vpop.f32.mrf.mxu0
  %2252 = vdwg.mxu0
  %v2253 = vsel %vm1743, -1e+20, %v2250
  %v2254 = vsel %vm126, %v2253, -inf
  %2255 = vmax.xlane.f32.xlu0 %v2254
  %v2256 = vpop.xlane.xlu0 %2255
  %v2257 = vsub.f32 %v2253, %v2256
  %v2258 = vmul.f32 %v2257, 1.442695
  %v2259 = vpow.pop %v2258
  %v2260 = vsel %vm126, %v2259, 0.0
  %2261 = vadd.xlane.f32.xlu0 %v2260
  %v2262 = vpop.xlane.xlu0 %2261
  %2263 = vrot.lane.b32.xlu0 %v1659, 72
  %v2264 = vpop.permute.xlu0 %2263
  %v2267 = vsel %vm126, %v2259, 0
  %2269 = vmatprep.subr.mxu0 0.0
  %2270 = vmatpush1.msra.mxu0 0.0
  %2271 = vmatprep.subr.mxu0 0.0
  %2272 = vmatpush1.msra.mxu0 0.0
  %2273 = vmatprep.subr.mxu0 0.0
  %2274 = vmatpush1.msra.mxu0 0.0
  %2275 = vmatprep.subr.mxu0 0.0
  %2276 = vmatpush1.msra.mxu0 0.0
  %2277 = vmatprep.subr.mxu0 0.0
  %2278 = vmatpush1.msra.mxu0 0.0
  %2279 = vmatprep.subr.mxu0 0.0
  %2280 = vmatpush1.msra.mxu0 0.0
  %2281 = vmatprep.subr.mxu0 0.0
  %2282 = vmatpush1.msra.mxu0 0.0
  %2283 = vmatprep.subr.mxu0 0.0
  %2284 = vmatpush1.msra.mxu0 0.0
  %2285 = vmatprep.subr.mxu0 0.0
  %2286 = vmatpush1.msra.mxu0 0.0
  %2287 = vmatprep.subr.mxu0 0.0
  %2288 = vmatpush1.msra.mxu0 0.0
  %2289 = vmatprep.subr.mxu0 0.0
  %2290 = vmatpush1.msra.mxu0 0.0
  %2291 = vmatprep.subr.mxu0 0.0
  %2292 = vmatpush1.msra.mxu0 0.0
  %2293 = vmatprep.subr.mxu0 0.0
  %2294 = vmatpush1.msra.mxu0 0.0
  %2295 = vmatprep.subr.mxu0 0.0
  %2296 = vmatpush1.msra.mxu0 0.0
  %2297 = vmatprep.subr.mxu0 0.0
  %2298 = vmatpush1.msra.mxu0 0.0
  %2299 = vmatprep.subr.mxu0 0.0
  %2300 = vmatpush1.msra.mxu0 %v2264
  %2301 = vmatprep.subr.mxu0 0.0
  %2302 = vmatpush2.msra.mxu0 0.0
  %2303 = vmatprep.subr.mxu0 0.0
  %2304 = vmatpush2.msra.mxu0 0.0
  %2305 = vmatprep.subr.mxu0 0.0
  %2306 = vmatpush2.msra.mxu0 0.0
  %2307 = vmatprep.subr.mxu0 0.0
  %2308 = vmatpush2.msra.mxu0 0.0
  %2309 = vmatprep.subr.mxu0 0.0
  %2310 = vmatpush2.msra.mxu0 0.0
  %2311 = vmatprep.subr.mxu0 0.0
  %2312 = vmatpush2.msra.mxu0 0.0
  %2313 = vmatprep.subr.mxu0 0.0
  %2314 = vmatpush2.msra.mxu0 0.0
  %2315 = vmatprep.subr.mxu0 0.0
  %2316 = vmatpush2.msra.mxu0 0.0
  %2317 = vmatprep.subr.mxu0 0.0
  %2318 = vmatpush2.msra.mxu0 0.0
  %2319 = vmatprep.subr.mxu0 0.0
  %2320 = vmatpush2.msra.mxu0 0.0
  %2321 = vmatprep.subr.mxu0 0.0
  %2322 = vmatpush2.msra.mxu0 0.0
  %2323 = vmatprep.subr.mxu0 0.0
  %2324 = vmatpush2.msra.mxu0 0.0
  %2325 = vmatprep.subr.mxu0 0.0
  %2326 = vmatpush2.msra.mxu0 0.0
  %2327 = vmatprep.subr.mxu0 0.0
  %2328 = vmatpush2.msra.mxu0 0.0
  %2329 = vmatprep.subr.mxu0 0.0
  %2330 = vmatpush2.msra.mxu0 0.0
  %2331 = vmatprep.subr.mxu0 0.0
  %2332 = vmatpush2.msra.mxu0 0.0
  %2333 = vmatprep.mubr.f32.mxu0 0.0
  %2334 = vmatmul.mubr.f32.gmra.mxu0 %v2267
  %v2335 = vpop.f32.mrf.mxu0
  %v2336 = vadd.f32 0.0, %v2335
  %v2337 = vpop.f32.mrf.mxu0
  %2338 = vdwg.mxu0
  %v2339 = vrcp.pop %v2262
  %v2340 = vmul.f32 %v2336, %v2339
  %2342 = vrot.lane.b32.xlu0 %v2340, 24
  %v2343 = vpop.permute.xlu0 %2342
  %2345 = vst.msk [vmem:[#allocation2] sm:$0xff] %vm806, %v2343
  %s2346 = scalar_lea.vmem %s3, 8
  %v2347 = vld [vmem:[%s2346] sm:$0xff]
  %v2348 = vmul.f32 %v1601, 0.35355338
  %v2350 = vsel %vm126, %v2348, 0
  %v2353 = vsel %vm126, %v1662, 0
  %2355 = vmatprep.subr.mxu0 0.0
  %2356 = vmatpush1.xpose.msra.mxu0 0.0
  %2357 = vmatprep.subr.mxu0 0.0
  %2358 = vmatpush1.xpose.msra.mxu0 0.0
  %2359 = vmatprep.subr.mxu0 0.0
  %2360 = vmatpush1.xpose.msra.mxu0 0.0
  %2361 = vmatprep.subr.mxu0 0.0
  %2362 = vmatpush1.xpose.msra.mxu0 0.0
  %2363 = vmatprep.subr.mxu0 0.0
  %2364 = vmatpush1.xpose.msra.mxu0 0.0
  %2365 = vmatprep.subr.mxu0 0.0
  %2366 = vmatpush1.xpose.msra.mxu0 0.0
  %2367 = vmatprep.subr.mxu0 0.0
  %2368 = vmatpush1.xpose.msra.mxu0 0.0
  %2369 = vmatprep.subr.mxu0 0.0
  %2370 = vmatpush1.xpose.msra.mxu0 0.0
  %2371 = vmatprep.subr.mxu0 0.0
  %2372 = vmatpush1.xpose.msra.mxu0 0.0
  %2373 = vmatprep.subr.mxu0 0.0
  %2374 = vmatpush1.xpose.msra.mxu0 0.0
  %2375 = vmatprep.subr.mxu0 0.0
  %2376 = vmatpush1.xpose.msra.mxu0 0.0
  %2377 = vmatprep.subr.mxu0 0.0
  %2378 = vmatpush1.xpose.msra.mxu0 0.0
  %2379 = vmatprep.subr.mxu0 0.0
  %2380 = vmatpush1.xpose.msra.mxu0 0.0
  %2381 = vmatprep.subr.mxu0 0.0
  %2382 = vmatpush1.xpose.msra.mxu0 0.0
  %2383 = vmatprep.subr.mxu0 0.0
  %2384 = vmatpush1.xpose.msra.mxu0 0.0
  %2385 = vmatprep.subr.mxu0 0.0
  %2386 = vmatpush1.xpose.msra.mxu0 %v2353
  %2387 = vmatprep.subr.mxu0 0.0
  %2388 = vmatpush2.xpose.msra.mxu0 0.0
  %2389 = vmatprep.subr.mxu0 0.0
  %2390 = vmatpush2.xpose.msra.mxu0 0.0
  %2391 = vmatprep.subr.mxu0 0.0
  %2392 = vmatpush2.xpose.msra.mxu0 0.0
  %2393 = vmatprep.subr.mxu0 0.0
  %2394 = vmatpush2.xpose.msra.mxu0 0.0
  %2395 = vmatprep.subr.mxu0 0.0
  %2396 = vmatpush2.xpose.msra.mxu0 0.0
  %2397 = vmatprep.subr.mxu0 0.0
  %2398 = vmatpush2.xpose.msra.mxu0 0.0
  %2399 = vmatprep.subr.mxu0 0.0
  %2400 = vmatpush2.xpose.msra.mxu0 0.0
  %2401 = vmatprep.subr.mxu0 0.0
  %2402 = vmatpush2.xpose.msra.mxu0 0.0
  %2403 = vmatprep.subr.mxu0 0.0
  %2404 = vmatpush2.xpose.msra.mxu0 0.0
  %2405 = vmatprep.subr.mxu0 0.0
  %2406 = vmatpush2.xpose.msra.mxu0 0.0
  %2407 = vmatprep.subr.mxu0 0.0
  %2408 = vmatpush2.xpose.msra.mxu0 0.0
  %2409 = vmatprep.subr.mxu0 0.0
  %2410 = vmatpush2.xpose.msra.mxu0 0.0
  %2411 = vmatprep.subr.mxu0 0.0
  %2412 = vmatpush2.xpose.msra.mxu0 0.0
  %2413 = vmatprep.subr.mxu0 0.0
  %2414 = vmatpush2.xpose.msra.mxu0 0.0
  %2415 = vmatprep.subr.mxu0 0.0
  %2416 = vmatpush2.xpose.msra.mxu0 0.0
  %2417 = vmatprep.subr.mxu0 0.0
  %2418 = vmatpush2.xpose.msra.mxu0 0.0
  %2419 = vmatprep.mubr.f32.mxu0 0.0
  %2420 = vmatmul.mubr.f32.gmra.mxu0 %v2350
  %v2421 = vpop.f32.mrf.mxu0
  %v2422 = vadd.f32 0.0, %v2421
  %v2423 = vpop.f32.mrf.mxu0
  %2424 = vdwg.mxu0
  %vm2425 = vcmp.eq.f32.partialorder %v2347, 0.0
  %v2426 = vsel %vm2425, -1e+20, %v2422
  %v2427 = vsel %vm126, %v2426, -inf
  %2428 = vmax.xlane.f32.xlu0 %v2427
  %v2429 = vpop.xlane.xlu0 %2428
  %v2430 = vsub.f32 %v2426, %v2429
  %v2431 = vmul.f32 %v2430, 1.442695
  %v2432 = vpow.pop %v2431
  %v2433 = vsel %vm126, %v2432, 0.0
  %2434 = vadd.xlane.f32.xlu0 %v2433
  %v2435 = vpop.xlane.xlu0 %2434
  %2436 = vrot.lane.b32.xlu0 %v1662, 96
  %v2437 = vpop.permute.xlu0 %2436
  %v2440 = vsel %vm126, %v2432, 0
  %2442 = vmatprep.subr.mxu0 0.0
  %2443 = vmatpush1.msra.mxu0 0.0
  %2444 = vmatprep.subr.mxu0 0.0
  %2445 = vmatpush1.msra.mxu0 0.0
  %2446 = vmatprep.subr.mxu0 0.0
  %2447 = vmatpush1.msra.mxu0 0.0
  %2448 = vmatprep.subr.mxu0 0.0
  %2449 = vmatpush1.msra.mxu0 0.0
  %2450 = vmatprep.subr.mxu0 0.0
  %2451 = vmatpush1.msra.mxu0 0.0
  %2452 = vmatprep.subr.mxu0 0.0
  %2453 = vmatpush1.msra.mxu0 0.0
  %2454 = vmatprep.subr.mxu0 0.0
  %2455 = vmatpush1.msra.mxu0 0.0
  %2456 = vmatprep.subr.mxu0 0.0
  %2457 = vmatpush1.msra.mxu0 0.0
  %2458 = vmatprep.subr.mxu0 0.0
  %2459 = vmatpush1.msra.mxu0 0.0
  %2460 = vmatprep.subr.mxu0 0.0
  %2461 = vmatpush1.msra.mxu0 0.0
  %2462 = vmatprep.subr.mxu0 0.0
  %2463 = vmatpush1.msra.mxu0 0.0
  %2464 = vmatprep.subr.mxu0 0.0
  %2465 = vmatpush1.msra.mxu0 0.0
  %2466 = vmatprep.subr.mxu0 0.0
  %2467 = vmatpush1.msra.mxu0 0.0
  %2468 = vmatprep.subr.mxu0 0.0
  %2469 = vmatpush1.msra.mxu0 0.0
  %2470 = vmatprep.subr.mxu0 0.0
  %2471 = vmatpush1.msra.mxu0 0.0
  %2472 = vmatprep.subr.mxu0 0.0
  %2473 = vmatpush1.msra.mxu0 %v2437
  %2474 = vmatprep.subr.mxu0 0.0
  %2475 = vmatpush2.msra.mxu0 0.0
  %2476 = vmatprep.subr.mxu0 0.0
  %2477 = vmatpush2.msra.mxu0 0.0
  %2478 = vmatprep.subr.mxu0 0.0
  %2479 = vmatpush2.msra.mxu0 0.0
  %2480 = vmatprep.subr.mxu0 0.0
  %2481 = vmatpush2.msra.mxu0 0.0
  %2482 = vmatprep.subr.mxu0 0.0
  %2483 = vmatpush2.msra.mxu0 0.0
  %2484 = vmatprep.subr.mxu0 0.0
  %2485 = vmatpush2.msra.mxu0 0.0
  %2486 = vmatprep.subr.mxu0 0.0
  %2487 = vmatpush2.msra.mxu0 0.0
  %2488 = vmatprep.subr.mxu0 0.0
  %2489 = vmatpush2.msra.mxu0 0.0
  %2490 = vmatprep.subr.mxu0 0.0
  %2491 = vmatpush2.msra.mxu0 0.0
  %2492 = vmatprep.subr.mxu0 0.0
  %2493 = vmatpush2.msra.mxu0 0.0
  %2494 = vmatprep.subr.mxu0 0.0
  %2495 = vmatpush2.msra.mxu0 0.0
  %2496 = vmatprep.subr.mxu0 0.0
  %2497 = vmatpush2.msra.mxu0 0.0
  %2498 = vmatprep.subr.mxu0 0.0
  %2499 = vmatpush2.msra.mxu0 0.0
  %2500 = vmatprep.subr.mxu0 0.0
  %2501 = vmatpush2.msra.mxu0 0.0
  %2502 = vmatprep.subr.mxu0 0.0
  %2503 = vmatpush2.msra.mxu0 0.0
  %2504 = vmatprep.subr.mxu0 0.0
  %2505 = vmatpush2.msra.mxu0 0.0
  %2506 = vmatprep.mubr.f32.mxu0 0.0
  %2507 = vmatmul.mubr.f32.gmra.mxu0 %v2440
  %v2508 = vpop.f32.mrf.mxu0
  %v2509 = vadd.f32 0.0, %v2508
  %v2510 = vpop.f32.mrf.mxu0
  %2511 = vdwg.mxu0
  %v2512 = vrcp.pop %v2435
  %v2513 = vmul.f32 %v2509, %v2512
  %2514 = vst.msk [vmem:[#allocation2 + $0x8] sm:$0xff] %vm126, %v2513
  %2515 = vrot.lane.b32.xlu0 %v2348, 120
  %v2516 = vpop.permute.xlu0 %2515
  %2517 = vrot.lane.b32.xlu0 %v1662, 120
  %v2518 = vpop.permute.xlu0 %2517
  %v2519 = vsel %vm126, %v2516, 0
  %v2521 = vsel %vm126, %v2518, 0
  %2523 = vmatprep.subr.mxu0 0.0
  %2524 = vmatpush1.xpose.msra.mxu0 0.0
  %2525 = vmatprep.subr.mxu0 0.0
  %2526 = vmatpush1.xpose.msra.mxu0 0.0
  %2527 = vmatprep.subr.mxu0 0.0
  %2528 = vmatpush1.xpose.msra.mxu0 0.0
  %2529 = vmatprep.subr.mxu0 0.0
  %2530 = vmatpush1.xpose.msra.mxu0 0.0
  %2531 = vmatprep.subr.mxu0 0.0
  %2532 = vmatpush1.xpose.msra.mxu0 0.0
  %2533 = vmatprep.subr.mxu0 0.0
  %2534 = vmatpush1.xpose.msra.mxu0 0.0
  %2535 = vmatprep.subr.mxu0 0.0
  %2536 = vmatpush1.xpose.msra.mxu0 0.0
  %2537 = vmatprep.subr.mxu0 0.0
  %2538 = vmatpush1.xpose.msra.mxu0 0.0
  %2539 = vmatprep.subr.mxu0 0.0
  %2540 = vmatpush1.xpose.msra.mxu0 0.0
  %2541 = vmatprep.subr.mxu0 0.0
  %2542 = vmatpush1.xpose.msra.mxu0 0.0
  %2543 = vmatprep.subr.mxu0 0.0
  %2544 = vmatpush1.xpose.msra.mxu0 0.0
  %2545 = vmatprep.subr.mxu0 0.0
  %2546 = vmatpush1.xpose.msra.mxu0 0.0
  %2547 = vmatprep.subr.mxu0 0.0
  %2548 = vmatpush1.xpose.msra.mxu0 0.0
  %2549 = vmatprep.subr.mxu0 0.0
  %2550 = vmatpush1.xpose.msra.mxu0 0.0
  %2551 = vmatprep.subr.mxu0 0.0
  %2552 = vmatpush1.xpose.msra.mxu0 0.0
  %2553 = vmatprep.subr.mxu0 0.0
  %2554 = vmatpush1.xpose.msra.mxu0 %v2521
  %2555 = vmatprep.subr.mxu0 0.0
  %2556 = vmatpush2.xpose.msra.mxu0 0.0
  %2557 = vmatprep.subr.mxu0 0.0
  %2558 = vmatpush2.xpose.msra.mxu0 0.0
  %2559 = vmatprep.subr.mxu0 0.0
  %2560 = vmatpush2.xpose.msra.mxu0 0.0
  %2561 = vmatprep.subr.mxu0 0.0
  %2562 = vmatpush2.xpose.msra.mxu0 0.0
  %2563 = vmatprep.subr.mxu0 0.0
  %2564 = vmatpush2.xpose.msra.mxu0 0.0
  %2565 = vmatprep.subr.mxu0 0.0
  %2566 = vmatpush2.xpose.msra.mxu0 0.0
  %2567 = vmatprep.subr.mxu0 0.0
  %2568 = vmatpush2.xpose.msra.mxu0 0.0
  %2569 = vmatprep.subr.mxu0 0.0
  %2570 = vmatpush2.xpose.msra.mxu0 0.0
  %2571 = vmatprep.subr.mxu0 0.0
  %2572 = vmatpush2.xpose.msra.mxu0 0.0
  %2573 = vmatprep.subr.mxu0 0.0
  %2574 = vmatpush2.xpose.msra.mxu0 0.0
  %2575 = vmatprep.subr.mxu0 0.0
  %2576 = vmatpush2.xpose.msra.mxu0 0.0
  %2577 = vmatprep.subr.mxu0 0.0
  %2578 = vmatpush2.xpose.msra.mxu0 0.0
  %2579 = vmatprep.subr.mxu0 0.0
  %2580 = vmatpush2.xpose.msra.mxu0 0.0
  %2581 = vmatprep.subr.mxu0 0.0
  %2582 = vmatpush2.xpose.msra.mxu0 0.0
  %2583 = vmatprep.subr.mxu0 0.0
  %2584 = vmatpush2.xpose.msra.mxu0 0.0
  %2585 = vmatprep.subr.mxu0 0.0
  %2586 = vmatpush2.xpose.msra.mxu0 0.0
  %2587 = vmatprep.mubr.f32.mxu0 0.0
  %2588 = vmatmul.mubr.f32.gmra.mxu0 %v2519
  %v2589 = vpop.f32.mrf.mxu0
  %v2590 = vadd.f32 0.0, %v2589
  %v2591 = vpop.f32.mrf.mxu0
  %2592 = vdwg.mxu0
  %v2593 = vsel %vm2425, -1e+20, %v2590
  %v2594 = vsel %vm126, %v2593, -inf
  %2595 = vmax.xlane.f32.xlu0 %v2594
  %v2596 = vpop.xlane.xlu0 %2595
  %v2597 = vsub.f32 %v2593, %v2596
  %v2598 = vmul.f32 %v2597, 1.442695
  %v2599 = vpow.pop %v2598
  %v2600 = vsel %vm126, %v2599, 0.0
  %2601 = vadd.xlane.f32.xlu0 %v2600
  %v2602 = vpop.xlane.xlu0 %2601
  %2603 = vrot.lane.b32.xlu0 %v1662, 88
  %v2604 = vpop.permute.xlu0 %2603
  %v2607 = vsel %vm126, %v2599, 0
  %2609 = vmatprep.subr.mxu0 0.0
  %2610 = vmatpush1.msra.mxu0 0.0
  %2611 = vmatprep.subr.mxu0 0.0
  %2612 = vmatpush1.msra.mxu0 0.0
  %2613 = vmatprep.subr.mxu0 0.0
  %2614 = vmatpush1.msra.mxu0 0.0
  %2615 = vmatprep.subr.mxu0 0.0
  %2616 = vmatpush1.msra.mxu0 0.0
  %2617 = vmatprep.subr.mxu0 0.0
  %2618 = vmatpush1.msra.mxu0 0.0
  %2619 = vmatprep.subr.mxu0 0.0
  %2620 = vmatpush1.msra.mxu0 0.0
  %2621 = vmatprep.subr.mxu0 0.0
  %2622 = vmatpush1.msra.mxu0 0.0
  %2623 = vmatprep.subr.mxu0 0.0
  %2624 = vmatpush1.msra.mxu0 0.0
  %2625 = vmatprep.subr.mxu0 0.0
  %2626 = vmatpush1.msra.mxu0 0.0
  %2627 = vmatprep.subr.mxu0 0.0
  %2628 = vmatpush1.msra.mxu0 0.0
  %2629 = vmatprep.subr.mxu0 0.0
  %2630 = vmatpush1.msra.mxu0 0.0
  %2631 = vmatprep.subr.mxu0 0.0
  %2632 = vmatpush1.msra.mxu0 0.0
  %2633 = vmatprep.subr.mxu0 0.0
  %2634 = vmatpush1.msra.mxu0 0.0
  %2635 = vmatprep.subr.mxu0 0.0
  %2636 = vmatpush1.msra.mxu0 0.0
  %2637 = vmatprep.subr.mxu0 0.0
  %2638 = vmatpush1.msra.mxu0 0.0
  %2639 = vmatprep.subr.mxu0 0.0
  %2640 = vmatpush1.msra.mxu0 %v2604
  %2641 = vmatprep.subr.mxu0 0.0
  %2642 = vmatpush2.msra.mxu0 0.0
  %2643 = vmatprep.subr.mxu0 0.0
  %2644 = vmatpush2.msra.mxu0 0.0
  %2645 = vmatprep.subr.mxu0 0.0
  %2646 = vmatpush2.msra.mxu0 0.0
  %2647 = vmatprep.subr.mxu0 0.0
  %2648 = vmatpush2.msra.mxu0 0.0
  %2649 = vmatprep.subr.mxu0 0.0
  %2650 = vmatpush2.msra.mxu0 0.0
  %2651 = vmatprep.subr.mxu0 0.0
  %2652 = vmatpush2.msra.mxu0 0.0
  %2653 = vmatprep.subr.mxu0 0.0
  %2654 = vmatpush2.msra.mxu0 0.0
  %2655 = vmatprep.subr.mxu0 0.0
  %2656 = vmatpush2.msra.mxu0 0.0
  %2657 = vmatprep.subr.mxu0 0.0
  %2658 = vmatpush2.msra.mxu0 0.0
  %2659 = vmatprep.subr.mxu0 0.0
  %2660 = vmatpush2.msra.mxu0 0.0
  %2661 = vmatprep.subr.mxu0 0.0
  %2662 = vmatpush2.msra.mxu0 0.0
  %2663 = vmatprep.subr.mxu0 0.0
  %2664 = vmatpush2.msra.mxu0 0.0
  %2665 = vmatprep.subr.mxu0 0.0
  %2666 = vmatpush2.msra.mxu0 0.0
  %2667 = vmatprep.subr.mxu0 0.0
  %2668 = vmatpush2.msra.mxu0 0.0
  %2669 = vmatprep.subr.mxu0 0.0
  %2670 = vmatpush2.msra.mxu0 0.0
  %2671 = vmatprep.subr.mxu0 0.0
  %2672 = vmatpush2.msra.mxu0 0.0
  %2673 = vmatprep.mubr.f32.mxu0 0.0
  %2674 = vmatmul.mubr.f32.gmra.mxu0 %v2607
  %v2675 = vpop.f32.mrf.mxu0
  %v2676 = vadd.f32 0.0, %v2675
  %v2677 = vpop.f32.mrf.mxu0
  %2678 = vdwg.mxu0
  %v2679 = vrcp.pop %v2602
  %v2680 = vmul.f32 %v2676, %v2679
  %2682 = vrot.lane.b32.xlu0 %v2680, 8
  %v2683 = vpop.permute.xlu0 %2682
  %2685 = vst.msk [vmem:[#allocation2 + $0x8] sm:$0xff] %vm462, %v2683
  %2686 = vrot.lane.b32.xlu0 %v2348, 112
  %v2687 = vpop.permute.xlu0 %2686
  %2688 = vrot.lane.b32.xlu0 %v1662, 112
  %v2689 = vpop.permute.xlu0 %2688
  %v2690 = vsel %vm126, %v2687, 0
  %v2692 = vsel %vm126, %v2689, 0
  %2694 = vmatprep.subr.mxu0 0.0
  %2695 = vmatpush1.xpose.msra.mxu0 0.0
  %2696 = vmatprep.subr.mxu0 0.0
  %2697 = vmatpush1.xpose.msra.mxu0 0.0
  %2698 = vmatprep.subr.mxu0 0.0
  %2699 = vmatpush1.xpose.msra.mxu0 0.0
  %2700 = vmatprep.subr.mxu0 0.0
  %2701 = vmatpush1.xpose.msra.mxu0 0.0
  %2702 = vmatprep.subr.mxu0 0.0
  %2703 = vmatpush1.xpose.msra.mxu0 0.0
  %2704 = vmatprep.subr.mxu0 0.0
  %2705 = vmatpush1.xpose.msra.mxu0 0.0
  %2706 = vmatprep.subr.mxu0 0.0
  %2707 = vmatpush1.xpose.msra.mxu0 0.0
  %2708 = vmatprep.subr.mxu0 0.0
  %2709 = vmatpush1.xpose.msra.mxu0 0.0
  %2710 = vmatprep.subr.mxu0 0.0
  %2711 = vmatpush1.xpose.msra.mxu0 0.0
  %2712 = vmatprep.subr.mxu0 0.0
  %2713 = vmatpush1.xpose.msra.mxu0 0.0
  %2714 = vmatprep.subr.mxu0 0.0
  %2715 = vmatpush1.xpose.msra.mxu0 0.0
  %2716 = vmatprep.subr.mxu0 0.0
  %2717 = vmatpush1.xpose.msra.mxu0 0.0
  %2718 = vmatprep.subr.mxu0 0.0
  %2719 = vmatpush1.xpose.msra.mxu0 0.0
  %2720 = vmatprep.subr.mxu0 0.0
  %2721 = vmatpush1.xpose.msra.mxu0 0.0
  %2722 = vmatprep.subr.mxu0 0.0
  %2723 = vmatpush1.xpose.msra.mxu0 0.0
  %2724 = vmatprep.subr.mxu0 0.0
  %2725 = vmatpush1.xpose.msra.mxu0 %v2692
  %2726 = vmatprep.subr.mxu0 0.0
  %2727 = vmatpush2.xpose.msra.mxu0 0.0
  %2728 = vmatprep.subr.mxu0 0.0
  %2729 = vmatpush2.xpose.msra.mxu0 0.0
  %2730 = vmatprep.subr.mxu0 0.0
  %2731 = vmatpush2.xpose.msra.mxu0 0.0
  %2732 = vmatprep.subr.mxu0 0.0
  %2733 = vmatpush2.xpose.msra.mxu0 0.0
  %2734 = vmatprep.subr.mxu0 0.0
  %2735 = vmatpush2.xpose.msra.mxu0 0.0
  %2736 = vmatprep.subr.mxu0 0.0
  %2737 = vmatpush2.xpose.msra.mxu0 0.0
  %2738 = vmatprep.subr.mxu0 0.0
  %2739 = vmatpush2.xpose.msra.mxu0 0.0
  %2740 = vmatprep.subr.mxu0 0.0
  %2741 = vmatpush2.xpose.msra.mxu0 0.0
  %2742 = vmatprep.subr.mxu0 0.0
  %2743 = vmatpush2.xpose.msra.mxu0 0.0
  %2744 = vmatprep.subr.mxu0 0.0
  %2745 = vmatpush2.xpose.msra.mxu0 0.0
  %2746 = vmatprep.subr.mxu0 0.0
  %2747 = vmatpush2.xpose.msra.mxu0 0.0
  %2748 = vmatprep.subr.mxu0 0.0
  %2749 = vmatpush2.xpose.msra.mxu0 0.0
  %2750 = vmatprep.subr.mxu0 0.0
  %2751 = vmatpush2.xpose.msra.mxu0 0.0
  %2752 = vmatprep.subr.mxu0 0.0
  %2753 = vmatpush2.xpose.msra.mxu0 0.0
  %2754 = vmatprep.subr.mxu0 0.0
  %2755 = vmatpush2.xpose.msra.mxu0 0.0
  %2756 = vmatprep.subr.mxu0 0.0
  %2757 = vmatpush2.xpose.msra.mxu0 0.0
  %2758 = vmatprep.mubr.f32.mxu0 0.0
  %2759 = vmatmul.mubr.f32.gmra.mxu0 %v2690
  %v2760 = vpop.f32.mrf.mxu0
  %v2761 = vadd.f32 0.0, %v2760
  %v2762 = vpop.f32.mrf.mxu0
  %2763 = vdwg.mxu0
  %v2764 = vsel %vm2425, -1e+20, %v2761
  %v2765 = vsel %vm126, %v2764, -inf
  %2766 = vmax.xlane.f32.xlu0 %v2765
  %v2767 = vpop.xlane.xlu0 %2766
  %v2768 = vsub.f32 %v2764, %v2767
  %v2769 = vmul.f32 %v2768, 1.442695
  %v2770 = vpow.pop %v2769
  %v2771 = vsel %vm126, %v2770, 0.0
  %2772 = vadd.xlane.f32.xlu0 %v2771
  %v2773 = vpop.xlane.xlu0 %2772
  %2774 = vrot.lane.b32.xlu0 %v1662, 80
  %v2775 = vpop.permute.xlu0 %2774
  %v2778 = vsel %vm126, %v2770, 0
  %2780 = vmatprep.subr.mxu0 0.0
  %2781 = vmatpush1.msra.mxu0 0.0
  %2782 = vmatprep.subr.mxu0 0.0
  %2783 = vmatpush1.msra.mxu0 0.0
  %2784 = vmatprep.subr.mxu0 0.0
  %2785 = vmatpush1.msra.mxu0 0.0
  %2786 = vmatprep.subr.mxu0 0.0
  %2787 = vmatpush1.msra.mxu0 0.0
  %2788 = vmatprep.subr.mxu0 0.0
  %2789 = vmatpush1.msra.mxu0 0.0
  %2790 = vmatprep.subr.mxu0 0.0
  %2791 = vmatpush1.msra.mxu0 0.0
  %2792 = vmatprep.subr.mxu0 0.0
  %2793 = vmatpush1.msra.mxu0 0.0
  %2794 = vmatprep.subr.mxu0 0.0
  %2795 = vmatpush1.msra.mxu0 0.0
  %2796 = vmatprep.subr.mxu0 0.0
  %2797 = vmatpush1.msra.mxu0 0.0
  %2798 = vmatprep.subr.mxu0 0.0
  %2799 = vmatpush1.msra.mxu0 0.0
  %2800 = vmatprep.subr.mxu0 0.0
  %2801 = vmatpush1.msra.mxu0 0.0
  %2802 = vmatprep.subr.mxu0 0.0
  %2803 = vmatpush1.msra.mxu0 0.0
  %2804 = vmatprep.subr.mxu0 0.0
  %2805 = vmatpush1.msra.mxu0 0.0
  %2806 = vmatprep.subr.mxu0 0.0
  %2807 = vmatpush1.msra.mxu0 0.0
  %2808 = vmatprep.subr.mxu0 0.0
  %2809 = vmatpush1.msra.mxu0 0.0
  %2810 = vmatprep.subr.mxu0 0.0
  %2811 = vmatpush1.msra.mxu0 %v2775
  %2812 = vmatprep.subr.mxu0 0.0
  %2813 = vmatpush2.msra.mxu0 0.0
  %2814 = vmatprep.subr.mxu0 0.0
  %2815 = vmatpush2.msra.mxu0 0.0
  %2816 = vmatprep.subr.mxu0 0.0
  %2817 = vmatpush2.msra.mxu0 0.0
  %2818 = vmatprep.subr.mxu0 0.0
  %2819 = vmatpush2.msra.mxu0 0.0
  %2820 = vmatprep.subr.mxu0 0.0
  %2821 = vmatpush2.msra.mxu0 0.0
  %2822 = vmatprep.subr.mxu0 0.0
  %2823 = vmatpush2.msra.mxu0 0.0
  %2824 = vmatprep.subr.mxu0 0.0
  %2825 = vmatpush2.msra.mxu0 0.0
  %2826 = vmatprep.subr.mxu0 0.0
  %2827 = vmatpush2.msra.mxu0 0.0
  %2828 = vmatprep.subr.mxu0 0.0
  %2829 = vmatpush2.msra.mxu0 0.0
  %2830 = vmatprep.subr.mxu0 0.0
  %2831 = vmatpush2.msra.mxu0 0.0
  %2832 = vmatprep.subr.mxu0 0.0
  %2833 = vmatpush2.msra.mxu0 0.0
  %2834 = vmatprep.subr.mxu0 0.0
  %2835 = vmatpush2.msra.mxu0 0.0
  %2836 = vmatprep.subr.mxu0 0.0
  %2837 = vmatpush2.msra.mxu0 0.0
  %2838 = vmatprep.subr.mxu0 0.0
  %2839 = vmatpush2.msra.mxu0 0.0
  %2840 = vmatprep.subr.mxu0 0.0
  %2841 = vmatpush2.msra.mxu0 0.0
  %2842 = vmatprep.subr.mxu0 0.0
  %2843 = vmatpush2.msra.mxu0 0.0
  %2844 = vmatprep.mubr.f32.mxu0 0.0
  %2845 = vmatmul.mubr.f32.gmra.mxu0 %v2778
  %v2846 = vpop.f32.mrf.mxu0
  %v2847 = vadd.f32 0.0, %v2846
  %v2848 = vpop.f32.mrf.mxu0
  %2849 = vdwg.mxu0
  %v2850 = vrcp.pop %v2773
  %v2851 = vmul.f32 %v2847, %v2850
  %2853 = vrot.lane.b32.xlu0 %v2851, 16
  %v2854 = vpop.permute.xlu0 %2853
  %2856 = vst.msk [vmem:[#allocation2 + $0x8] sm:$0xff] %vm634, %v2854
  %2857 = vrot.lane.b32.xlu0 %v2348, 104
  %v2858 = vpop.permute.xlu0 %2857
  %2859 = vrot.lane.b32.xlu0 %v1662, 104
  %v2860 = vpop.permute.xlu0 %2859
  %v2861 = vsel %vm126, %v2858, 0
  %v2863 = vsel %vm126, %v2860, 0
  %2865 = vmatprep.subr.mxu0 0.0
  %2866 = vmatpush1.xpose.msra.mxu0 0.0
  %2867 = vmatprep.subr.mxu0 0.0
  %2868 = vmatpush1.xpose.msra.mxu0 0.0
  %2869 = vmatprep.subr.mxu0 0.0
  %2870 = vmatpush1.xpose.msra.mxu0 0.0
  %2871 = vmatprep.subr.mxu0 0.0
  %2872 = vmatpush1.xpose.msra.mxu0 0.0
  %2873 = vmatprep.subr.mxu0 0.0
  %2874 = vmatpush1.xpose.msra.mxu0 0.0
  %2875 = vmatprep.subr.mxu0 0.0
  %2876 = vmatpush1.xpose.msra.mxu0 0.0
  %2877 = vmatprep.subr.mxu0 0.0
  %2878 = vmatpush1.xpose.msra.mxu0 0.0
  %2879 = vmatprep.subr.mxu0 0.0
  %2880 = vmatpush1.xpose.msra.mxu0 0.0
  %2881 = vmatprep.subr.mxu0 0.0
  %2882 = vmatpush1.xpose.msra.mxu0 0.0
  %2883 = vmatprep.subr.mxu0 0.0
  %2884 = vmatpush1.xpose.msra.mxu0 0.0
  %2885 = vmatprep.subr.mxu0 0.0
  %2886 = vmatpush1.xpose.msra.mxu0 0.0
  %2887 = vmatprep.subr.mxu0 0.0
  %2888 = vmatpush1.xpose.msra.mxu0 0.0
  %2889 = vmatprep.subr.mxu0 0.0
  %2890 = vmatpush1.xpose.msra.mxu0 0.0
  %2891 = vmatprep.subr.mxu0 0.0
  %2892 = vmatpush1.xpose.msra.mxu0 0.0
  %2893 = vmatprep.subr.mxu0 0.0
  %2894 = vmatpush1.xpose.msra.mxu0 0.0
  %2895 = vmatprep.subr.mxu0 0.0
  %2896 = vmatpush1.xpose.msra.mxu0 %v2863
  %2897 = vmatprep.subr.mxu0 0.0
  %2898 = vmatpush2.xpose.msra.mxu0 0.0
  %2899 = vmatprep.subr.mxu0 0.0
  %2900 = vmatpush2.xpose.msra.mxu0 0.0
  %2901 = vmatprep.subr.mxu0 0.0
  %2902 = vmatpush2.xpose.msra.mxu0 0.0
  %2903 = vmatprep.subr.mxu0 0.0
  %2904 = vmatpush2.xpose.msra.mxu0 0.0
  %2905 = vmatprep.subr.mxu0 0.0
  %2906 = vmatpush2.xpose.msra.mxu0 0.0
  %2907 = vmatprep.subr.mxu0 0.0
  %2908 = vmatpush2.xpose.msra.mxu0 0.0
  %2909 = vmatprep.subr.mxu0 0.0
  %2910 = vmatpush2.xpose.msra.mxu0 0.0
  %2911 = vmatprep.subr.mxu0 0.0
  %2912 = vmatpush2.xpose.msra.mxu0 0.0
  %2913 = vmatprep.subr.mxu0 0.0
  %2914 = vmatpush2.xpose.msra.mxu0 0.0
  %2915 = vmatprep.subr.mxu0 0.0
  %2916 = vmatpush2.xpose.msra.mxu0 0.0
  %2917 = vmatprep.subr.mxu0 0.0
  %2918 = vmatpush2.xpose.msra.mxu0 0.0
  %2919 = vmatprep.subr.mxu0 0.0
  %2920 = vmatpush2.xpose.msra.mxu0 0.0
  %2921 = vmatprep.subr.mxu0 0.0
  %2922 = vmatpush2.xpose.msra.mxu0 0.0
  %2923 = vmatprep.subr.mxu0 0.0
  %2924 = vmatpush2.xpose.msra.mxu0 0.0
  %2925 = vmatprep.subr.mxu0 0.0
  %2926 = vmatpush2.xpose.msra.mxu0 0.0
  %2927 = vmatprep.subr.mxu0 0.0
  %2928 = vmatpush2.xpose.msra.mxu0 0.0
  %2929 = vmatprep.mubr.f32.mxu0 0.0
  %2930 = vmatmul.mubr.f32.gmra.mxu0 %v2861
  %v2931 = vpop.f32.mrf.mxu0
  %v2932 = vadd.f32 0.0, %v2931
  %v2933 = vpop.f32.mrf.mxu0
  %2934 = vdwg.mxu0
  %v2935 = vsel %vm2425, -1e+20, %v2932
  %v2936 = vsel %vm126, %v2935, -inf
  %2937 = vmax.xlane.f32.xlu0 %v2936
  %v2938 = vpop.xlane.xlu0 %2937
  %v2939 = vsub.f32 %v2935, %v2938
  %v2940 = vmul.f32 %v2939, 1.442695
  %v2941 = vpow.pop %v2940
  %v2942 = vsel %vm126, %v2941, 0.0
  %2943 = vadd.xlane.f32.xlu0 %v2942
  %v2944 = vpop.xlane.xlu0 %2943
  %2945 = vrot.lane.b32.xlu0 %v1662, 72
  %v2946 = vpop.permute.xlu0 %2945
  %v2949 = vsel %vm126, %v2941, 0
  %2951 = vmatprep.subr.mxu0 0.0
  %2952 = vmatpush1.msra.mxu0 0.0
  %2953 = vmatprep.subr.mxu0 0.0
  %2954 = vmatpush1.msra.mxu0 0.0
  %2955 = vmatprep.subr.mxu0 0.0
  %2956 = vmatpush1.msra.mxu0 0.0
  %2957 = vmatprep.subr.mxu0 0.0
  %2958 = vmatpush1.msra.mxu0 0.0
  %2959 = vmatprep.subr.mxu0 0.0
  %2960 = vmatpush1.msra.mxu0 0.0
  %2961 = vmatprep.subr.mxu0 0.0
  %2962 = vmatpush1.msra.mxu0 0.0
  %2963 = vmatprep.subr.mxu0 0.0
  %2964 = vmatpush1.msra.mxu0 0.0
  %2965 = vmatprep.subr.mxu0 0.0
  %2966 = vmatpush1.msra.mxu0 0.0
  %2967 = vmatprep.subr.mxu0 0.0
  %2968 = vmatpush1.msra.mxu0 0.0
  %2969 = vmatprep.subr.mxu0 0.0
  %2970 = vmatpush1.msra.mxu0 0.0
  %2971 = vmatprep.subr.mxu0 0.0
  %2972 = vmatpush1.msra.mxu0 0.0
  %2973 = vmatprep.subr.mxu0 0.0
  %2974 = vmatpush1.msra.mxu0 0.0
  %2975 = vmatprep.subr.mxu0 0.0
  %2976 = vmatpush1.msra.mxu0 0.0
  %2977 = vmatprep.subr.mxu0 0.0
  %2978 = vmatpush1.msra.mxu0 0.0
  %2979 = vmatprep.subr.mxu0 0.0
  %2980 = vmatpush1.msra.mxu0 0.0
  %2981 = vmatprep.subr.mxu0 0.0
  %2982 = vmatpush1.msra.mxu0 %v2946
  %2983 = vmatprep.subr.mxu0 0.0
  %2984 = vmatpush2.msra.mxu0 0.0
  %2985 = vmatprep.subr.mxu0 0.0
  %2986 = vmatpush2.msra.mxu0 0.0
  %2987 = vmatprep.subr.mxu0 0.0
  %2988 = vmatpush2.msra.mxu0 0.0
  %2989 = vmatprep.subr.mxu0 0.0
  %2990 = vmatpush2.msra.mxu0 0.0
  %2991 = vmatprep.subr.mxu0 0.0
  %2992 = vmatpush2.msra.mxu0 0.0
  %2993 = vmatprep.subr.mxu0 0.0
  %2994 = vmatpush2.msra.mxu0 0.0
  %2995 = vmatprep.subr.mxu0 0.0
  %2996 = vmatpush2.msra.mxu0 0.0
  %2997 = vmatprep.subr.mxu0 0.0
  %2998 = vmatpush2.msra.mxu0 0.0
  %2999 = vmatprep.subr.mxu0 0.0
  %3000 = vmatpush2.msra.mxu0 0.0
  %3001 = vmatprep.subr.mxu0 0.0
  %3002 = vmatpush2.msra.mxu0 0.0
  %3003 = vmatprep.subr.mxu0 0.0
  %3004 = vmatpush2.msra.mxu0 0.0
  %3005 = vmatprep.subr.mxu0 0.0
  %3006 = vmatpush2.msra.mxu0 0.0
  %3007 = vmatprep.subr.mxu0 0.0
  %3008 = vmatpush2.msra.mxu0 0.0
  %3009 = vmatprep.subr.mxu0 0.0
  %3010 = vmatpush2.msra.mxu0 0.0
  %3011 = vmatprep.subr.mxu0 0.0
  %3012 = vmatpush2.msra.mxu0 0.0
  %3013 = vmatprep.subr.mxu0 0.0
  %3014 = vmatpush2.msra.mxu0 0.0
  %3015 = vmatprep.mubr.f32.mxu0 0.0
  %3016 = vmatmul.mubr.f32.gmra.mxu0 %v2949
  %v3017 = vpop.f32.mrf.mxu0
  %v3018 = vadd.f32 0.0, %v3017
  %v3019 = vpop.f32.mrf.mxu0
  %3020 = vdwg.mxu0
  %v3021 = vrcp.pop %v2944
  %v3022 = vmul.f32 %v3018, %v3021
  %3024 = vrot.lane.b32.xlu0 %v3022, 24
  %v3025 = vpop.permute.xlu0 %3024
  %3027 = vst.msk [vmem:[#allocation2 + $0x8] sm:$0xff] %vm806, %v3025
  %v3028 = vld [vmem:[#allocation2] sm:$0xff]
  %v3029 = vld [vmem:[#allocation2 + $0x8] sm:$0xff]
  %v3030 = vadd.f32 %v3028, %v1539
  %v3031 = vadd.f32 %v3029, %v1540
  %v3032 = vld [vmem:[%s9] sm:$0x1]
  %v3033 = vld [vmem:[%s10] sm:$0x1]
  %v3034 = vsel %vm76, %v3030, 0.0
  %3035 = vadd.xlane.f32.xlu0 %v3034
  %v3036 = vpop.xlane.xlu0 %3035
  %v3037 = vsel %vm76, %v3031, 0.0
  %3038 = vadd.xlane.f32.xlu0 %v3037
  %v3039 = vpop.xlane.xlu0 %3038
  %v3040 = vmul.f32 %v3036, %v1504
  %v3041 = vmul.f32 %v3039, %v1504
  %v3042 = vsub.f32 %v3030, %v3040
  %v3043 = vsub.f32 %v3031, %v3041
  %v3044 = vmul.f32 %v3042, %v3042
  %v3045 = vmul.f32 %v3043, %v3043
  %v3046 = vsel %vm76, %v3044, 0.0
  %3047 = vadd.xlane.f32.xlu0 %v3046
  %v3048 = vpop.xlane.xlu0 %3047
  %v3049 = vsel %vm76, %v3045, 0.0
  %3050 = vadd.xlane.f32.xlu0 %v3049
  %v3051 = vpop.xlane.xlu0 %3050
  %v3052 = vmul.f32 %v3048, %v1504
  %v3053 = vmul.f32 %v3051, %v1504
  %v3054 = vadd.f32 %v3052, 1e-05
  %v3055 = vadd.f32 %v3053, 1e-05
  %v3056 = vrsqrt.pop %v3054
  %v3057 = vrsqrt.pop %v3055
  %v3058 = vmul.f32 %v3042, %v3056
  %v3059 = vmul.f32 %v3043, %v3057
  %v3061 = vlaneseq
  %v3062 = vshrl.u32 %v3061, 7
  %v3063 = vsub.s32 0, %v3062
  %v3064 = vrot.slane %v3032, %v3063
  %v3066 = vmul.f32 %v3058, %v3064
  %v3067 = vmul.f32 %v3059, %v3064
  %v3069 = vlaneseq
  %v3070 = vshrl.u32 %v3069, 7
  %v3071 = vsub.s32 0, %v3070
  %v3072 = vrot.slane %v3033, %v3071
  %v3074 = vadd.f32 %v3066, %v3072
  %v3075 = vadd.f32 %v3067, %v3072
  %v3076 = vpack.c.bf16 %v3075, %v3074
  %v3077 = vld [vmem:[%s13] sm:$0xf]
  %v3078 = vld [vmem:[%s13 + $0x4] sm:$0xf]
  %v3079 = vld [vmem:[%s13 + $0x8] sm:$0xf]
  %v3080 = vld [vmem:[%s13 + $0xc] sm:$0xf]
  %v3081 = vld [vmem:[%s14] sm:$0x1]
  %v3083 = vlaneseq
  %v3084 = vshrl.u32 %v3083, 7
  %v3085 = vsub.s32 0, %v3084
  %v3086 = vrot.slane %v3081, %v3085
  %v3092 = vunpack.c.l.b16 %v3077
  %v3093 = vunpack.c.l.b16 %v3078
  %v3094 = vunpack.c.l.b16 %v3079
  %v3095 = vunpack.c.l.b16 %v3080
  %v3096 = vpack.c.b16 %v3093, %v3092
  %v3097 = vpack.c.b16 %v3095, %v3094
  %v3101 = vsel %vm76, %v3076, 0
  %3103 = vmatprep.subr.bf16.mxu0 0
  %3104 = vmatpush1.bf16.msra.mxu0 0
  %3105 = vmatprep.subr.bf16.mxu0 0
  %3106 = vmatpush1.bf16.msra.mxu0 0
  %3107 = vmatprep.subr.bf16.mxu0 0
  %3108 = vmatpush1.bf16.msra.mxu0 0
  %3109 = vmatprep.subr.bf16.mxu0 0
  %3110 = vmatpush1.bf16.msra.mxu0 0
  %3111 = vmatprep.subr.bf16.mxu0 0
  %3112 = vmatpush1.bf16.msra.mxu0 0
  %3113 = vmatprep.subr.bf16.mxu0 0
  %3114 = vmatpush1.bf16.msra.mxu0 0
  %3115 = vmatprep.subr.bf16.mxu0 0
  %3116 = vmatpush1.bf16.msra.mxu0 %v3097
  %3117 = vmatprep.subr.bf16.mxu0 0
  %3118 = vmatpush1.bf16.msra.mxu0 %v3096
  %3119 = vmatprep.subr.bf16.mxu0 0
  %3120 = vmatpush2.bf16.msra.mxu0 0
  %3121 = vmatprep.subr.bf16.mxu0 0
  %3122 = vmatpush2.bf16.msra.mxu0 0
  %3123 = vmatprep.subr.bf16.mxu0 0
  %3124 = vmatpush2.bf16.msra.mxu0 0
  %3125 = vmatprep.subr.bf16.mxu0 0
  %3126 = vmatpush2.bf16.msra.mxu0 0
  %3127 = vmatprep.subr.bf16.mxu0 0
  %3128 = vmatpush2.bf16.msra.mxu0 0
  %3129 = vmatprep.subr.bf16.mxu0 0
  %3130 = vmatpush2.bf16.msra.mxu0 0
  %3131 = vmatprep.subr.bf16.mxu0 0
  %3132 = vmatpush2.bf16.msra.mxu0 0
  %3133 = vmatprep.subr.bf16.mxu0 0
  %3134 = vmatpush2.bf16.msra.mxu0 0
  %3135 = vmatprep.mubr.bf16.mxu0 0
  %3136 = vmatmul.mubr.bf16.gmra.mxu0 %v3101
  %v3137 = vpop.f32.mrf.mxu0
  %v3138 = vadd.f32 %v3086, %v3137
  %v3139 = vpop.f32.mrf.mxu0
  %v3140 = vpop.f32.mrf.mxu0
  %v3141 = vadd.f32 %v3086, %v3140
  %v3142 = vpop.f32.mrf.mxu0
  %3143 = vdwg.mxu0
  %v3144 = vmax.f32 %v3138, 0.0
  %v3145 = vmax.f32 %v3141, 0.0
  %v3146 = vpack.c.bf16 %v3145, %v3144
  %v3147 = vld [vmem:[%s15] sm:$0xf]
  %v3148 = vld [vmem:[%s15 + $0x4] sm:$0xf]
  %v3149 = vld [vmem:[%s15 + $0x8] sm:$0xf]
  %v3150 = vld [vmem:[%s15 + $0xc] sm:$0xf]
  %v3151 = vld [vmem:[%s15 + $0x10] sm:$0xf]
  %v3152 = vld [vmem:[%s15 + $0x14] sm:$0xf]
  %v3153 = vld [vmem:[%s15 + $0x18] sm:$0xf]
  %v3154 = vld [vmem:[%s15 + $0x1c] sm:$0xf]
  %v3155 = vld [vmem:[%s15 + $0x20] sm:$0xf]
  %v3156 = vld [vmem:[%s15 + $0x24] sm:$0xf]
  %v3157 = vld [vmem:[%s15 + $0x28] sm:$0xf]
  %v3158 = vld [vmem:[%s15 + $0x2c] sm:$0xf]
  %v3159 = vld [vmem:[%s15 + $0x30] sm:$0xf]
  %v3160 = vld [vmem:[%s15 + $0x34] sm:$0xf]
  %v3161 = vld [vmem:[%s15 + $0x38] sm:$0xf]
  %v3162 = vld [vmem:[%s15 + $0x3c] sm:$0xf]
  %v3163 = vld [vmem:[%s16] sm:$0x1]
  %v3165 = vlaneseq
  %v3166 = vshrl.u32 %v3165, 7
  %v3167 = vsub.s32 0, %v3166
  %v3168 = vrot.slane %v3163, %v3167
  %v3186 = vunpack.c.l.b16 %v3147
  %v3187 = vunpack.c.l.b16 %v3148
  %v3188 = vunpack.c.l.b16 %v3149
  %v3189 = vunpack.c.l.b16 %v3150
  %v3190 = vunpack.c.l.b16 %v3151
  %v3191 = vunpack.c.l.b16 %v3152
  %v3192 = vunpack.c.l.b16 %v3153
  %v3193 = vunpack.c.l.b16 %v3154
  %v3194 = vunpack.c.l.b16 %v3155
  %v3195 = vunpack.c.l.b16 %v3156
  %v3196 = vunpack.c.l.b16 %v3157
  %v3197 = vunpack.c.l.b16 %v3158
  %v3198 = vunpack.c.l.b16 %v3159
  %v3199 = vunpack.c.l.b16 %v3160
  %v3200 = vunpack.c.l.b16 %v3161
  %v3201 = vunpack.c.l.b16 %v3162
  %v3202 = vpack.c.b16 %v3187, %v3186
  %v3203 = vpack.c.b16 %v3189, %v3188
  %v3204 = vpack.c.b16 %v3191, %v3190
  %v3205 = vpack.c.b16 %v3193, %v3192
  %v3206 = vpack.c.b16 %v3195, %v3194
  %v3207 = vpack.c.b16 %v3197, %v3196
  %v3208 = vpack.c.b16 %v3199, %v3198
  %v3209 = vpack.c.b16 %v3201, %v3200
  %3218 = vmatprep.subr.bf16.mxu0 0
  %3219 = vmatpush1.bf16.msra.mxu0 %v3209
  %3220 = vmatprep.subr.bf16.mxu0 0
  %3221 = vmatpush1.bf16.msra.mxu0 %v3208
  %3222 = vmatprep.subr.bf16.mxu0 0
  %3223 = vmatpush1.bf16.msra.mxu0 %v3207
  %3224 = vmatprep.subr.bf16.mxu0 0
  %3225 = vmatpush1.bf16.msra.mxu0 %v3206
  %3226 = vmatprep.subr.bf16.mxu0 0
  %3227 = vmatpush1.bf16.msra.mxu0 %v3205
  %3228 = vmatprep.subr.bf16.mxu0 0
  %3229 = vmatpush1.bf16.msra.mxu0 %v3204
  %3230 = vmatprep.subr.bf16.mxu0 0
  %3231 = vmatpush1.bf16.msra.mxu0 %v3203
  %3232 = vmatprep.subr.bf16.mxu0 0
  %3233 = vmatpush1.bf16.msra.mxu0 %v3202
  %3234 = vmatprep.subr.bf16.mxu0 0
  %3235 = vmatpush2.bf16.msra.mxu0 0
  %3236 = vmatprep.subr.bf16.mxu0 0
  %3237 = vmatpush2.bf16.msra.mxu0 0
  %3238 = vmatprep.subr.bf16.mxu0 0
  %3239 = vmatpush2.bf16.msra.mxu0 0
  %3240 = vmatprep.subr.bf16.mxu0 0
  %3241 = vmatpush2.bf16.msra.mxu0 0
  %3242 = vmatprep.subr.bf16.mxu0 0
  %3243 = vmatpush2.bf16.msra.mxu0 0
  %3244 = vmatprep.subr.bf16.mxu0 0
  %3245 = vmatpush2.bf16.msra.mxu0 0
  %3246 = vmatprep.subr.bf16.mxu0 0
  %3247 = vmatpush2.bf16.msra.mxu0 0
  %3248 = vmatprep.subr.bf16.mxu0 0
  %3249 = vmatpush2.bf16.msra.mxu0 0
  %3250 = vmatprep.mubr.bf16.mxu0 0
  %3251 = vmatmul.mubr.bf16.gmra.mxu0 %v3146
  %v3252 = vpop.f32.mrf.mxu0
  %v3253 = vadd.f32 %v3168, %v3252
  %v3254 = vpop.f32.mrf.mxu0
  %v3255 = vpop.f32.mrf.mxu0
  %v3256 = vadd.f32 %v3168, %v3255
  %v3257 = vpop.f32.mrf.mxu0
  %3258 = vdwg.mxu0
  %v3259 = vadd.f32 %v3253, %v3074
  %v3260 = vadd.f32 %v3256, %v3075
  %v3261 = vld [vmem:[%s11] sm:$0x1]
  %v3262 = vld [vmem:[%s12] sm:$0x1]
  %v3263 = vsel %vm76, %v3259, 0.0
  %3264 = vadd.xlane.f32.xlu0 %v3263
  %v3265 = vpop.xlane.xlu0 %3264
  %v3266 = vsel %vm76, %v3260, 0.0
  %3267 = vadd.xlane.f32.xlu0 %v3266
  %v3268 = vpop.xlane.xlu0 %3267
  %v3269 = vmul.f32 %v3265, %v1504
  %v3270 = vmul.f32 %v3268, %v1504
  %v3271 = vsub.f32 %v3259, %v3269
  %v3272 = vsub.f32 %v3260, %v3270
  %v3273 = vmul.f32 %v3271, %v3271
  %v3274 = vmul.f32 %v3272, %v3272
  %v3275 = vsel %vm76, %v3273, 0.0
  %3276 = vadd.xlane.f32.xlu0 %v3275
  %v3277 = vpop.xlane.xlu0 %3276
  %v3278 = vsel %vm76, %v3274, 0.0
  %3279 = vadd.xlane.f32.xlu0 %v3278
  %v3280 = vpop.xlane.xlu0 %3279
  %v3281 = vmul.f32 %v3277, %v1504
  %v3282 = vmul.f32 %v3280, %v1504
  %v3283 = vadd.f32 %v3281, 1e-05
  %v3284 = vadd.f32 %v3282, 1e-05
  %v3285 = vrsqrt.pop %v3283
  %v3286 = vrsqrt.pop %v3284
  %v3287 = vmul.f32 %v3271, %v3285
  %v3288 = vmul.f32 %v3272, %v3286
  %v3290 = vlaneseq
  %v3291 = vshrl.u32 %v3290, 7
  %v3292 = vsub.s32 0, %v3291
  %v3293 = vrot.slane %v3261, %v3292
  %v3295 = vmul.f32 %v3287, %v3293
  %v3296 = vmul.f32 %v3288, %v3293
  %v3298 = vlaneseq
  %v3299 = vshrl.u32 %v3298, 7
  %v3300 = vsub.s32 0, %v3299
  %v3301 = vrot.slane %v3262, %v3300
  %v3303 = vadd.f32 %v3295, %v3301
  %v3304 = vadd.f32 %v3296, %v3301
  %3305 = vst.msk [vmem:[%s17] sm:$0xff] %vm76, %v3303
  %3306 = vst.msk [vmem:[%s17 + $0x8] sm:$0xff] %vm76, %v3304
  // Predicated region
  $region70: #{decoder_forward.3} parent=0 // pred_check
    _
  $region71: #{decoder_forward.3} parent=0 // pred_check_branch
    %3308 = sbr.rel (0) target = $region73
  $region72: #{decoder_forward.3} parent=0 // pred_region
    _
  $region73: #{decoder_forward.3} parent=0 // pred_fallthru
    _
  // Predicated region
  $region74: #{decoder_forward.3} parent=0 // pred_check
    _
  $region75: #{decoder_forward.3} parent=0 // pred_check_branch
    %3310 = sbr.rel (0) target = $region77
  $region76: #{decoder_forward.3} parent=0 // pred_region
    _
  $region77: #{decoder_forward.3} parent=0 // pred_fallthru
    _

</llo_original>
